<compile_context>
chip_gen: v5e
topology: v5e:2x2
jax: 0.10.0
libtpu: 0.0.40
codegen_flags: <defaults>
</compile_context>

<pallas_src>
import functools
import math

import jax
import jax.numpy as jnp
from jax import lax
from jax.experimental import pallas as pl
from jax.experimental.pallas import tpu as pltpu

SUBTASKS = ("asr", "st")
LN_EPS = 1e-5
_MXU_DTYPE = jnp.bfloat16          # MXU operand dtype (accumulation is always fp32)


def _round_up(v, m):
    return ((v + m - 1) // m) * m


# ----------------------------------------------------------------------------
# In-kernel helpers (operate on values already resident in VMEM/vregs)
# ----------------------------------------------------------------------------
def _mm(a, b):
    """MXU matmul: bf16 operands, fp32 accumulation."""
    return jnp.dot(a.astype(_MXU_DTYPE), b.astype(_MXU_DTYPE),
                   preferred_element_type=jnp.float32)


def _layer_norm(y, gamma, beta):
    mean = jnp.mean(y, axis=-1, keepdims=True)
    var = jnp.mean(jnp.square(y - mean), axis=-1, keepdims=True)
    return (y - mean) * lax.rsqrt(var + LN_EPS) * gamma + beta


def _attend(q3, k3, v3, wo, num_heads, *, need_weights, valid_kv):
    """Multi-head attention, batched over B per head, out-projection folded into the
    head loop (no concat-of-heads).

    q3: (B, Tq, E) fp32 with the 1/sqrt(Dh) scaling already folded into the projection.
    k3, v3: (B, Tk, E) fp32.  wo: (E, E) output-projection weight (bias added by caller).
    valid_kv: number of valid key columns (< Tk means the tail is padding to mask out).

    Returns (out (B*Tq, E) fp32, head-averaged weights (B, Tq, Tk) fp32 or None).
    """
    bb, tq, e = q3.shape
    tk = k3.shape[1]
    dh = e // num_heads

    mask = None
    if valid_kv is not None and valid_kv < tk:
        col = lax.broadcasted_iota(jnp.int32, (1, tk), 1)
        mask = jnp.where(col < valid_kv, jnp.float32(0.0), jnp.float32(-1e30))

    acc = jnp.zeros((bb * tq, e), jnp.float32)
    w_acc = jnp.zeros((bb, tq, tk), jnp.float32) if need_weights else None

    # TODO(synk): for very large head counts switch this static loop to
    # lax.fori_loop(..., unroll=True) to bound trace size.
    for h in range(num_heads):
        sl = slice(h * dh, (h + 1) * dh)
        qh = q3[:, :, sl].astype(_MXU_DTYPE)          # (B, Tq, Dh)
        kh = k3[:, :, sl].astype(_MXU_DTYPE)          # (B, Tk, Dh)
        vh = v3[:, :, sl].astype(_MXU_DTYPE)          # (B, Tk, Dh)

        s = jnp.einsum("bqd,bkd->bqk", qh, kh,
                       preferred_element_type=jnp.float32)      # (B, Tq, Tk) fp32
        if mask is not None:
            s = s + mask
        m = jnp.max(s, axis=-1, keepdims=True)
        p = jnp.exp(s - m)
        denom = jnp.sum(p, axis=-1, keepdims=True)
        if need_weights:
            attn = p / denom                          # exact: these weights are exported
            w_acc = w_acc + attn
        else:
            attn = p * pl.reciprocal(denom, approx=True)

        oh = jnp.einsum("bqk,bkd->bqd", attn.astype(_MXU_DTYPE), vh,
                        preferred_element_type=jnp.float32)     # (B, Tq, Dh)
        # Fold the output projection into the head loop: no concat-of-heads.
        acc = acc + jnp.dot(oh.reshape(bb * tq, dh).astype(_MXU_DTYPE),
                            wo[sl, :].astype(_MXU_DTYPE),
                            preferred_element_type=jnp.float32)

    if need_weights:
        return acc, w_acc * (1.0 / num_heads)
    return acc, None


# ----------------------------------------------------------------------------
# Fused whole-layer kernel: one grid step per (subtask, batch-tile)
# ----------------------------------------------------------------------------
def _dual_decoder_layer_kernel(
    x_ref, enc_ref,
    wqkv_s_ref, bqkv_s_ref, wo_s_ref, bo_s_ref, ln1_g_ref, ln1_b_ref,
    wq_e_ref, bq_e_ref, wkv_e_ref, bkv_e_ref, wo_e_ref, bo_e_ref, ln2_g_ref, ln2_b_ref,
    fc1_w_ref, fc1_b_ref, fc2_w_ref, fc2_b_ref, ln3_g_ref, ln3_b_ref,
    out_ref, attn_ref,
    *, num_heads, batch_block, tgt_len, src_len, ffn_chunk):
    E = x_ref.shape[-1]
    bb, T = batch_block, tgt_len
    S_pad = enc_ref.shape[0] // bb
    F = fc1_w_ref.shape[-1]

    x = x_ref[0].astype(jnp.float32)                       # (bb*T, E) activation slab

    # ---- self-attention block (post-norm): LN(out_proj(MHA(x,x,x)) + x) ----
    # TODO(synk): no causal / key-padding mask — self_attn_mask and padding masks are
    # None in this configuration; gate the config if used autoregressively.
    qkv = _mm(x, wqkv_s_ref[0]) + bqkv_s_ref[0]            # (bb*T, 3E); Q pre-scaled in weights
    sa, _ = _attend(qkv[:, :E].reshape(bb, T, E),
                    qkv[:, E:2 * E].reshape(bb, T, E),
                    qkv[:, 2 * E:].reshape(bb, T, E),
                    wo_s_ref[0], num_heads, need_weights=False, valid_kv=None)
    sa = sa + bo_s_ref[0]
    h1 = _layer_norm(sa + x, ln1_g_ref[0], ln1_b_ref[0])

    # ---- encoder (cross) attention block: LN(out_proj(MHA(x, enc, enc)) + x) ----
    enc = enc_ref[...]                                     # (bb*S_pad, K)
    q = _mm(h1, wq_e_ref[0]) + bq_e_ref[0]                 # (bb*T, E); scaling folded in
    kv = _mm(enc, wkv_e_ref[0]) + bkv_e_ref[0]             # (bb*S_pad, 2E)
    ca, w_mean = _attend(q.reshape(bb, T, E),
                         kv[:, :E].reshape(bb, S_pad, E),
                         kv[:, E:].reshape(bb, S_pad, E),
                         wo_e_ref[0], num_heads, need_weights=True, valid_kv=src_len)
    ca = ca + bo_e_ref[0]
    h2 = _layer_norm(ca + h1, ln2_g_ref[0], ln2_b_ref[0])

    # ---- FFN block: LN(fc2(relu(fc1(x))) + x), chunked along F ----
    acc = None
    for f0 in range(0, F, ffn_chunk):
        f1 = min(f0 + ffn_chunk, F)
        hid = jnp.maximum(_mm(h2, fc1_w_ref[0, :, f0:f1]) + fc1_b_ref[0, :, f0:f1], 0.0)
        part = _mm(hid, fc2_w_ref[0, f0:f1, :])
        acc = part if acc is None else acc + part
    ff = acc + fc2_b_ref[0]
    h3 = _layer_norm(ff + h2, ln3_g_ref[0], ln3_b_ref[0])

    # Direct stores — no stacking of per-batch results.
    out_ref[0] = h3.astype(out_ref.dtype)                          # (bb*T, E)
    attn_ref[0] = w_mean.reshape(bb * T, S_pad).astype(attn_ref.dtype)  # lane-dense (bb*T, S_pad)


# ----------------------------------------------------------------------------
# Python wrapper: one pallas_call for the entire dual-decoder layer
# ----------------------------------------------------------------------------
def transformer_dual_decoder_layer(x_tuple, encoder_out, params, num_heads,
                                   *, batch_tile=None, ffn_chunk=512):
    """x_tuple: tuple of two (T, B, E) arrays (one per subtask).
       encoder_out: (S, B, E_enc). Returns (x_tuple_out, attn_tuple, None)."""
    n = len(x_tuple)
    T, B, E = x_tuple[0].shape
    S, _, K = encoder_out.shape
    F = params["fc1_w"].shape[-1]
    S_pad = _round_up(S, 128)                  # lane-dense scores / attn-weight output
    bb = B if batch_tile is None else batch_tile
    assert B % bb == 0, "batch_tile must divide the batch"
    fchunk = max(min(ffn_chunk, F), 1)

    # Batch-major slabs: every projection / FFN matmul runs at M = bb*T (not M = T).
    x = jnp.stack(x_tuple, axis=0).transpose(0, 2, 1, 3).reshape(n, B * T, E)
    enc = jnp.pad(encoder_out, ((0, S_pad - S), (0, 0), (0, 0)))
    enc = enc.transpose(1, 0, 2).reshape(B * S_pad, K)

    grid = (n, B // bb)                        # both axes parallel (subtask x batch tiles)

    # Weight specs: index depends only on the subtask axis -> resident across the inner
    # batch axis.  TODO(synk): at production dims (E~1024, F~4096) additionally set
    # pipeline_mode=pl.Buffered(1) on these (or keep the big FFN weights in pl.ANY with a
    # manual copy / emit_pipeline over F) so double-buffered weights fit v7x's 64 MiB VMEM.
    def wspec(*dims):
        zeros = (0,) * len(dims)
        return pl.BlockSpec((1,) + dims, lambda t, j: (t,) + zeros)

    in_specs = [
        pl.BlockSpec((1, bb * T, E), lambda t, j: (t, j, 0)),       # x slab (per task / batch tile)
        pl.BlockSpec((bb * S_pad, K), lambda t, j: (j, 0)),         # encoder slab (shared)
        # self-attn params
        wspec(E, 3 * E), wspec(1, 3 * E), wspec(E, E), wspec(1, E), wspec(1, E), wspec(1, E),
        # encoder-attn params
        wspec(E, E), wspec(1, E), wspec(K, 2 * E), wspec(1, 2 * E), wspec(E, E), wspec(1, E),
        wspec(1, E), wspec(1, E),
        # FFN params
        wspec(E, F), wspec(1, F), wspec(F, E), wspec(1, E), wspec(1, E), wspec(1, E),
    ]
    out_specs = (pl.BlockSpec((1, bb * T, E), lambda t, j: (t, j, 0)),
                 pl.BlockSpec((1, bb * T, S_pad), lambda t, j: (t, j, 0)))
    out_shape = (jax.ShapeDtypeStruct((n, B * T, E), x.dtype),
                 jax.ShapeDtypeStruct((n, B * T, S_pad), jnp.float32))

    # --- VMEM plan (with headroom) and cost estimate -------------------------------------
    def nbytes(shape, dtype):
        return math.prod(shape) * jnp.dtype(dtype).itemsize

    param_block_bytes = 2 * sum(nbytes(p.shape[1:], p.dtype) for p in params.values())
    act_block_bytes = 2 * (nbytes((bb * T, E), x.dtype) + nbytes((bb * S_pad, K), enc.dtype)
                           + nbytes((bb * T, E), x.dtype)
                           + nbytes((bb * T, S_pad), jnp.float32))
    interm_bytes = 4 * (bb * T) * (10 * E + 3 * E + 2 * fchunk + 6 * S_pad)
    planned = param_block_bytes + act_block_bytes + interm_bytes
    vmem_limit = int(min(64 * 2 ** 20, max(2 * planned, 16 * 2 ** 20)))

    flops = n * (2 * B * T * E * 3 * E            # fused QKV projection
                 + 4 * B * T * T * E              # self-attn scores + PV
                 + 2 * B * T * E * E              # self out-proj
                 + 2 * B * T * E * E              # enc q-proj
                 + 2 * B * S_pad * K * 2 * E      # enc fused KV proj
                 + 4 * B * T * S_pad * E          # enc scores + PV
                 + 2 * B * T * E * E              # enc out-proj
                 + 4 * B * T * E * F)             # fc1 + fc2
    transc = n * B * num_heads * T * (T + S_pad) + n * 3 * B * T
    bytes_acc = (x.size * x.dtype.itemsize
                 + n * enc.size * enc.dtype.itemsize
                 + sum(p.size * p.dtype.itemsize for p in params.values())
                 + n * B * T * E * x.dtype.itemsize
                 + n * B * T * S_pad * 4)

    kernel = functools.partial(
        _dual_decoder_layer_kernel, num_heads=num_heads, batch_block=bb,
        tgt_len=T, src_len=S, ffn_chunk=fchunk)

    out_slab, attn_slab = pl.pallas_call(
        kernel,
        out_shape=out_shape,
        grid=grid,
        in_specs=in_specs,
        out_specs=out_specs,
        compiler_params=pltpu.CompilerParams(
            dimension_semantics=("parallel", "parallel"),
            vmem_limit_bytes=vmem_limit),
        cost_estimate=pl.CostEstimate(flops=int(flops), transcendentals=int(transc),
                                      bytes_accessed=int(bytes_acc)),
    )(x, enc,
      params["wqkv_s"], params["bqkv_s"], params["wo_s"], params["bo_s"],
      params["ln1_g"], params["ln1_b"],
      params["wq_e"], params["bq_e"], params["wkv_e"], params["bkv_e"],
      params["wo_e"], params["bo_e"], params["ln2_g"], params["ln2_b"],
      params["fc1_w"], params["fc1_b"], params["fc2_w"], params["fc2_b"],
      params["ln3_g"], params["ln3_b"])

    # Wrapper-side layout plumbing back to the module's (T, B, E) / (B, T, S) contract.
    out = out_slab.reshape(n, B, T, E).transpose(0, 2, 1, 3)
    attn = attn_slab.reshape(n, B, T, S_pad)[..., :S]

    # TODO(synk): dual_attn_at_self / dual_attn_at_src (wait_k dual attention + sum/concat
    # merge) are disabled because dual_attn_position / merge_operator default to None.
    return (out[0], out[1]), (attn[0], attn[1]), None


# ----------------------------------------------------------------------------
# Deterministic parameter init (weights stacked over the 2 subtasks)
# ----------------------------------------------------------------------------
def init_params(key, embed_dim, ffn_dim, enc_embed_dim, num_heads, ntask=2,
                param_dtype=jnp.bfloat16):
    """Matmul weights in `param_dtype` (bf16 -> full MXU rate, half the VMEM); biases and
    LayerNorm affine params stay fp32.  The 1/sqrt(Dh) q-scaling is folded into the Q
    projection weights AND biases — apply the same transform when importing fairseq weights."""
    E, F, K, n = embed_dim, ffn_dim, enc_embed_dim, ntask
    scaling = (E // num_heads) ** -0.5
    ks = jax.random.split(key, 14)
    s = 0.05

    def nrm(k, shape):
        return s * jax.random.normal(k, shape, jnp.float32)

    ones = lambda d: jnp.ones((n, 1, d), jnp.float32)
    zeros = lambda d: jnp.zeros((n, 1, d), jnp.float32)

    wqkv = nrm(ks[0], (n, E, 3 * E)).at[:, :, :E].multiply(scaling)
    bqkv = nrm(ks[1], (n, 1, 3 * E)).at[:, :, :E].multiply(scaling)
    wq_e = nrm(ks[4], (n, E, E)) * scaling
    bq_e = nrm(ks[5], (n, 1, E)) * scaling

    w = lambda a: a.astype(param_dtype)
    return dict(
        # self-attention: fused QKV projection (E, 3E) + output projection
        wqkv_s=w(wqkv), bqkv_s=bqkv,
        wo_s=w(nrm(ks[2], (n, E, E))), bo_s=nrm(ks[3], (n, 1, E)),
        ln1_g=ones(E), ln1_b=zeros(E),
        # encoder attention: separate q-proj and fused KV projection (Kdim, 2E)
        wq_e=w(wq_e), bq_e=bq_e,
        wkv_e=w(nrm(ks[6], (n, K, 2 * E))), bkv_e=nrm(ks[7], (n, 1, 2 * E)),
        wo_e=w(nrm(ks[8], (n, E, E))), bo_e=nrm(ks[9], (n, 1, E)),
        ln2_g=ones(E), ln2_b=zeros(E),
        # FFN
        fc1_w=w(nrm(ks[10], (n, E, F))), fc1_b=nrm(ks[11], (n, 1, F)),
        fc2_w=w(nrm(ks[12], (n, F, E))), fc2_b=nrm(ks[13], (n, 1, E)),
        ln3_g=ones(E), ln3_b=zeros(E),
    )


if __name__ == "__main__":
    T, B, E = 8, 2, 32          # decoder seq_len, batch, decoder_embed_dim
    S, E_ENC = 16, 32           # encoder seq_len, encoder_embed_dim
    H, FFN = 4, 64              # decoder_attention_heads, decoder_ffn_embed_dim

    key = jax.random.PRNGKey(0)
    k_x0, k_x1, k_enc, k_p = jax.random.split(key, 4)

    x_asr = jax.random.normal(k_x0, (T, B, E), jnp.float32)
    x_st = jax.random.normal(k_x1, (T, B, E), jnp.float32)
    encoder_out = jax.random.normal(k_enc, (S, B, E_ENC), jnp.float32)
    params = init_params(k_p, E, FFN, E_ENC, H)

    fwd = jax.jit(functools.partial(transformer_dual_decoder_layer, num_heads=H))
    (out_asr, out_st), (attn_asr, attn_st), _ = fwd((x_asr, x_st), encoder_out, params)
    jax.block_until_ready((out_asr, out_st, attn_asr, attn_st))

    assert out_asr.shape == (T, B, E) and out_st.shape == (T, B, E)
    assert attn_asr.shape == (B, T, S) and attn_st.shape == (B, T, S)
    assert bool(jnp.isfinite(out_asr).all()) and bool(jnp.isfinite(out_st).all())
    assert bool(jnp.isfinite(attn_asr).all()) and bool(jnp.isfinite(attn_st).all())
    # attention weights must sum to 1 over the (unpadded) source positions
    assert bool(jnp.allclose(attn_asr.sum(-1), 1.0, atol=1e-3))
    print("KERNEL_OK")
</pallas_src>

<mosaic_0001>
module attributes {stable_mosaic.version = 11 : i64} {
  func.func @_dual_decoder_layer_kernel(%arg0: i32, %arg1: i32, %arg2: memref<1x16x32xf32, #tpu.memory_space<vmem>>, %arg3: memref<256x32xf32, #tpu.memory_space<vmem>>, %arg4: memref<1x32x96xbf16, #tpu.memory_space<vmem>>, %arg5: memref<1x1x96xf32, #tpu.memory_space<vmem>>, %arg6: memref<1x32x32xbf16, #tpu.memory_space<vmem>>, %arg7: memref<1x1x32xf32, #tpu.memory_space<vmem>>, %arg8: memref<1x1x32xf32, #tpu.memory_space<vmem>>, %arg9: memref<1x1x32xf32, #tpu.memory_space<vmem>>, %arg10: memref<1x32x32xbf16, #tpu.memory_space<vmem>>, %arg11: memref<1x1x32xf32, #tpu.memory_space<vmem>>, %arg12: memref<1x32x64xbf16, #tpu.memory_space<vmem>>, %arg13: memref<1x1x64xf32, #tpu.memory_space<vmem>>, %arg14: memref<1x32x32xbf16, #tpu.memory_space<vmem>>, %arg15: memref<1x1x32xf32, #tpu.memory_space<vmem>>, %arg16: memref<1x1x32xf32, #tpu.memory_space<vmem>>, %arg17: memref<1x1x32xf32, #tpu.memory_space<vmem>>, %arg18: memref<1x32x64xbf16, #tpu.memory_space<vmem>>, %arg19: memref<1x1x64xf32, #tpu.memory_space<vmem>>, %arg20: memref<1x64x32xbf16, #tpu.memory_space<vmem>>, %arg21: memref<1x1x32xf32, #tpu.memory_space<vmem>>, %arg22: memref<1x1x32xf32, #tpu.memory_space<vmem>>, %arg23: memref<1x1x32xf32, #tpu.memory_space<vmem>>, %arg24: memref<1x16x32xf32, #tpu.memory_space<vmem>>, %arg25: memref<1x16x128xf32, #tpu.memory_space<vmem>>) attributes {dimension_semantics = [#tpu.dimension_semantics<parallel>, #tpu.dimension_semantics<parallel>], iteration_bounds = array<i64: 2, 1>, scalar_prefetch = 0 : i64, scratch_operands = 0 : i64, tpu.core_type = #tpu.core_type<tc>, window_params = [{transform_indices = @transform_0, window_bounds = array<i64: 1, 16, 32>}, {transform_indices = @transform_1, window_bounds = array<i64: 256, 32>}, {transform_indices = @transform_2, window_bounds = array<i64: 1, 32, 96>}, {transform_indices = @transform_3, window_bounds = array<i64: 1, 1, 96>}, {transform_indices = @transform_4, window_bounds = array<i64: 1, 32, 32>}, {transform_indices = @transform_5, window_bounds = array<i64: 1, 1, 32>}, {transform_indices = @transform_6, window_bounds = array<i64: 1, 1, 32>}, {transform_indices = @transform_7, window_bounds = array<i64: 1, 1, 32>}, {transform_indices = @transform_8, window_bounds = array<i64: 1, 32, 32>}, {transform_indices = @transform_9, window_bounds = array<i64: 1, 1, 32>}, {transform_indices = @transform_10, window_bounds = array<i64: 1, 32, 64>}, {transform_indices = @transform_11, window_bounds = array<i64: 1, 1, 64>}, {transform_indices = @transform_12, window_bounds = array<i64: 1, 32, 32>}, {transform_indices = @transform_13, window_bounds = array<i64: 1, 1, 32>}, {transform_indices = @transform_14, window_bounds = array<i64: 1, 1, 32>}, {transform_indices = @transform_15, window_bounds = array<i64: 1, 1, 32>}, {transform_indices = @transform_16, window_bounds = array<i64: 1, 32, 64>}, {transform_indices = @transform_17, window_bounds = array<i64: 1, 1, 64>}, {transform_indices = @transform_18, window_bounds = array<i64: 1, 64, 32>}, {transform_indices = @transform_19, window_bounds = array<i64: 1, 1, 32>}, {transform_indices = @transform_20, window_bounds = array<i64: 1, 1, 32>}, {transform_indices = @transform_21, window_bounds = array<i64: 1, 1, 32>}, {transform_indices = @transform_22, window_bounds = array<i64: 1, 16, 32>}, {transform_indices = @transform_23, window_bounds = array<i64: 1, 16, 128>}]} {
    %c0 = arith.constant 0 : index
    %c0_0 = arith.constant 0 : index
    %c0_1 = arith.constant 0 : index
    %0 = vector.load %arg2[%c0, %c0_0, %c0_1] : memref<1x16x32xf32, #tpu.memory_space<vmem>>, vector<1x16x32xf32>
    %1 = vector.shape_cast %0 : vector<1x16x32xf32> to vector<16x32xf32>
    %c0_2 = arith.constant 0 : index
    %c0_3 = arith.constant 0 : index
    %c0_4 = arith.constant 0 : index
    %2 = vector.load %arg4[%c0_2, %c0_3, %c0_4] : memref<1x32x96xbf16, #tpu.memory_space<vmem>>, vector<1x32x96xbf16>
    %3 = vector.shape_cast %2 : vector<1x32x96xbf16> to vector<32x96xbf16>
    %4 = arith.truncf %1 : vector<16x32xf32> to vector<16x32xbf16>
    %cst = arith.constant dense<0.000000e+00> : vector<16x96xf32>
    %5 = tpu.matmul %4, %3, %cst {dimension_numbers = #tpu.dot_dimension_numbers<[1], [0], [0], [1], [0, 0, 1, 1], [], []>} : vector<16x32xbf16>, vector<32x96xbf16>, vector<16x96xf32> -> vector<16x96xf32>
    %c0_5 = arith.constant 0 : index
    %c0_6 = arith.constant 0 : index
    %c0_7 = arith.constant 0 : index
    %6 = vector.load %arg5[%c0_5, %c0_6, %c0_7] : memref<1x1x96xf32, #tpu.memory_space<vmem>>, vector<1x1x96xf32>
    %7 = vector.shape_cast %6 : vector<1x1x96xf32> to vector<1x96xf32>
    %8 = vector.broadcast %7 : vector<1x96xf32> to vector<16x96xf32>
    %9 = arith.addf %5, %8 : vector<16x96xf32>
    %10 = vector.extract_strided_slice %9 {offsets = [0, 0], sizes = [16, 32], strides = [1, 1]} : vector<16x96xf32> to vector<16x32xf32>
    %11 = vector.shape_cast %10 : vector<16x32xf32> to vector<2x8x32xf32>
    %12 = vector.extract_strided_slice %9 {offsets = [0, 32], sizes = [16, 32], strides = [1, 1]} : vector<16x96xf32> to vector<16x32xf32>
    %13 = vector.shape_cast %12 : vector<16x32xf32> to vector<2x8x32xf32>
    %14 = vector.extract_strided_slice %9 {offsets = [0, 64], sizes = [16, 32], strides = [1, 1]} : vector<16x96xf32> to vector<16x32xf32>
    %15 = vector.shape_cast %14 : vector<16x32xf32> to vector<2x8x32xf32>
    %c0_8 = arith.constant 0 : index
    %c0_9 = arith.constant 0 : index
    %c0_10 = arith.constant 0 : index
    %16 = vector.load %arg6[%c0_8, %c0_9, %c0_10] : memref<1x32x32xbf16, #tpu.memory_space<vmem>>, vector<1x32x32xbf16>
    %17 = vector.shape_cast %16 : vector<1x32x32xbf16> to vector<32x32xbf16>
    %cst_11 = arith.constant 0.000000e+00 : f32
    %18 = vector.broadcast %cst_11 : f32 to vector<16x32xf32>
    %19 = vector.extract_strided_slice %11 {offsets = [0, 0, 0], sizes = [2, 8, 8], strides = [1, 1, 1]} : vector<2x8x32xf32> to vector<2x8x8xf32>
    %20 = arith.truncf %19 : vector<2x8x8xf32> to vector<2x8x8xbf16>
    %21 = vector.extract_strided_slice %13 {offsets = [0, 0, 0], sizes = [2, 8, 8], strides = [1, 1, 1]} : vector<2x8x32xf32> to vector<2x8x8xf32>
    %22 = arith.truncf %21 : vector<2x8x8xf32> to vector<2x8x8xbf16>
    %23 = vector.extract_strided_slice %15 {offsets = [0, 0, 0], sizes = [2, 8, 8], strides = [1, 1, 1]} : vector<2x8x32xf32> to vector<2x8x8xf32>
    %24 = arith.truncf %23 : vector<2x8x8xf32> to vector<2x8x8xbf16>
    "tpu.trace_start"() <{level = 10 : i32, message = "bqd,bkd->bqk"}> : () -> ()
    %cst_12 = arith.constant dense<0.000000e+00> : vector<2x8x8xf32>
    %25 = tpu.matmul %20, %22, %cst_12 {dimension_numbers = #tpu.dot_dimension_numbers<[2], [2], [1], [1], [0, 0, 0, 1, 1, 1], [0], [0]>} : vector<2x8x8xbf16>, vector<2x8x8xbf16>, vector<2x8x8xf32> -> vector<2x8x8xf32>
    "tpu.trace_stop"() : () -> ()
    %cst_13 = arith.constant dense<0xFF800000> : vector<2x8xf32>
    %26 = vector.multi_reduction <maximumf>, %25, %cst_13 [2] : vector<2x8x8xf32> to vector<2x8xf32>
    %27 = vector.shape_cast %26 : vector<2x8xf32> to vector<2x8x1xf32>
    %28 = vector.broadcast %27 : vector<2x8x1xf32> to vector<2x8x8xf32>
    %29 = arith.subf %25, %28 : vector<2x8x8xf32>
    %30 = math.exp %29 : vector<2x8x8xf32>
    %cst_14 = arith.constant dense<0.000000e+00> : vector<2x8xf32>
    %31 = vector.multi_reduction <add>, %30, %cst_14 [2] : vector<2x8x8xf32> to vector<2x8xf32>
    %32 = vector.shape_cast %31 : vector<2x8xf32> to vector<2x8x1xf32>
    %33 = tpu.reciprocal %32 {approx = true} : vector<2x8x1xf32> -> vector<2x8x1xf32>
    %34 = vector.broadcast %33 : vector<2x8x1xf32> to vector<2x8x8xf32>
    %35 = arith.mulf %30, %34 : vector<2x8x8xf32>
    %36 = arith.truncf %35 : vector<2x8x8xf32> to vector<2x8x8xbf16>
    "tpu.trace_start"() <{level = 10 : i32, message = "bqk,bkd->bqd"}> : () -> ()
    %cst_15 = arith.constant dense<0.000000e+00> : vector<2x8x8xf32>
    %37 = tpu.matmul %36, %24, %cst_15 {dimension_numbers = #tpu.dot_dimension_numbers<[2], [1], [1], [2], [0, 0, 0, 1, 1, 2], [0], [0]>} : vector<2x8x8xbf16>, vector<2x8x8xbf16>, vector<2x8x8xf32> -> vector<2x8x8xf32>
    "tpu.trace_stop"() : () -> ()
    %38 = vector.shape_cast %37 : vector<2x8x8xf32> to vector<16x8xf32>
    %39 = arith.truncf %38 : vector<16x8xf32> to vector<16x8xbf16>
    %40 = vector.extract_strided_slice %17 {offsets = [0, 0], sizes = [8, 32], strides = [1, 1]} : vector<32x32xbf16> to vector<8x32xbf16>
    %cst_16 = arith.constant dense<0.000000e+00> : vector<16x32xf32>
    %41 = tpu.matmul %39, %40, %cst_16 {dimension_numbers = #tpu.dot_dimension_numbers<[1], [0], [0], [1], [0, 0, 1, 1], [], []>} : vector<16x8xbf16>, vector<8x32xbf16>, vector<16x32xf32> -> vector<16x32xf32>
    %42 = arith.addf %18, %41 : vector<16x32xf32>
    %43 = vector.extract_strided_slice %11 {offsets = [0, 0, 8], sizes = [2, 8, 8], strides = [1, 1, 1]} : vector<2x8x32xf32> to vector<2x8x8xf32>
    %44 = arith.truncf %43 : vector<2x8x8xf32> to vector<2x8x8xbf16>
    %45 = vector.extract_strided_slice %13 {offsets = [0, 0, 8], sizes = [2, 8, 8], strides = [1, 1, 1]} : vector<2x8x32xf32> to vector<2x8x8xf32>
    %46 = arith.truncf %45 : vector<2x8x8xf32> to vector<2x8x8xbf16>
    %47 = vector.extract_strided_slice %15 {offsets = [0, 0, 8], sizes = [2, 8, 8], strides = [1, 1, 1]} : vector<2x8x32xf32> to vector<2x8x8xf32>
    %48 = arith.truncf %47 : vector<2x8x8xf32> to vector<2x8x8xbf16>
    "tpu.trace_start"() <{level = 10 : i32, message = "bqd,bkd->bqk"}> : () -> ()
    %cst_17 = arith.constant dense<0.000000e+00> : vector<2x8x8xf32>
    %49 = tpu.matmul %44, %46, %cst_17 {dimension_numbers = #tpu.dot_dimension_numbers<[2], [2], [1], [1], [0, 0, 0, 1, 1, 1], [0], [0]>} : vector<2x8x8xbf16>, vector<2x8x8xbf16>, vector<2x8x8xf32> -> vector<2x8x8xf32>
    "tpu.trace_stop"() : () -> ()
    %cst_18 = arith.constant dense<0xFF800000> : vector<2x8xf32>
    %50 = vector.multi_reduction <maximumf>, %49, %cst_18 [2] : vector<2x8x8xf32> to vector<2x8xf32>
    %51 = vector.shape_cast %50 : vector<2x8xf32> to vector<2x8x1xf32>
    %52 = vector.broadcast %51 : vector<2x8x1xf32> to vector<2x8x8xf32>
    %53 = arith.subf %49, %52 : vector<2x8x8xf32>
    %54 = math.exp %53 : vector<2x8x8xf32>
    %cst_19 = arith.constant dense<0.000000e+00> : vector<2x8xf32>
    %55 = vector.multi_reduction <add>, %54, %cst_19 [2] : vector<2x8x8xf32> to vector<2x8xf32>
    %56 = vector.shape_cast %55 : vector<2x8xf32> to vector<2x8x1xf32>
    %57 = tpu.reciprocal %56 {approx = true} : vector<2x8x1xf32> -> vector<2x8x1xf32>
    %58 = vector.broadcast %57 : vector<2x8x1xf32> to vector<2x8x8xf32>
    %59 = arith.mulf %54, %58 : vector<2x8x8xf32>
    %60 = arith.truncf %59 : vector<2x8x8xf32> to vector<2x8x8xbf16>
    "tpu.trace_start"() <{level = 10 : i32, message = "bqk,bkd->bqd"}> : () -> ()
    %cst_20 = arith.constant dense<0.000000e+00> : vector<2x8x8xf32>
    %61 = tpu.matmul %60, %48, %cst_20 {dimension_numbers = #tpu.dot_dimension_numbers<[2], [1], [1], [2], [0, 0, 0, 1, 1, 2], [0], [0]>} : vector<2x8x8xbf16>, vector<2x8x8xbf16>, vector<2x8x8xf32> -> vector<2x8x8xf32>
    "tpu.trace_stop"() : () -> ()
    %62 = vector.shape_cast %61 : vector<2x8x8xf32> to vector<16x8xf32>
    %63 = arith.truncf %62 : vector<16x8xf32> to vector<16x8xbf16>
    %64 = vector.extract_strided_slice %17 {offsets = [8, 0], sizes = [8, 32], strides = [1, 1]} : vector<32x32xbf16> to vector<8x32xbf16>
    %cst_21 = arith.constant dense<0.000000e+00> : vector<16x32xf32>
    %65 = tpu.matmul %63, %64, %cst_21 {dimension_numbers = #tpu.dot_dimension_numbers<[1], [0], [0], [1], [0, 0, 1, 1], [], []>} : vector<16x8xbf16>, vector<8x32xbf16>, vector<16x32xf32> -> vector<16x32xf32>
    %66 = arith.addf %42, %65 : vector<16x32xf32>
    %67 = vector.extract_strided_slice %11 {offsets = [0, 0, 16], sizes = [2, 8, 8], strides = [1, 1, 1]} : vector<2x8x32xf32> to vector<2x8x8xf32>
    %68 = arith.truncf %67 : vector<2x8x8xf32> to vector<2x8x8xbf16>
    %69 = vector.extract_strided_slice %13 {offsets = [0, 0, 16], sizes = [2, 8, 8], strides = [1, 1, 1]} : vector<2x8x32xf32> to vector<2x8x8xf32>
    %70 = arith.truncf %69 : vector<2x8x8xf32> to vector<2x8x8xbf16>
    %71 = vector.extract_strided_slice %15 {offsets = [0, 0, 16], sizes = [2, 8, 8], strides = [1, 1, 1]} : vector<2x8x32xf32> to vector<2x8x8xf32>
    %72 = arith.truncf %71 : vector<2x8x8xf32> to vector<2x8x8xbf16>
    "tpu.trace_start"() <{level = 10 : i32, message = "bqd,bkd->bqk"}> : () -> ()
    %cst_22 = arith.constant dense<0.000000e+00> : vector<2x8x8xf32>
    %73 = tpu.matmul %68, %70, %cst_22 {dimension_numbers = #tpu.dot_dimension_numbers<[2], [2], [1], [1], [0, 0, 0, 1, 1, 1], [0], [0]>} : vector<2x8x8xbf16>, vector<2x8x8xbf16>, vector<2x8x8xf32> -> vector<2x8x8xf32>
    "tpu.trace_stop"() : () -> ()
    %cst_23 = arith.constant dense<0xFF800000> : vector<2x8xf32>
    %74 = vector.multi_reduction <maximumf>, %73, %cst_23 [2] : vector<2x8x8xf32> to vector<2x8xf32>
    %75 = vector.shape_cast %74 : vector<2x8xf32> to vector<2x8x1xf32>
    %76 = vector.broadcast %75 : vector<2x8x1xf32> to vector<2x8x8xf32>
    %77 = arith.subf %73, %76 : vector<2x8x8xf32>
    %78 = math.exp %77 : vector<2x8x8xf32>
    %cst_24 = arith.constant dense<0.000000e+00> : vector<2x8xf32>
    %79 = vector.multi_reduction <add>, %78, %cst_24 [2] : vector<2x8x8xf32> to vector<2x8xf32>
    %80 = vector.shape_cast %79 : vector<2x8xf32> to vector<2x8x1xf32>
    %81 = tpu.reciprocal %80 {approx = true} : vector<2x8x1xf32> -> vector<2x8x1xf32>
    %82 = vector.broadcast %81 : vector<2x8x1xf32> to vector<2x8x8xf32>
    %83 = arith.mulf %78, %82 : vector<2x8x8xf32>
    %84 = arith.truncf %83 : vector<2x8x8xf32> to vector<2x8x8xbf16>
    "tpu.trace_start"() <{level = 10 : i32, message = "bqk,bkd->bqd"}> : () -> ()
    %cst_25 = arith.constant dense<0.000000e+00> : vector<2x8x8xf32>
    %85 = tpu.matmul %84, %72, %cst_25 {dimension_numbers = #tpu.dot_dimension_numbers<[2], [1], [1], [2], [0, 0, 0, 1, 1, 2], [0], [0]>} : vector<2x8x8xbf16>, vector<2x8x8xbf16>, vector<2x8x8xf32> -> vector<2x8x8xf32>
    "tpu.trace_stop"() : () -> ()
    %86 = vector.shape_cast %85 : vector<2x8x8xf32> to vector<16x8xf32>
    %87 = arith.truncf %86 : vector<16x8xf32> to vector<16x8xbf16>
    %88 = vector.extract_strided_slice %17 {offsets = [16, 0], sizes = [8, 32], strides = [1, 1]} : vector<32x32xbf16> to vector<8x32xbf16>
    %cst_26 = arith.constant dense<0.000000e+00> : vector<16x32xf32>
    %89 = tpu.matmul %87, %88, %cst_26 {dimension_numbers = #tpu.dot_dimension_numbers<[1], [0], [0], [1], [0, 0, 1, 1], [], []>} : vector<16x8xbf16>, vector<8x32xbf16>, vector<16x32xf32> -> vector<16x32xf32>
    %90 = arith.addf %66, %89 : vector<16x32xf32>
    %91 = vector.extract_strided_slice %11 {offsets = [0, 0, 24], sizes = [2, 8, 8], strides = [1, 1, 1]} : vector<2x8x32xf32> to vector<2x8x8xf32>
    %92 = arith.truncf %91 : vector<2x8x8xf32> to vector<2x8x8xbf16>
    %93 = vector.extract_strided_slice %13 {offsets = [0, 0, 24], sizes = [2, 8, 8], strides = [1, 1, 1]} : vector<2x8x32xf32> to vector<2x8x8xf32>
    %94 = arith.truncf %93 : vector<2x8x8xf32> to vector<2x8x8xbf16>
    %95 = vector.extract_strided_slice %15 {offsets = [0, 0, 24], sizes = [2, 8, 8], strides = [1, 1, 1]} : vector<2x8x32xf32> to vector<2x8x8xf32>
    %96 = arith.truncf %95 : vector<2x8x8xf32> to vector<2x8x8xbf16>
    "tpu.trace_start"() <{level = 10 : i32, message = "bqd,bkd->bqk"}> : () -> ()
    %cst_27 = arith.constant dense<0.000000e+00> : vector<2x8x8xf32>
    %97 = tpu.matmul %92, %94, %cst_27 {dimension_numbers = #tpu.dot_dimension_numbers<[2], [2], [1], [1], [0, 0, 0, 1, 1, 1], [0], [0]>} : vector<2x8x8xbf16>, vector<2x8x8xbf16>, vector<2x8x8xf32> -> vector<2x8x8xf32>
    "tpu.trace_stop"() : () -> ()
    %cst_28 = arith.constant dense<0xFF800000> : vector<2x8xf32>
    %98 = vector.multi_reduction <maximumf>, %97, %cst_28 [2] : vector<2x8x8xf32> to vector<2x8xf32>
    %99 = vector.shape_cast %98 : vector<2x8xf32> to vector<2x8x1xf32>
    %100 = vector.broadcast %99 : vector<2x8x1xf32> to vector<2x8x8xf32>
    %101 = arith.subf %97, %100 : vector<2x8x8xf32>
    %102 = math.exp %101 : vector<2x8x8xf32>
    %cst_29 = arith.constant dense<0.000000e+00> : vector<2x8xf32>
    %103 = vector.multi_reduction <add>, %102, %cst_29 [2] : vector<2x8x8xf32> to vector<2x8xf32>
    %104 = vector.shape_cast %103 : vector<2x8xf32> to vector<2x8x1xf32>
    %105 = tpu.reciprocal %104 {approx = true} : vector<2x8x1xf32> -> vector<2x8x1xf32>
    %106 = vector.broadcast %105 : vector<2x8x1xf32> to vector<2x8x8xf32>
    %107 = arith.mulf %102, %106 : vector<2x8x8xf32>
    %108 = arith.truncf %107 : vector<2x8x8xf32> to vector<2x8x8xbf16>
    "tpu.trace_start"() <{level = 10 : i32, message = "bqk,bkd->bqd"}> : () -> ()
    %cst_30 = arith.constant dense<0.000000e+00> : vector<2x8x8xf32>
    %109 = tpu.matmul %108, %96, %cst_30 {dimension_numbers = #tpu.dot_dimension_numbers<[2], [1], [1], [2], [0, 0, 0, 1, 1, 2], [0], [0]>} : vector<2x8x8xbf16>, vector<2x8x8xbf16>, vector<2x8x8xf32> -> vector<2x8x8xf32>
    "tpu.trace_stop"() : () -> ()
    %110 = vector.shape_cast %109 : vector<2x8x8xf32> to vector<16x8xf32>
    %111 = arith.truncf %110 : vector<16x8xf32> to vector<16x8xbf16>
    %112 = vector.extract_strided_slice %17 {offsets = [24, 0], sizes = [8, 32], strides = [1, 1]} : vector<32x32xbf16> to vector<8x32xbf16>
    %cst_31 = arith.constant dense<0.000000e+00> : vector<16x32xf32>
    %113 = tpu.matmul %111, %112, %cst_31 {dimension_numbers = #tpu.dot_dimension_numbers<[1], [0], [0], [1], [0, 0, 1, 1], [], []>} : vector<16x8xbf16>, vector<8x32xbf16>, vector<16x32xf32> -> vector<16x32xf32>
    %114 = arith.addf %90, %113 : vector<16x32xf32>
    %c0_32 = arith.constant 0 : index
    %c0_33 = arith.constant 0 : index
    %c0_34 = arith.constant 0 : index
    %115 = vector.load %arg7[%c0_32, %c0_33, %c0_34] : memref<1x1x32xf32, #tpu.memory_space<vmem>>, vector<1x1x32xf32>
    %116 = vector.shape_cast %115 : vector<1x1x32xf32> to vector<1x32xf32>
    %117 = vector.broadcast %116 : vector<1x32xf32> to vector<16x32xf32>
    %118 = arith.addf %114, %117 : vector<16x32xf32>
    %119 = arith.addf %118, %1 : vector<16x32xf32>
    %c0_35 = arith.constant 0 : index
    %c0_36 = arith.constant 0 : index
    %c0_37 = arith.constant 0 : index
    %120 = vector.load %arg8[%c0_35, %c0_36, %c0_37] : memref<1x1x32xf32, #tpu.memory_space<vmem>>, vector<1x1x32xf32>
    %121 = vector.shape_cast %120 : vector<1x1x32xf32> to vector<1x32xf32>
    %c0_38 = arith.constant 0 : index
    %c0_39 = arith.constant 0 : index
    %c0_40 = arith.constant 0 : index
    %122 = vector.load %arg9[%c0_38, %c0_39, %c0_40] : memref<1x1x32xf32, #tpu.memory_space<vmem>>, vector<1x1x32xf32>
    %123 = vector.shape_cast %122 : vector<1x1x32xf32> to vector<1x32xf32>
    %cst_41 = arith.constant dense<0.000000e+00> : vector<16xf32>
    %124 = vector.multi_reduction <add>, %119, %cst_41 [1] : vector<16x32xf32> to vector<16xf32>
    %125 = vector.shape_cast %124 : vector<16xf32> to vector<16x1xf32>
    %cst_42 = arith.constant 3.200000e+01 : f32
    %126 = vector.broadcast %cst_42 : f32 to vector<16x1xf32>
    %127 = arith.divf %125, %126 : vector<16x1xf32>
    %128 = vector.broadcast %127 : vector<16x1xf32> to vector<16x32xf32>
    %129 = arith.subf %119, %128 : vector<16x32xf32>
    %130 = arith.mulf %129, %129 : vector<16x32xf32>
    %cst_43 = arith.constant dense<0.000000e+00> : vector<16xf32>
    %131 = vector.multi_reduction <add>, %130, %cst_43 [1] : vector<16x32xf32> to vector<16xf32>
    %132 = vector.shape_cast %131 : vector<16xf32> to vector<16x1xf32>
    %cst_44 = arith.constant 3.200000e+01 : f32
    %133 = vector.broadcast %cst_44 : f32 to vector<16x1xf32>
    %134 = arith.divf %132, %133 : vector<16x1xf32>
    %135 = vector.broadcast %127 : vector<16x1xf32> to vector<16x32xf32>
    %136 = arith.subf %119, %135 : vector<16x32xf32>
    %cst_45 = arith.constant 9.99999974E-6 : f32
    %137 = vector.broadcast %cst_45 : f32 to vector<16x1xf32>
    %138 = arith.addf %134, %137 : vector<16x1xf32>
    %139 = math.rsqrt %138 : vector<16x1xf32>
    %140 = vector.broadcast %139 : vector<16x1xf32> to vector<16x32xf32>
    %141 = arith.mulf %136, %140 : vector<16x32xf32>
    %142 = vector.broadcast %121 : vector<1x32xf32> to vector<16x32xf32>
    %143 = arith.mulf %141, %142 : vector<16x32xf32>
    %144 = vector.broadcast %123 : vector<1x32xf32> to vector<16x32xf32>
    %145 = arith.addf %143, %144 : vector<16x32xf32>
    %c0_46 = arith.constant 0 : index
    %c0_47 = arith.constant 0 : index
    %146 = vector.load %arg3[%c0_46, %c0_47] : memref<256x32xf32, #tpu.memory_space<vmem>>, vector<256x32xf32>
    %c0_48 = arith.constant 0 : index
    %c0_49 = arith.constant 0 : index
    %c0_50 = arith.constant 0 : index
    %147 = vector.load %arg10[%c0_48, %c0_49, %c0_50] : memref<1x32x32xbf16, #tpu.memory_space<vmem>>, vector<1x32x32xbf16>
    %148 = vector.shape_cast %147 : vector<1x32x32xbf16> to vector<32x32xbf16>
    %149 = arith.truncf %145 : vector<16x32xf32> to vector<16x32xbf16>
    %cst_51 = arith.constant dense<0.000000e+00> : vector<16x32xf32>
    %150 = tpu.matmul %149, %148, %cst_51 {dimension_numbers = #tpu.dot_dimension_numbers<[1], [0], [0], [1], [0, 0, 1, 1], [], []>} : vector<16x32xbf16>, vector<32x32xbf16>, vector<16x32xf32> -> vector<16x32xf32>
    %c0_52 = arith.constant 0 : index
    %c0_53 = arith.constant 0 : index
    %c0_54 = arith.constant 0 : index
    %151 = vector.load %arg11[%c0_52, %c0_53, %c0_54] : memref<1x1x32xf32, #tpu.memory_space<vmem>>, vector<1x1x32xf32>
    %152 = vector.shape_cast %151 : vector<1x1x32xf32> to vector<1x32xf32>
    %153 = vector.broadcast %152 : vector<1x32xf32> to vector<16x32xf32>
    %154 = arith.addf %150, %153 : vector<16x32xf32>
    %c0_55 = arith.constant 0 : index
    %c0_56 = arith.constant 0 : index
    %c0_57 = arith.constant 0 : index
    %155 = vector.load %arg12[%c0_55, %c0_56, %c0_57] : memref<1x32x64xbf16, #tpu.memory_space<vmem>>, vector<1x32x64xbf16>
    %156 = vector.shape_cast %155 : vector<1x32x64xbf16> to vector<32x64xbf16>
    %157 = arith.truncf %146 : vector<256x32xf32> to vector<256x32xbf16>
    %cst_58 = arith.constant dense<0.000000e+00> : vector<256x64xf32>
    %158 = tpu.matmul %157, %156, %cst_58 {dimension_numbers = #tpu.dot_dimension_numbers<[1], [0], [0], [1], [0, 0, 1, 1], [], []>} : vector<256x32xbf16>, vector<32x64xbf16>, vector<256x64xf32> -> vector<256x64xf32>
    %c0_59 = arith.constant 0 : index
    %c0_60 = arith.constant 0 : index
    %c0_61 = arith.constant 0 : index
    %159 = vector.load %arg13[%c0_59, %c0_60, %c0_61] : memref<1x1x64xf32, #tpu.memory_space<vmem>>, vector<1x1x64xf32>
    %160 = vector.shape_cast %159 : vector<1x1x64xf32> to vector<1x64xf32>
    %161 = vector.broadcast %160 : vector<1x64xf32> to vector<256x64xf32>
    %162 = arith.addf %158, %161 : vector<256x64xf32>
    %163 = vector.shape_cast %154 : vector<16x32xf32> to vector<2x8x32xf32>
    %164 = vector.extract_strided_slice %162 {offsets = [0, 0], sizes = [256, 32], strides = [1, 1]} : vector<256x64xf32> to vector<256x32xf32>
    %165 = vector.shape_cast %164 : vector<256x32xf32> to vector<2x128x32xf32>
    %166 = vector.extract_strided_slice %162 {offsets = [0, 32], sizes = [256, 32], strides = [1, 1]} : vector<256x64xf32> to vector<256x32xf32>
    %167 = vector.shape_cast %166 : vector<256x32xf32> to vector<2x128x32xf32>
    %c0_62 = arith.constant 0 : index
    %c0_63 = arith.constant 0 : index
    %c0_64 = arith.constant 0 : index
    %168 = vector.load %arg14[%c0_62, %c0_63, %c0_64] : memref<1x32x32xbf16, #tpu.memory_space<vmem>>, vector<1x32x32xbf16>
    %169 = vector.shape_cast %168 : vector<1x32x32xbf16> to vector<32x32xbf16>
    %170 = tpu.iota {dimensions = array<i32: 1>} : vector<1x128xi32>
    %c16_i32 = arith.constant 16 : i32
    %171 = vector.broadcast %c16_i32 : i32 to vector<1x128xi32>
    %172 = arith.cmpi slt, %170, %171 : vector<1x128xi32>
    %cst_65 = arith.constant 0.000000e+00 : f32
    %cst_66 = arith.constant -1.000000e+30 : f32
    %173 = vector.broadcast %cst_65 : f32 to vector<1x128xf32>
    %174 = vector.broadcast %cst_66 : f32 to vector<1x128xf32>
    %175 = arith.select %172, %173, %174 : vector<1x128xi1>, vector<1x128xf32>
    %cst_67 = arith.constant 0.000000e+00 : f32
    %176 = vector.broadcast %cst_67 : f32 to vector<16x32xf32>
    %cst_68 = arith.constant 0.000000e+00 : f32
    %177 = vector.broadcast %cst_68 : f32 to vector<2x8x128xf32>
    %178 = vector.extract_strided_slice %163 {offsets = [0, 0, 0], sizes = [2, 8, 8], strides = [1, 1, 1]} : vector<2x8x32xf32> to vector<2x8x8xf32>
    %179 = arith.truncf %178 : vector<2x8x8xf32> to vector<2x8x8xbf16>
    %180 = vector.extract_strided_slice %165 {offsets = [0, 0, 0], sizes = [2, 128, 8], strides = [1, 1, 1]} : vector<2x128x32xf32> to vector<2x128x8xf32>
    %181 = arith.truncf %180 : vector<2x128x8xf32> to vector<2x128x8xbf16>
    %182 = vector.extract_strided_slice %167 {offsets = [0, 0, 0], sizes = [2, 128, 8], strides = [1, 1, 1]} : vector<2x128x32xf32> to vector<2x128x8xf32>
    %183 = arith.truncf %182 : vector<2x128x8xf32> to vector<2x128x8xbf16>
    "tpu.trace_start"() <{level = 10 : i32, message = "bqd,bkd->bqk"}> : () -> ()
    %cst_69 = arith.constant dense<0.000000e+00> : vector<2x8x128xf32>
    %184 = tpu.matmul %179, %181, %cst_69 {dimension_numbers = #tpu.dot_dimension_numbers<[2], [2], [1], [1], [0, 0, 0, 1, 1, 1], [0], [0]>} : vector<2x8x8xbf16>, vector<2x128x8xbf16>, vector<2x8x128xf32> -> vector<2x8x128xf32>
    "tpu.trace_stop"() : () -> ()
    %185 = vector.shape_cast %175 : vector<1x128xf32> to vector<1x1x128xf32>
    %186 = vector.broadcast %185 : vector<1x1x128xf32> to vector<2x8x128xf32>
    %187 = arith.addf %184, %186 : vector<2x8x128xf32>
    %cst_70 = arith.constant dense<0xFF800000> : vector<2x8xf32>
    %188 = vector.multi_reduction <maximumf>, %187, %cst_70 [2] : vector<2x8x128xf32> to vector<2x8xf32>
    %189 = vector.shape_cast %188 : vector<2x8xf32> to vector<2x8x1xf32>
    %190 = vector.broadcast %189 : vector<2x8x1xf32> to vector<2x8x128xf32>
    %191 = arith.subf %187, %190 : vector<2x8x128xf32>
    %192 = math.exp %191 : vector<2x8x128xf32>
    %cst_71 = arith.constant dense<0.000000e+00> : vector<2x8xf32>
    %193 = vector.multi_reduction <add>, %192, %cst_71 [2] : vector<2x8x128xf32> to vector<2x8xf32>
    %194 = vector.shape_cast %193 : vector<2x8xf32> to vector<2x8x1xf32>
    %195 = vector.broadcast %194 : vector<2x8x1xf32> to vector<2x8x128xf32>
    %196 = arith.divf %192, %195 : vector<2x8x128xf32>
    %197 = arith.addf %177, %196 : vector<2x8x128xf32>
    %198 = arith.truncf %196 : vector<2x8x128xf32> to vector<2x8x128xbf16>
    "tpu.trace_start"() <{level = 10 : i32, message = "bqk,bkd->bqd"}> : () -> ()
    %cst_72 = arith.constant dense<0.000000e+00> : vector<2x8x8xf32>
    %199 = tpu.matmul %198, %183, %cst_72 {dimension_numbers = #tpu.dot_dimension_numbers<[2], [1], [1], [2], [0, 0, 0, 1, 1, 2], [0], [0]>} : vector<2x8x128xbf16>, vector<2x128x8xbf16>, vector<2x8x8xf32> -> vector<2x8x8xf32>
    "tpu.trace_stop"() : () -> ()
    %200 = vector.shape_cast %199 : vector<2x8x8xf32> to vector<16x8xf32>
    %201 = arith.truncf %200 : vector<16x8xf32> to vector<16x8xbf16>
    %202 = vector.extract_strided_slice %169 {offsets = [0, 0], sizes = [8, 32], strides = [1, 1]} : vector<32x32xbf16> to vector<8x32xbf16>
    %cst_73 = arith.constant dense<0.000000e+00> : vector<16x32xf32>
    %203 = tpu.matmul %201, %202, %cst_73 {dimension_numbers = #tpu.dot_dimension_numbers<[1], [0], [0], [1], [0, 0, 1, 1], [], []>} : vector<16x8xbf16>, vector<8x32xbf16>, vector<16x32xf32> -> vector<16x32xf32>
    %204 = arith.addf %176, %203 : vector<16x32xf32>
    %205 = vector.extract_strided_slice %163 {offsets = [0, 0, 8], sizes = [2, 8, 8], strides = [1, 1, 1]} : vector<2x8x32xf32> to vector<2x8x8xf32>
    %206 = arith.truncf %205 : vector<2x8x8xf32> to vector<2x8x8xbf16>
    %207 = vector.extract_strided_slice %165 {offsets = [0, 0, 8], sizes = [2, 128, 8], strides = [1, 1, 1]} : vector<2x128x32xf32> to vector<2x128x8xf32>
    %208 = arith.truncf %207 : vector<2x128x8xf32> to vector<2x128x8xbf16>
    %209 = vector.extract_strided_slice %167 {offsets = [0, 0, 8], sizes = [2, 128, 8], strides = [1, 1, 1]} : vector<2x128x32xf32> to vector<2x128x8xf32>
    %210 = arith.truncf %209 : vector<2x128x8xf32> to vector<2x128x8xbf16>
    "tpu.trace_start"() <{level = 10 : i32, message = "bqd,bkd->bqk"}> : () -> ()
    %cst_74 = arith.constant dense<0.000000e+00> : vector<2x8x128xf32>
    %211 = tpu.matmul %206, %208, %cst_74 {dimension_numbers = #tpu.dot_dimension_numbers<[2], [2], [1], [1], [0, 0, 0, 1, 1, 1], [0], [0]>} : vector<2x8x8xbf16>, vector<2x128x8xbf16>, vector<2x8x128xf32> -> vector<2x8x128xf32>
    "tpu.trace_stop"() : () -> ()
    %212 = vector.shape_cast %175 : vector<1x128xf32> to vector<1x1x128xf32>
    %213 = vector.broadcast %212 : vector<1x1x128xf32> to vector<2x8x128xf32>
    %214 = arith.addf %211, %213 : vector<2x8x128xf32>
    %cst_75 = arith.constant dense<0xFF800000> : vector<2x8xf32>
    %215 = vector.multi_reduction <maximumf>, %214, %cst_75 [2] : vector<2x8x128xf32> to vector<2x8xf32>
    %216 = vector.shape_cast %215 : vector<2x8xf32> to vector<2x8x1xf32>
    %217 = vector.broadcast %216 : vector<2x8x1xf32> to vector<2x8x128xf32>
    %218 = arith.subf %214, %217 : vector<2x8x128xf32>
    %219 = math.exp %218 : vector<2x8x128xf32>
    %cst_76 = arith.constant dense<0.000000e+00> : vector<2x8xf32>
    %220 = vector.multi_reduction <add>, %219, %cst_76 [2] : vector<2x8x128xf32> to vector<2x8xf32>
    %221 = vector.shape_cast %220 : vector<2x8xf32> to vector<2x8x1xf32>
    %222 = vector.broadcast %221 : vector<2x8x1xf32> to vector<2x8x128xf32>
    %223 = arith.divf %219, %222 : vector<2x8x128xf32>
    %224 = arith.addf %197, %223 : vector<2x8x128xf32>
    %225 = arith.truncf %223 : vector<2x8x128xf32> to vector<2x8x128xbf16>
    "tpu.trace_start"() <{level = 10 : i32, message = "bqk,bkd->bqd"}> : () -> ()
    %cst_77 = arith.constant dense<0.000000e+00> : vector<2x8x8xf32>
    %226 = tpu.matmul %225, %210, %cst_77 {dimension_numbers = #tpu.dot_dimension_numbers<[2], [1], [1], [2], [0, 0, 0, 1, 1, 2], [0], [0]>} : vector<2x8x128xbf16>, vector<2x128x8xbf16>, vector<2x8x8xf32> -> vector<2x8x8xf32>
    "tpu.trace_stop"() : () -> ()
    %227 = vector.shape_cast %226 : vector<2x8x8xf32> to vector<16x8xf32>
    %228 = arith.truncf %227 : vector<16x8xf32> to vector<16x8xbf16>
    %229 = vector.extract_strided_slice %169 {offsets = [8, 0], sizes = [8, 32], strides = [1, 1]} : vector<32x32xbf16> to vector<8x32xbf16>
    %cst_78 = arith.constant dense<0.000000e+00> : vector<16x32xf32>
    %230 = tpu.matmul %228, %229, %cst_78 {dimension_numbers = #tpu.dot_dimension_numbers<[1], [0], [0], [1], [0, 0, 1, 1], [], []>} : vector<16x8xbf16>, vector<8x32xbf16>, vector<16x32xf32> -> vector<16x32xf32>
    %231 = arith.addf %204, %230 : vector<16x32xf32>
    %232 = vector.extract_strided_slice %163 {offsets = [0, 0, 16], sizes = [2, 8, 8], strides = [1, 1, 1]} : vector<2x8x32xf32> to vector<2x8x8xf32>
    %233 = arith.truncf %232 : vector<2x8x8xf32> to vector<2x8x8xbf16>
    %234 = vector.extract_strided_slice %165 {offsets = [0, 0, 16], sizes = [2, 128, 8], strides = [1, 1, 1]} : vector<2x128x32xf32> to vector<2x128x8xf32>
    %235 = arith.truncf %234 : vector<2x128x8xf32> to vector<2x128x8xbf16>
    %236 = vector.extract_strided_slice %167 {offsets = [0, 0, 16], sizes = [2, 128, 8], strides = [1, 1, 1]} : vector<2x128x32xf32> to vector<2x128x8xf32>
    %237 = arith.truncf %236 : vector<2x128x8xf32> to vector<2x128x8xbf16>
    "tpu.trace_start"() <{level = 10 : i32, message = "bqd,bkd->bqk"}> : () -> ()
    %cst_79 = arith.constant dense<0.000000e+00> : vector<2x8x128xf32>
    %238 = tpu.matmul %233, %235, %cst_79 {dimension_numbers = #tpu.dot_dimension_numbers<[2], [2], [1], [1], [0, 0, 0, 1, 1, 1], [0], [0]>} : vector<2x8x8xbf16>, vector<2x128x8xbf16>, vector<2x8x128xf32> -> vector<2x8x128xf32>
    "tpu.trace_stop"() : () -> ()
    %239 = vector.shape_cast %175 : vector<1x128xf32> to vector<1x1x128xf32>
    %240 = vector.broadcast %239 : vector<1x1x128xf32> to vector<2x8x128xf32>
    %241 = arith.addf %238, %240 : vector<2x8x128xf32>
    %cst_80 = arith.constant dense<0xFF800000> : vector<2x8xf32>
    %242 = vector.multi_reduction <maximumf>, %241, %cst_80 [2] : vector<2x8x128xf32> to vector<2x8xf32>
    %243 = vector.shape_cast %242 : vector<2x8xf32> to vector<2x8x1xf32>
    %244 = vector.broadcast %243 : vector<2x8x1xf32> to vector<2x8x128xf32>
    %245 = arith.subf %241, %244 : vector<2x8x128xf32>
    %246 = math.exp %245 : vector<2x8x128xf32>
    %cst_81 = arith.constant dense<0.000000e+00> : vector<2x8xf32>
    %247 = vector.multi_reduction <add>, %246, %cst_81 [2] : vector<2x8x128xf32> to vector<2x8xf32>
    %248 = vector.shape_cast %247 : vector<2x8xf32> to vector<2x8x1xf32>
    %249 = vector.broadcast %248 : vector<2x8x1xf32> to vector<2x8x128xf32>
    %250 = arith.divf %246, %249 : vector<2x8x128xf32>
    %251 = arith.addf %224, %250 : vector<2x8x128xf32>
    %252 = arith.truncf %250 : vector<2x8x128xf32> to vector<2x8x128xbf16>
    "tpu.trace_start"() <{level = 10 : i32, message = "bqk,bkd->bqd"}> : () -> ()
    %cst_82 = arith.constant dense<0.000000e+00> : vector<2x8x8xf32>
    %253 = tpu.matmul %252, %237, %cst_82 {dimension_numbers = #tpu.dot_dimension_numbers<[2], [1], [1], [2], [0, 0, 0, 1, 1, 2], [0], [0]>} : vector<2x8x128xbf16>, vector<2x128x8xbf16>, vector<2x8x8xf32> -> vector<2x8x8xf32>
    "tpu.trace_stop"() : () -> ()
    %254 = vector.shape_cast %253 : vector<2x8x8xf32> to vector<16x8xf32>
    %255 = arith.truncf %254 : vector<16x8xf32> to vector<16x8xbf16>
    %256 = vector.extract_strided_slice %169 {offsets = [16, 0], sizes = [8, 32], strides = [1, 1]} : vector<32x32xbf16> to vector<8x32xbf16>
    %cst_83 = arith.constant dense<0.000000e+00> : vector<16x32xf32>
    %257 = tpu.matmul %255, %256, %cst_83 {dimension_numbers = #tpu.dot_dimension_numbers<[1], [0], [0], [1], [0, 0, 1, 1], [], []>} : vector<16x8xbf16>, vector<8x32xbf16>, vector<16x32xf32> -> vector<16x32xf32>
    %258 = arith.addf %231, %257 : vector<16x32xf32>
    %259 = vector.extract_strided_slice %163 {offsets = [0, 0, 24], sizes = [2, 8, 8], strides = [1, 1, 1]} : vector<2x8x32xf32> to vector<2x8x8xf32>
    %260 = arith.truncf %259 : vector<2x8x8xf32> to vector<2x8x8xbf16>
    %261 = vector.extract_strided_slice %165 {offsets = [0, 0, 24], sizes = [2, 128, 8], strides = [1, 1, 1]} : vector<2x128x32xf32> to vector<2x128x8xf32>
    %262 = arith.truncf %261 : vector<2x128x8xf32> to vector<2x128x8xbf16>
    %263 = vector.extract_strided_slice %167 {offsets = [0, 0, 24], sizes = [2, 128, 8], strides = [1, 1, 1]} : vector<2x128x32xf32> to vector<2x128x8xf32>
    %264 = arith.truncf %263 : vector<2x128x8xf32> to vector<2x128x8xbf16>
    "tpu.trace_start"() <{level = 10 : i32, message = "bqd,bkd->bqk"}> : () -> ()
    %cst_84 = arith.constant dense<0.000000e+00> : vector<2x8x128xf32>
    %265 = tpu.matmul %260, %262, %cst_84 {dimension_numbers = #tpu.dot_dimension_numbers<[2], [2], [1], [1], [0, 0, 0, 1, 1, 1], [0], [0]>} : vector<2x8x8xbf16>, vector<2x128x8xbf16>, vector<2x8x128xf32> -> vector<2x8x128xf32>
    "tpu.trace_stop"() : () -> ()
    %266 = vector.shape_cast %175 : vector<1x128xf32> to vector<1x1x128xf32>
    %267 = vector.broadcast %266 : vector<1x1x128xf32> to vector<2x8x128xf32>
    %268 = arith.addf %265, %267 : vector<2x8x128xf32>
    %cst_85 = arith.constant dense<0xFF800000> : vector<2x8xf32>
    %269 = vector.multi_reduction <maximumf>, %268, %cst_85 [2] : vector<2x8x128xf32> to vector<2x8xf32>
    %270 = vector.shape_cast %269 : vector<2x8xf32> to vector<2x8x1xf32>
    %271 = vector.broadcast %270 : vector<2x8x1xf32> to vector<2x8x128xf32>
    %272 = arith.subf %268, %271 : vector<2x8x128xf32>
    %273 = math.exp %272 : vector<2x8x128xf32>
    %cst_86 = arith.constant dense<0.000000e+00> : vector<2x8xf32>
    %274 = vector.multi_reduction <add>, %273, %cst_86 [2] : vector<2x8x128xf32> to vector<2x8xf32>
    %275 = vector.shape_cast %274 : vector<2x8xf32> to vector<2x8x1xf32>
    %276 = vector.broadcast %275 : vector<2x8x1xf32> to vector<2x8x128xf32>
    %277 = arith.divf %273, %276 : vector<2x8x128xf32>
    %278 = arith.addf %251, %277 : vector<2x8x128xf32>
    %279 = arith.truncf %277 : vector<2x8x128xf32> to vector<2x8x128xbf16>
    "tpu.trace_start"() <{level = 10 : i32, message = "bqk,bkd->bqd"}> : () -> ()
    %cst_87 = arith.constant dense<0.000000e+00> : vector<2x8x8xf32>
    %280 = tpu.matmul %279, %264, %cst_87 {dimension_numbers = #tpu.dot_dimension_numbers<[2], [1], [1], [2], [0, 0, 0, 1, 1, 2], [0], [0]>} : vector<2x8x128xbf16>, vector<2x128x8xbf16>, vector<2x8x8xf32> -> vector<2x8x8xf32>
    "tpu.trace_stop"() : () -> ()
    %281 = vector.shape_cast %280 : vector<2x8x8xf32> to vector<16x8xf32>
    %282 = arith.truncf %281 : vector<16x8xf32> to vector<16x8xbf16>
    %283 = vector.extract_strided_slice %169 {offsets = [24, 0], sizes = [8, 32], strides = [1, 1]} : vector<32x32xbf16> to vector<8x32xbf16>
    %cst_88 = arith.constant dense<0.000000e+00> : vector<16x32xf32>
    %284 = tpu.matmul %282, %283, %cst_88 {dimension_numbers = #tpu.dot_dimension_numbers<[1], [0], [0], [1], [0, 0, 1, 1], [], []>} : vector<16x8xbf16>, vector<8x32xbf16>, vector<16x32xf32> -> vector<16x32xf32>
    %285 = arith.addf %258, %284 : vector<16x32xf32>
    %cst_89 = arith.constant 2.500000e-01 : f32
    %286 = vector.broadcast %cst_89 : f32 to vector<2x8x128xf32>
    %287 = arith.mulf %278, %286 : vector<2x8x128xf32>
    %c0_90 = arith.constant 0 : index
    %c0_91 = arith.constant 0 : index
    %c0_92 = arith.constant 0 : index
    %288 = vector.load %arg15[%c0_90, %c0_91, %c0_92] : memref<1x1x32xf32, #tpu.memory_space<vmem>>, vector<1x1x32xf32>
    %289 = vector.shape_cast %288 : vector<1x1x32xf32> to vector<1x32xf32>
    %290 = vector.broadcast %289 : vector<1x32xf32> to vector<16x32xf32>
    %291 = arith.addf %285, %290 : vector<16x32xf32>
    %292 = arith.addf %291, %145 : vector<16x32xf32>
    %c0_93 = arith.constant 0 : index
    %c0_94 = arith.constant 0 : index
    %c0_95 = arith.constant 0 : index
    %293 = vector.load %arg16[%c0_93, %c0_94, %c0_95] : memref<1x1x32xf32, #tpu.memory_space<vmem>>, vector<1x1x32xf32>
    %294 = vector.shape_cast %293 : vector<1x1x32xf32> to vector<1x32xf32>
    %c0_96 = arith.constant 0 : index
    %c0_97 = arith.constant 0 : index
    %c0_98 = arith.constant 0 : index
    %295 = vector.load %arg17[%c0_96, %c0_97, %c0_98] : memref<1x1x32xf32, #tpu.memory_space<vmem>>, vector<1x1x32xf32>
    %296 = vector.shape_cast %295 : vector<1x1x32xf32> to vector<1x32xf32>
    %cst_99 = arith.constant dense<0.000000e+00> : vector<16xf32>
    %297 = vector.multi_reduction <add>, %292, %cst_99 [1] : vector<16x32xf32> to vector<16xf32>
    %298 = vector.shape_cast %297 : vector<16xf32> to vector<16x1xf32>
    %cst_100 = arith.constant 3.200000e+01 : f32
    %299 = vector.broadcast %cst_100 : f32 to vector<16x1xf32>
    %300 = arith.divf %298, %299 : vector<16x1xf32>
    %301 = vector.broadcast %300 : vector<16x1xf32> to vector<16x32xf32>
    %302 = arith.subf %292, %301 : vector<16x32xf32>
    %303 = arith.mulf %302, %302 : vector<16x32xf32>
    %cst_101 = arith.constant dense<0.000000e+00> : vector<16xf32>
    %304 = vector.multi_reduction <add>, %303, %cst_101 [1] : vector<16x32xf32> to vector<16xf32>
    %305 = vector.shape_cast %304 : vector<16xf32> to vector<16x1xf32>
    %cst_102 = arith.constant 3.200000e+01 : f32
    %306 = vector.broadcast %cst_102 : f32 to vector<16x1xf32>
    %307 = arith.divf %305, %306 : vector<16x1xf32>
    %308 = vector.broadcast %300 : vector<16x1xf32> to vector<16x32xf32>
    %309 = arith.subf %292, %308 : vector<16x32xf32>
    %cst_103 = arith.constant 9.99999974E-6 : f32
    %310 = vector.broadcast %cst_103 : f32 to vector<16x1xf32>
    %311 = arith.addf %307, %310 : vector<16x1xf32>
    %312 = math.rsqrt %311 : vector<16x1xf32>
    %313 = vector.broadcast %312 : vector<16x1xf32> to vector<16x32xf32>
    %314 = arith.mulf %309, %313 : vector<16x32xf32>
    %315 = vector.broadcast %294 : vector<1x32xf32> to vector<16x32xf32>
    %316 = arith.mulf %314, %315 : vector<16x32xf32>
    %317 = vector.broadcast %296 : vector<1x32xf32> to vector<16x32xf32>
    %318 = arith.addf %316, %317 : vector<16x32xf32>
    %c0_104 = arith.constant 0 : index
    %c0_105 = arith.constant 0 : index
    %c0_106 = arith.constant 0 : index
    %319 = vector.load %arg18[%c0_104, %c0_105, %c0_106] : memref<1x32x64xbf16, #tpu.memory_space<vmem>>, vector<1x32x64xbf16>
    %320 = vector.shape_cast %319 : vector<1x32x64xbf16> to vector<32x64xbf16>
    %321 = arith.truncf %318 : vector<16x32xf32> to vector<16x32xbf16>
    %cst_107 = arith.constant dense<0.000000e+00> : vector<16x64xf32>
    %322 = tpu.matmul %321, %320, %cst_107 {dimension_numbers = #tpu.dot_dimension_numbers<[1], [0], [0], [1], [0, 0, 1, 1], [], []>} : vector<16x32xbf16>, vector<32x64xbf16>, vector<16x64xf32> -> vector<16x64xf32>
    %c0_108 = arith.constant 0 : index
    %c0_109 = arith.constant 0 : index
    %c0_110 = arith.constant 0 : index
    %323 = vector.load %arg19[%c0_108, %c0_109, %c0_110] : memref<1x1x64xf32, #tpu.memory_space<vmem>>, vector<1x1x64xf32>
    %324 = vector.shape_cast %323 : vector<1x1x64xf32> to vector<1x64xf32>
    %325 = vector.broadcast %324 : vector<1x64xf32> to vector<16x64xf32>
    %326 = arith.addf %322, %325 : vector<16x64xf32>
    %cst_111 = arith.constant 0.000000e+00 : f32
    %327 = vector.broadcast %cst_111 : f32 to vector<16x64xf32>
    %328 = arith.maximumf %326, %327 : vector<16x64xf32>
    %c0_112 = arith.constant 0 : index
    %c0_113 = arith.constant 0 : index
    %c0_114 = arith.constant 0 : index
    %329 = vector.load %arg20[%c0_112, %c0_113, %c0_114] : memref<1x64x32xbf16, #tpu.memory_space<vmem>>, vector<1x64x32xbf16>
    %330 = vector.shape_cast %329 : vector<1x64x32xbf16> to vector<64x32xbf16>
    %331 = arith.truncf %328 : vector<16x64xf32> to vector<16x64xbf16>
    %cst_115 = arith.constant dense<0.000000e+00> : vector<16x32xf32>
    %332 = tpu.matmul %331, %330, %cst_115 {dimension_numbers = #tpu.dot_dimension_numbers<[1], [0], [0], [1], [0, 0, 1, 1], [], []>} : vector<16x64xbf16>, vector<64x32xbf16>, vector<16x32xf32> -> vector<16x32xf32>
    %c0_116 = arith.constant 0 : index
    %c0_117 = arith.constant 0 : index
    %c0_118 = arith.constant 0 : index
    %333 = vector.load %arg21[%c0_116, %c0_117, %c0_118] : memref<1x1x32xf32, #tpu.memory_space<vmem>>, vector<1x1x32xf32>
    %334 = vector.shape_cast %333 : vector<1x1x32xf32> to vector<1x32xf32>
    %335 = vector.broadcast %334 : vector<1x32xf32> to vector<16x32xf32>
    %336 = arith.addf %332, %335 : vector<16x32xf32>
    %337 = arith.addf %336, %318 : vector<16x32xf32>
    %c0_119 = arith.constant 0 : index
    %c0_120 = arith.constant 0 : index
    %c0_121 = arith.constant 0 : index
    %338 = vector.load %arg22[%c0_119, %c0_120, %c0_121] : memref<1x1x32xf32, #tpu.memory_space<vmem>>, vector<1x1x32xf32>
    %339 = vector.shape_cast %338 : vector<1x1x32xf32> to vector<1x32xf32>
    %c0_122 = arith.constant 0 : index
    %c0_123 = arith.constant 0 : index
    %c0_124 = arith.constant 0 : index
    %340 = vector.load %arg23[%c0_122, %c0_123, %c0_124] : memref<1x1x32xf32, #tpu.memory_space<vmem>>, vector<1x1x32xf32>
    %341 = vector.shape_cast %340 : vector<1x1x32xf32> to vector<1x32xf32>
    %cst_125 = arith.constant dense<0.000000e+00> : vector<16xf32>
    %342 = vector.multi_reduction <add>, %337, %cst_125 [1] : vector<16x32xf32> to vector<16xf32>
    %343 = vector.shape_cast %342 : vector<16xf32> to vector<16x1xf32>
    %cst_126 = arith.constant 3.200000e+01 : f32
    %344 = vector.broadcast %cst_126 : f32 to vector<16x1xf32>
    %345 = arith.divf %343, %344 : vector<16x1xf32>
    %346 = vector.broadcast %345 : vector<16x1xf32> to vector<16x32xf32>
    %347 = arith.subf %337, %346 : vector<16x32xf32>
    %348 = arith.mulf %347, %347 : vector<16x32xf32>
    %cst_127 = arith.constant dense<0.000000e+00> : vector<16xf32>
    %349 = vector.multi_reduction <add>, %348, %cst_127 [1] : vector<16x32xf32> to vector<16xf32>
    %350 = vector.shape_cast %349 : vector<16xf32> to vector<16x1xf32>
    %cst_128 = arith.constant 3.200000e+01 : f32
    %351 = vector.broadcast %cst_128 : f32 to vector<16x1xf32>
    %352 = arith.divf %350, %351 : vector<16x1xf32>
    %353 = vector.broadcast %345 : vector<16x1xf32> to vector<16x32xf32>
    %354 = arith.subf %337, %353 : vector<16x32xf32>
    %cst_129 = arith.constant 9.99999974E-6 : f32
    %355 = vector.broadcast %cst_129 : f32 to vector<16x1xf32>
    %356 = arith.addf %352, %355 : vector<16x1xf32>
    %357 = math.rsqrt %356 : vector<16x1xf32>
    %358 = vector.broadcast %357 : vector<16x1xf32> to vector<16x32xf32>
    %359 = arith.mulf %354, %358 : vector<16x32xf32>
    %360 = vector.broadcast %339 : vector<1x32xf32> to vector<16x32xf32>
    %361 = arith.mulf %359, %360 : vector<16x32xf32>
    %362 = vector.broadcast %341 : vector<1x32xf32> to vector<16x32xf32>
    %363 = arith.addf %361, %362 : vector<16x32xf32>
    %c0_130 = arith.constant 0 : index
    %c0_131 = arith.constant 0 : index
    %c0_132 = arith.constant 0 : index
    %364 = vector.load %arg24[%c0_130, %c0_131, %c0_132] : memref<1x16x32xf32, #tpu.memory_space<vmem>>, vector<1x16x32xf32>
    %365 = vector.shape_cast %364 : vector<1x16x32xf32> to vector<16x32xf32>
    %366 = vector.shape_cast %363 : vector<16x32xf32> to vector<1x16x32xf32>
    tpu.vector_store %arg24[%c0_130, %c0_131, %c0_132], %366 {strides = array<i32>} : memref<1x16x32xf32, #tpu.memory_space<vmem>>, vector<1x16x32xf32>,
    %367 = vector.shape_cast %287 : vector<2x8x128xf32> to vector<16x128xf32>
    %c0_133 = arith.constant 0 : index
    %c0_134 = arith.constant 0 : index
    %c0_135 = arith.constant 0 : index
    %368 = vector.load %arg25[%c0_133, %c0_134, %c0_135] : memref<1x16x128xf32, #tpu.memory_space<vmem>>, vector<1x16x128xf32>
    %369 = vector.shape_cast %368 : vector<1x16x128xf32> to vector<16x128xf32>
    %370 = vector.shape_cast %367 : vector<16x128xf32> to vector<1x16x128xf32>
    tpu.vector_store %arg25[%c0_133, %c0_134, %c0_135], %370 {strides = array<i32>} : memref<1x16x128xf32, #tpu.memory_space<vmem>>, vector<1x16x128xf32>,
    return
  }
  func.func @transform_0(%arg0: i32, %arg1: i32) -> (i32, i32, i32) {
    %c0_i32 = arith.constant 0 : i32
    %c0_i32_0 = arith.constant 0 : i32
    return %arg0, %arg1, %c0_i32 : i32, i32, i32
  }
  func.func @transform_1(%arg0: i32, %arg1: i32) -> (i32, i32) {
    %c0_i32 = arith.constant 0 : i32
    %c0_i32_0 = arith.constant 0 : i32
    return %arg1, %c0_i32 : i32, i32
  }
  func.func @transform_2(%arg0: i32, %arg1: i32) -> (i32, i32, i32) {
    %c0_i32 = arith.constant 0 : i32
    %c0_i32_0 = arith.constant 0 : i32
    %c0_i32_1 = arith.constant 0 : i32
    return %arg0, %c0_i32, %c0_i32_0 : i32, i32, i32
  }
  func.func @transform_3(%arg0: i32, %arg1: i32) -> (i32, i32, i32) {
    %c0_i32 = arith.constant 0 : i32
    %c0_i32_0 = arith.constant 0 : i32
    %c0_i32_1 = arith.constant 0 : i32
    return %arg0, %c0_i32, %c0_i32_0 : i32, i32, i32
  }
  func.func @transform_4(%arg0: i32, %arg1: i32) -> (i32, i32, i32) {
    %c0_i32 = arith.constant 0 : i32
    %c0_i32_0 = arith.constant 0 : i32
    %c0_i32_1 = arith.constant 0 : i32
    return %arg0, %c0_i32, %c0_i32_0 : i32, i32, i32
  }
  func.func @transform_5(%arg0: i32, %arg1: i32) -> (i32, i32, i32) {
    %c0_i32 = arith.constant 0 : i32
    %c0_i32_0 = arith.constant 0 : i32
    %c0_i32_1 = arith.constant 0 : i32
    return %arg0, %c0_i32, %c0_i32_0 : i32, i32, i32
  }
  func.func @transform_6(%arg0: i32, %arg1: i32) -> (i32, i32, i32) {
    %c0_i32 = arith.constant 0 : i32
    %c0_i32_0 = arith.constant 0 : i32
    %c0_i32_1 = arith.constant 0 : i32
    return %arg0, %c0_i32, %c0_i32_0 : i32, i32, i32
  }
  func.func @transform_7(%arg0: i32, %arg1: i32) -> (i32, i32, i32) {
    %c0_i32 = arith.constant 0 : i32
    %c0_i32_0 = arith.constant 0 : i32
    %c0_i32_1 = arith.constant 0 : i32
    return %arg0, %c0_i32, %c0_i32_0 : i32, i32, i32
  }
  func.func @transform_8(%arg0: i32, %arg1: i32) -> (i32, i32, i32) {
    %c0_i32 = arith.constant 0 : i32
    %c0_i32_0 = arith.constant 0 : i32
    %c0_i32_1 = arith.constant 0 : i32
    return %arg0, %c0_i32, %c0_i32_0 : i32, i32, i32
  }
  func.func @transform_9(%arg0: i32, %arg1: i32) -> (i32, i32, i32) {
    %c0_i32 = arith.constant 0 : i32
    %c0_i32_0 = arith.constant 0 : i32
    %c0_i32_1 = arith.constant 0 : i32
    return %arg0, %c0_i32, %c0_i32_0 : i32, i32, i32
  }
  func.func @transform_10(%arg0: i32, %arg1: i32) -> (i32, i32, i32) {
    %c0_i32 = arith.constant 0 : i32
    %c0_i32_0 = arith.constant 0 : i32
    %c0_i32_1 = arith.constant 0 : i32
    return %arg0, %c0_i32, %c0_i32_0 : i32, i32, i32
  }
  func.func @transform_11(%arg0: i32, %arg1: i32) -> (i32, i32, i32) {
    %c0_i32 = arith.constant 0 : i32
    %c0_i32_0 = arith.constant 0 : i32
    %c0_i32_1 = arith.constant 0 : i32
    return %arg0, %c0_i32, %c0_i32_0 : i32, i32, i32
  }
  func.func @transform_12(%arg0: i32, %arg1: i32) -> (i32, i32, i32) {
    %c0_i32 = arith.constant 0 : i32
    %c0_i32_0 = arith.constant 0 : i32
    %c0_i32_1 = arith.constant 0 : i32
    return %arg0, %c0_i32, %c0_i32_0 : i32, i32, i32
  }
  func.func @transform_13(%arg0: i32, %arg1: i32) -> (i32, i32, i32) {
    %c0_i32 = arith.constant 0 : i32
    %c0_i32_0 = arith.constant 0 : i32
    %c0_i32_1 = arith.constant 0 : i32
    return %arg0, %c0_i32, %c0_i32_0 : i32, i32, i32
  }
  func.func @transform_14(%arg0: i32, %arg1: i32) -> (i32, i32, i32) {
    %c0_i32 = arith.constant 0 : i32
    %c0_i32_0 = arith.constant 0 : i32
    %c0_i32_1 = arith.constant 0 : i32
    return %arg0, %c0_i32, %c0_i32_0 : i32, i32, i32
  }
  func.func @transform_15(%arg0: i32, %arg1: i32) -> (i32, i32, i32) {
    %c0_i32 = arith.constant 0 : i32
    %c0_i32_0 = arith.constant 0 : i32
    %c0_i32_1 = arith.constant 0 : i32
    return %arg0, %c0_i32, %c0_i32_0 : i32, i32, i32
  }
  func.func @transform_16(%arg0: i32, %arg1: i32) -> (i32, i32, i32) {
    %c0_i32 = arith.constant 0 : i32
    %c0_i32_0 = arith.constant 0 : i32
    %c0_i32_1 = arith.constant 0 : i32
    return %arg0, %c0_i32, %c0_i32_0 : i32, i32, i32
  }
  func.func @transform_17(%arg0: i32, %arg1: i32) -> (i32, i32, i32) {
    %c0_i32 = arith.constant 0 : i32
    %c0_i32_0 = arith.constant 0 : i32
    %c0_i32_1 = arith.constant 0 : i32
    return %arg0, %c0_i32, %c0_i32_0 : i32, i32, i32
  }
  func.func @transform_18(%arg0: i32, %arg1: i32) -> (i32, i32, i32) {
    %c0_i32 = arith.constant 0 : i32
    %c0_i32_0 = arith.constant 0 : i32
    %c0_i32_1 = arith.constant 0 : i32
    return %arg0, %c0_i32, %c0_i32_0 : i32, i32, i32
  }
  func.func @transform_19(%arg0: i32, %arg1: i32) -> (i32, i32, i32) {
    %c0_i32 = arith.constant 0 : i32
    %c0_i32_0 = arith.constant 0 : i32
    %c0_i32_1 = arith.constant 0 : i32
    return %arg0, %c0_i32, %c0_i32_0 : i32, i32, i32
  }
  func.func @transform_20(%arg0: i32, %arg1: i32) -> (i32, i32, i32) {
    %c0_i32 = arith.constant 0 : i32
    %c0_i32_0 = arith.constant 0 : i32
    %c0_i32_1 = arith.constant 0 : i32
    return %arg0, %c0_i32, %c0_i32_0 : i32, i32, i32
  }
  func.func @transform_21(%arg0: i32, %arg1: i32) -> (i32, i32, i32) {
    %c0_i32 = arith.constant 0 : i32
    %c0_i32_0 = arith.constant 0 : i32
    %c0_i32_1 = arith.constant 0 : i32
    return %arg0, %c0_i32, %c0_i32_0 : i32, i32, i32
  }
  func.func @transform_22(%arg0: i32, %arg1: i32) -> (i32, i32, i32) {
    %c0_i32 = arith.constant 0 : i32
    %c0_i32_0 = arith.constant 0 : i32
    return %arg0, %arg1, %c0_i32 : i32, i32, i32
  }
  func.func @transform_23(%arg0: i32, %arg1: i32) -> (i32, i32, i32) {
    %c0_i32 = arith.constant 0 : i32
    %c0_i32_0 = arith.constant 0 : i32
    return %arg0, %arg1, %c0_i32 : i32, i32, i32
  }
}

</mosaic_0001>

<llo_original>
// kernel: transformer_dual_decoder_layer.1
$region0: #{transformer_dual_decoder_layer.1}
  #allocation0 [shape = 'u32[]', space=smem, size = 0x4, offset = 0x4, fixed_abs, tag = 'smem constant byte address 0x4 - core index']
  #allocation1 [shape = 'u32[72,128]{1,0:T(1,128)}', space=vmem, size = 0x9000, scoped, tag = 'internal scratch']
  %s0 = inlined_call_operand.vmem [shape: f32[2,16,32], index: 0, kind: input, shape index: {}]
  %s1 = inlined_call_operand.vmem [shape: f32[256,32], index: 1, kind: input, shape index: {}]
  %s2 = inlined_call_operand.vmem [shape: bf16[2,32,96], index: 2, kind: input, shape index: {}]
  %s3 = inlined_call_operand.vmem [shape: f32[2,1,96], index: 3, kind: input, shape index: {}]
  %s4 = inlined_call_operand.vmem [shape: bf16[2,32,32], index: 4, kind: input, shape index: {}]
  %s5 = inlined_call_operand.vmem [shape: f32[2,1,32], index: 5, kind: input, shape index: {}]
  %s6 = inlined_call_operand.vmem [shape: f32[2,1,32], index: 6, kind: input, shape index: {}]
  %s7 = inlined_call_operand.vmem [shape: f32[2,1,32], index: 7, kind: input, shape index: {}]
  %s8 = inlined_call_operand.vmem [shape: bf16[2,32,32], index: 8, kind: input, shape index: {}]
  %s9 = inlined_call_operand.vmem [shape: f32[2,1,32], index: 9, kind: input, shape index: {}]
  %s10 = inlined_call_operand.vmem [shape: bf16[2,32,64], index: 10, kind: input, shape index: {}]
  %s11 = inlined_call_operand.vmem [shape: f32[2,1,64], index: 11, kind: input, shape index: {}]
  %s12 = inlined_call_operand.vmem [shape: bf16[2,32,32], index: 12, kind: input, shape index: {}]
  %s13 = inlined_call_operand.vmem [shape: f32[2,1,32], index: 13, kind: input, shape index: {}]
  %s14 = inlined_call_operand.vmem [shape: f32[2,1,32], index: 14, kind: input, shape index: {}]
  %s15 = inlined_call_operand.vmem [shape: f32[2,1,32], index: 15, kind: input, shape index: {}]
  %s16 = inlined_call_operand.vmem [shape: bf16[2,32,64], index: 16, kind: input, shape index: {}]
  %s17 = inlined_call_operand.vmem [shape: f32[2,1,64], index: 17, kind: input, shape index: {}]
  %s18 = inlined_call_operand.vmem [shape: bf16[2,64,32], index: 18, kind: input, shape index: {}]
  %s19 = inlined_call_operand.vmem [shape: f32[2,1,32], index: 19, kind: input, shape index: {}]
  %s20 = inlined_call_operand.vmem [shape: f32[2,1,32], index: 20, kind: input, shape index: {}]
  %s21 = inlined_call_operand.vmem [shape: f32[2,1,32], index: 21, kind: input, shape index: {}]
  %s22 = inlined_call_operand.vmem [shape: f32[2,16,32], index: 22, kind: output, shape index: {0}]
  %s23 = inlined_call_operand.vmem [shape: f32[2,16,128], index: 23, kind: output, shape index: {1}]
  %24 = xla_tuple %s22, %s23
  %s25 = sld [smem:[#allocation0]]
  $region129: #{transformer_dual_decoder_layer.1} parent=0
    _
  %s27 = ssub.s32 1, %s25
  %s28 = scalar_select 0, %s27, %s25
  loop: start=0, step=1, limit=4
  $region2: #{transformer_dual_decoder_layer.1} parent=0 // loop_pre_header
    _
  $region3: #{transformer_dual_decoder_layer.1} parent=0 // loop_header
    %s30 = sphi 0, %s34
    %p31 = scmp.ge.s32.totalorder %s30, 4
    %s37 = sphi 0, %s49
    %s38 = sphi 0, %s45
    %s39 = sphi 0, %s37
    %s40 = sphi 0, %s38
    %s41 = sphi 0, %s39
    %s42 = sphi 0, %s40
    %s54 = sphi 0, %s56
    %s57 = sphi 0, %s54
    %s58 = sphi 0, %s57
    %s74 = sphi 0, %s58
    %s80 = sphi 0, %s82
    %s83 = sphi 0, %s80
    %s84 = sphi 0, %s83
    %s100 = sphi 0, %s84
    %s106 = sphi 0, %s108
    %s109 = sphi 0, %s106
    %s110 = sphi 0, %s109
    %s126 = sphi 0, %s110
    %s132 = sphi 0, %s134
    %s135 = sphi 0, %s132
    %s136 = sphi 0, %s135
    %s152 = sphi 0, %s136
    %s158 = sphi 0, %s160
    %s161 = sphi 0, %s158
    %s162 = sphi 0, %s161
    %s178 = sphi 0, %s162
    %s184 = sphi 0, %s186
    %s187 = sphi 0, %s184
    %s188 = sphi 0, %s187
    %s204 = sphi 0, %s188
    %s210 = sphi 0, %s212
    %s213 = sphi 0, %s210
    %s214 = sphi 0, %s213
    %s230 = sphi 0, %s214
    %s236 = sphi 0, %s238
    %s239 = sphi 0, %s236
    %s240 = sphi 0, %s239
    %s256 = sphi 0, %s240
    %s262 = sphi 0, %s264
    %s265 = sphi 0, %s262
    %s266 = sphi 0, %s265
    %s282 = sphi 0, %s266
    %s288 = sphi 0, %s290
    %s291 = sphi 0, %s288
    %s292 = sphi 0, %s291
    %s308 = sphi 0, %s292
    %s314 = sphi 0, %s316
    %s317 = sphi 0, %s314
    %s318 = sphi 0, %s317
    %s334 = sphi 0, %s318
    %s340 = sphi 0, %s342
    %s343 = sphi 0, %s340
    %s344 = sphi 0, %s343
    %s360 = sphi 0, %s344
    %s366 = sphi 0, %s368
    %s369 = sphi 0, %s366
    %s370 = sphi 0, %s369
    %s386 = sphi 0, %s370
    %s392 = sphi 0, %s394
    %s395 = sphi 0, %s392
    %s396 = sphi 0, %s395
    %s412 = sphi 0, %s396
    %s418 = sphi 0, %s420
    %s421 = sphi 0, %s418
    %s422 = sphi 0, %s421
    %s438 = sphi 0, %s422
    %s444 = sphi 0, %s446
    %s447 = sphi 0, %s444
    %s448 = sphi 0, %s447
    %s464 = sphi 0, %s448
    %s470 = sphi 0, %s472
    %s473 = sphi 0, %s470
    %s474 = sphi 0, %s473
    %s490 = sphi 0, %s474
    %s496 = sphi 0, %s498
    %s499 = sphi 0, %s496
    %s500 = sphi 0, %s499
    %s516 = sphi 0, %s500
    %s522 = sphi 0, %s524
    %s525 = sphi 0, %s522
    %s526 = sphi 0, %s525
    %s542 = sphi 0, %s526
    %s548 = sphi 0, %s550
    %s551 = sphi 0, %s548
    %s552 = sphi 0, %s551
    %s568 = sphi 0, %s552
    %s574 = sphi 0, %s576
    %s577 = sphi 0, %s574
    %s578 = sphi 0, %s577
    %s594 = sphi 0, %s578
    %s600 = sphi 0, %s602
    %s603 = sphi 0, %s600
    %s604 = sphi 0, %s603
    %s620 = sphi 0, %s604
    %s628 = sphi 0, %s630
    %s631 = sphi 0, %s628
    %s632 = sphi 0, %s631
    %s648 = sphi 0, %s632
    %s656 = sphi 0, %s658
    %s659 = sphi 0, %s656
    %s660 = sphi 0, %s659
    %s676 = sphi 0, %s660
  $region4: #{transformer_dual_decoder_layer.1} parent=0 // loop_header_branch
    %33 = sbr.rel (%p31) target = $region8
  $region5: #{transformer_dual_decoder_layer.1} parent=0 // loop_body
    %s35 = ssub.s32 %s30, 1
    %s36 = ssub.s32 %s30, 2
    %s43 = sadd.s32 1, %s38
    %p44 = scmp.ge.s32.totalorder %s43, 1
    %s45 = scalar_select %p44, 0, %s43
    %s46 = sadd.s32 1, %s37
    %s47 = scalar_select %p44, %s46, %s37
    %p48 = scmp.ge.s32.totalorder %s47, 2
    %s49 = scalar_select %p48, 0, %s47
    %s50 = ssub.s32 %s37, %s49
    %s51 = ssub.s32 %s38, %s45
    %s52 = sor.u32 %s50, %s51
    %p53 = scmp.eq.s32.totalorder %s52, 0
    %s55 = sadd.s32 %s54, 1
    %s56 = scalar_select %p53, %s54, %s55
    %p59 = pneg %p53
    %p60 = scmp.eq.s32.totalorder %s30, 1
    %p61 = por %p59, %p60
    %p62 = scmp.ne.s32.totalorder %s54, %s57
    %p63 = scmp.eq.s32.totalorder %s30, 0
    %p64 = por %p62, %p63
    %p65 = scmp.ne.s32.totalorder %s54, %s57
    %p66 = scmp.eq.s32.totalorder %s35, 1
    %p67 = por %p65, %p66
    %p68 = scmp.ne.s32.totalorder %s57, %s58
    %p69 = scmp.eq.s32.totalorder %s35, 0
    %p70 = por %p68, %p69
    %p71 = scmp.ne.s32.totalorder %s57, %s58
    %p72 = scmp.eq.s32.totalorder %s36, 1
    %p73 = por %p71, %p72
    %p75 = scmp.ne.s32.totalorder %s58, %s74
    %p76 = scmp.eq.s32.totalorder %s36, 0
    %p77 = por %p75, %p76
    %s78 = ssub.s32 %s38, %s45
    %p79 = scmp.eq.s32.totalorder %s78, 0
    %s81 = sadd.s32 %s80, 1
    %s82 = scalar_select %p79, %s80, %s81
    %p85 = pneg %p79
    %p86 = scmp.eq.s32.totalorder %s30, 1
    %p87 = por %p85, %p86
    %p88 = scmp.ne.s32.totalorder %s80, %s83
    %p89 = scmp.eq.s32.totalorder %s30, 0
    %p90 = por %p88, %p89
    %p91 = scmp.ne.s32.totalorder %s80, %s83
    %p92 = scmp.eq.s32.totalorder %s35, 1
    %p93 = por %p91, %p92
    %p94 = scmp.ne.s32.totalorder %s83, %s84
    %p95 = scmp.eq.s32.totalorder %s35, 0
    %p96 = por %p94, %p95
    %p97 = scmp.ne.s32.totalorder %s83, %s84
    %p98 = scmp.eq.s32.totalorder %s36, 1
    %p99 = por %p97, %p98
    %p101 = scmp.ne.s32.totalorder %s84, %s100
    %p102 = scmp.eq.s32.totalorder %s36, 0
    %p103 = por %p101, %p102
    %s104 = ssub.s32 %s37, %s49
    %p105 = scmp.eq.s32.totalorder %s104, 0
    %s107 = sadd.s32 %s106, 1
    %s108 = scalar_select %p105, %s106, %s107
    %p111 = pneg %p105
    %p112 = scmp.eq.s32.totalorder %s30, 1
    %p113 = por %p111, %p112
    %p114 = scmp.ne.s32.totalorder %s106, %s109
    %p115 = scmp.eq.s32.totalorder %s30, 0
    %p116 = por %p114, %p115
    %p117 = scmp.ne.s32.totalorder %s106, %s109
    %p118 = scmp.eq.s32.totalorder %s35, 1
    %p119 = por %p117, %p118
    %p120 = scmp.ne.s32.totalorder %s109, %s110
    %p121 = scmp.eq.s32.totalorder %s35, 0
    %p122 = por %p120, %p121
    %p123 = scmp.ne.s32.totalorder %s109, %s110
    %p124 = scmp.eq.s32.totalorder %s36, 1
    %p125 = por %p123, %p124
    %p127 = scmp.ne.s32.totalorder %s110, %s126
    %p128 = scmp.eq.s32.totalorder %s36, 0
    %p129 = por %p127, %p128
    %s130 = ssub.s32 %s37, %s49
    %p131 = scmp.eq.s32.totalorder %s130, 0
    %s133 = sadd.s32 %s132, 1
    %s134 = scalar_select %p131, %s132, %s133
    %p137 = pneg %p131
    %p138 = scmp.eq.s32.totalorder %s30, 1
    %p139 = por %p137, %p138
    %p140 = scmp.ne.s32.totalorder %s132, %s135
    %p141 = scmp.eq.s32.totalorder %s30, 0
    %p142 = por %p140, %p141
    %p143 = scmp.ne.s32.totalorder %s132, %s135
    %p144 = scmp.eq.s32.totalorder %s35, 1
    %p145 = por %p143, %p144
    %p146 = scmp.ne.s32.totalorder %s135, %s136
    %p147 = scmp.eq.s32.totalorder %s35, 0
    %p148 = por %p146, %p147
    %p149 = scmp.ne.s32.totalorder %s135, %s136
    %p150 = scmp.eq.s32.totalorder %s36, 1
    %p151 = por %p149, %p150
    %p153 = scmp.ne.s32.totalorder %s136, %s152
    %p154 = scmp.eq.s32.totalorder %s36, 0
    %p155 = por %p153, %p154
    %s156 = ssub.s32 %s37, %s49
    %p157 = scmp.eq.s32.totalorder %s156, 0
    %s159 = sadd.s32 %s158, 1
    %s160 = scalar_select %p157, %s158, %s159
    %p163 = pneg %p157
    %p164 = scmp.eq.s32.totalorder %s30, 1
    %p165 = por %p163, %p164
    %p166 = scmp.ne.s32.totalorder %s158, %s161
    %p167 = scmp.eq.s32.totalorder %s30, 0
    %p168 = por %p166, %p167
    %p169 = scmp.ne.s32.totalorder %s158, %s161
    %p170 = scmp.eq.s32.totalorder %s35, 1
    %p171 = por %p169, %p170
    %p172 = scmp.ne.s32.totalorder %s161, %s162
    %p173 = scmp.eq.s32.totalorder %s35, 0
    %p174 = por %p172, %p173
    %p175 = scmp.ne.s32.totalorder %s161, %s162
    %p176 = scmp.eq.s32.totalorder %s36, 1
    %p177 = por %p175, %p176
    %p179 = scmp.ne.s32.totalorder %s162, %s178
    %p180 = scmp.eq.s32.totalorder %s36, 0
    %p181 = por %p179, %p180
    %s182 = ssub.s32 %s37, %s49
    %p183 = scmp.eq.s32.totalorder %s182, 0
    %s185 = sadd.s32 %s184, 1
    %s186 = scalar_select %p183, %s184, %s185
    %p189 = pneg %p183
    %p190 = scmp.eq.s32.totalorder %s30, 1
    %p191 = por %p189, %p190
    %p192 = scmp.ne.s32.totalorder %s184, %s187
    %p193 = scmp.eq.s32.totalorder %s30, 0
    %p194 = por %p192, %p193
    %p195 = scmp.ne.s32.totalorder %s184, %s187
    %p196 = scmp.eq.s32.totalorder %s35, 1
    %p197 = por %p195, %p196
    %p198 = scmp.ne.s32.totalorder %s187, %s188
    %p199 = scmp.eq.s32.totalorder %s35, 0
    %p200 = por %p198, %p199
    %p201 = scmp.ne.s32.totalorder %s187, %s188
    %p202 = scmp.eq.s32.totalorder %s36, 1
    %p203 = por %p201, %p202
    %p205 = scmp.ne.s32.totalorder %s188, %s204
    %p206 = scmp.eq.s32.totalorder %s36, 0
    %p207 = por %p205, %p206
    %s208 = ssub.s32 %s37, %s49
    %p209 = scmp.eq.s32.totalorder %s208, 0
    %s211 = sadd.s32 %s210, 1
    %s212 = scalar_select %p209, %s210, %s211
    %p215 = pneg %p209
    %p216 = scmp.eq.s32.totalorder %s30, 1
    %p217 = por %p215, %p216
    %p218 = scmp.ne.s32.totalorder %s210, %s213
    %p219 = scmp.eq.s32.totalorder %s30, 0
    %p220 = por %p218, %p219
    %p221 = scmp.ne.s32.totalorder %s210, %s213
    %p222 = scmp.eq.s32.totalorder %s35, 1
    %p223 = por %p221, %p222
    %p224 = scmp.ne.s32.totalorder %s213, %s214
    %p225 = scmp.eq.s32.totalorder %s35, 0
    %p226 = por %p224, %p225
    %p227 = scmp.ne.s32.totalorder %s213, %s214
    %p228 = scmp.eq.s32.totalorder %s36, 1
    %p229 = por %p227, %p228
    %p231 = scmp.ne.s32.totalorder %s214, %s230
    %p232 = scmp.eq.s32.totalorder %s36, 0
    %p233 = por %p231, %p232
    %s234 = ssub.s32 %s37, %s49
    %p235 = scmp.eq.s32.totalorder %s234, 0
    %s237 = sadd.s32 %s236, 1
    %s238 = scalar_select %p235, %s236, %s237
    %p241 = pneg %p235
    %p242 = scmp.eq.s32.totalorder %s30, 1
    %p243 = por %p241, %p242
    %p244 = scmp.ne.s32.totalorder %s236, %s239
    %p245 = scmp.eq.s32.totalorder %s30, 0
    %p246 = por %p244, %p245
    %p247 = scmp.ne.s32.totalorder %s236, %s239
    %p248 = scmp.eq.s32.totalorder %s35, 1
    %p249 = por %p247, %p248
    %p250 = scmp.ne.s32.totalorder %s239, %s240
    %p251 = scmp.eq.s32.totalorder %s35, 0
    %p252 = por %p250, %p251
    %p253 = scmp.ne.s32.totalorder %s239, %s240
    %p254 = scmp.eq.s32.totalorder %s36, 1
    %p255 = por %p253, %p254
    %p257 = scmp.ne.s32.totalorder %s240, %s256
    %p258 = scmp.eq.s32.totalorder %s36, 0
    %p259 = por %p257, %p258
    %s260 = ssub.s32 %s37, %s49
    %p261 = scmp.eq.s32.totalorder %s260, 0
    %s263 = sadd.s32 %s262, 1
    %s264 = scalar_select %p261, %s262, %s263
    %p267 = pneg %p261
    %p268 = scmp.eq.s32.totalorder %s30, 1
    %p269 = por %p267, %p268
    %p270 = scmp.ne.s32.totalorder %s262, %s265
    %p271 = scmp.eq.s32.totalorder %s30, 0
    %p272 = por %p270, %p271
    %p273 = scmp.ne.s32.totalorder %s262, %s265
    %p274 = scmp.eq.s32.totalorder %s35, 1
    %p275 = por %p273, %p274
    %p276 = scmp.ne.s32.totalorder %s265, %s266
    %p277 = scmp.eq.s32.totalorder %s35, 0
    %p278 = por %p276, %p277
    %p279 = scmp.ne.s32.totalorder %s265, %s266
    %p280 = scmp.eq.s32.totalorder %s36, 1
    %p281 = por %p279, %p280
    %p283 = scmp.ne.s32.totalorder %s266, %s282
    %p284 = scmp.eq.s32.totalorder %s36, 0
    %p285 = por %p283, %p284
    %s286 = ssub.s32 %s37, %s49
    %p287 = scmp.eq.s32.totalorder %s286, 0
    %s289 = sadd.s32 %s288, 1
    %s290 = scalar_select %p287, %s288, %s289
    %p293 = pneg %p287
    %p294 = scmp.eq.s32.totalorder %s30, 1
    %p295 = por %p293, %p294
    %p296 = scmp.ne.s32.totalorder %s288, %s291
    %p297 = scmp.eq.s32.totalorder %s30, 0
    %p298 = por %p296, %p297
    %p299 = scmp.ne.s32.totalorder %s288, %s291
    %p300 = scmp.eq.s32.totalorder %s35, 1
    %p301 = por %p299, %p300
    %p302 = scmp.ne.s32.totalorder %s291, %s292
    %p303 = scmp.eq.s32.totalorder %s35, 0
    %p304 = por %p302, %p303
    %p305 = scmp.ne.s32.totalorder %s291, %s292
    %p306 = scmp.eq.s32.totalorder %s36, 1
    %p307 = por %p305, %p306
    %p309 = scmp.ne.s32.totalorder %s292, %s308
    %p310 = scmp.eq.s32.totalorder %s36, 0
    %p311 = por %p309, %p310
    %s312 = ssub.s32 %s37, %s49
    %p313 = scmp.eq.s32.totalorder %s312, 0
    %s315 = sadd.s32 %s314, 1
    %s316 = scalar_select %p313, %s314, %s315
    %p319 = pneg %p313
    %p320 = scmp.eq.s32.totalorder %s30, 1
    %p321 = por %p319, %p320
    %p322 = scmp.ne.s32.totalorder %s314, %s317
    %p323 = scmp.eq.s32.totalorder %s30, 0
    %p324 = por %p322, %p323
    %p325 = scmp.ne.s32.totalorder %s314, %s317
    %p326 = scmp.eq.s32.totalorder %s35, 1
    %p327 = por %p325, %p326
    %p328 = scmp.ne.s32.totalorder %s317, %s318
    %p329 = scmp.eq.s32.totalorder %s35, 0
    %p330 = por %p328, %p329
    %p331 = scmp.ne.s32.totalorder %s317, %s318
    %p332 = scmp.eq.s32.totalorder %s36, 1
    %p333 = por %p331, %p332
    %p335 = scmp.ne.s32.totalorder %s318, %s334
    %p336 = scmp.eq.s32.totalorder %s36, 0
    %p337 = por %p335, %p336
    %s338 = ssub.s32 %s37, %s49
    %p339 = scmp.eq.s32.totalorder %s338, 0
    %s341 = sadd.s32 %s340, 1
    %s342 = scalar_select %p339, %s340, %s341
    %p345 = pneg %p339
    %p346 = scmp.eq.s32.totalorder %s30, 1
    %p347 = por %p345, %p346
    %p348 = scmp.ne.s32.totalorder %s340, %s343
    %p349 = scmp.eq.s32.totalorder %s30, 0
    %p350 = por %p348, %p349
    %p351 = scmp.ne.s32.totalorder %s340, %s343
    %p352 = scmp.eq.s32.totalorder %s35, 1
    %p353 = por %p351, %p352
    %p354 = scmp.ne.s32.totalorder %s343, %s344
    %p355 = scmp.eq.s32.totalorder %s35, 0
    %p356 = por %p354, %p355
    %p357 = scmp.ne.s32.totalorder %s343, %s344
    %p358 = scmp.eq.s32.totalorder %s36, 1
    %p359 = por %p357, %p358
    %p361 = scmp.ne.s32.totalorder %s344, %s360
    %p362 = scmp.eq.s32.totalorder %s36, 0
    %p363 = por %p361, %p362
    %s364 = ssub.s32 %s37, %s49
    %p365 = scmp.eq.s32.totalorder %s364, 0
    %s367 = sadd.s32 %s366, 1
    %s368 = scalar_select %p365, %s366, %s367
    %p371 = pneg %p365
    %p372 = scmp.eq.s32.totalorder %s30, 1
    %p373 = por %p371, %p372
    %p374 = scmp.ne.s32.totalorder %s366, %s369
    %p375 = scmp.eq.s32.totalorder %s30, 0
    %p376 = por %p374, %p375
    %p377 = scmp.ne.s32.totalorder %s366, %s369
    %p378 = scmp.eq.s32.totalorder %s35, 1
    %p379 = por %p377, %p378
    %p380 = scmp.ne.s32.totalorder %s369, %s370
    %p381 = scmp.eq.s32.totalorder %s35, 0
    %p382 = por %p380, %p381
    %p383 = scmp.ne.s32.totalorder %s369, %s370
    %p384 = scmp.eq.s32.totalorder %s36, 1
    %p385 = por %p383, %p384
    %p387 = scmp.ne.s32.totalorder %s370, %s386
    %p388 = scmp.eq.s32.totalorder %s36, 0
    %p389 = por %p387, %p388
    %s390 = ssub.s32 %s37, %s49
    %p391 = scmp.eq.s32.totalorder %s390, 0
    %s393 = sadd.s32 %s392, 1
    %s394 = scalar_select %p391, %s392, %s393
    %p397 = pneg %p391
    %p398 = scmp.eq.s32.totalorder %s30, 1
    %p399 = por %p397, %p398
    %p400 = scmp.ne.s32.totalorder %s392, %s395
    %p401 = scmp.eq.s32.totalorder %s30, 0
    %p402 = por %p400, %p401
    %p403 = scmp.ne.s32.totalorder %s392, %s395
    %p404 = scmp.eq.s32.totalorder %s35, 1
    %p405 = por %p403, %p404
    %p406 = scmp.ne.s32.totalorder %s395, %s396
    %p407 = scmp.eq.s32.totalorder %s35, 0
    %p408 = por %p406, %p407
    %p409 = scmp.ne.s32.totalorder %s395, %s396
    %p410 = scmp.eq.s32.totalorder %s36, 1
    %p411 = por %p409, %p410
    %p413 = scmp.ne.s32.totalorder %s396, %s412
    %p414 = scmp.eq.s32.totalorder %s36, 0
    %p415 = por %p413, %p414
    %s416 = ssub.s32 %s37, %s49
    %p417 = scmp.eq.s32.totalorder %s416, 0
    %s419 = sadd.s32 %s418, 1
    %s420 = scalar_select %p417, %s418, %s419
    %p423 = pneg %p417
    %p424 = scmp.eq.s32.totalorder %s30, 1
    %p425 = por %p423, %p424
    %p426 = scmp.ne.s32.totalorder %s418, %s421
    %p427 = scmp.eq.s32.totalorder %s30, 0
    %p428 = por %p426, %p427
    %p429 = scmp.ne.s32.totalorder %s418, %s421
    %p430 = scmp.eq.s32.totalorder %s35, 1
    %p431 = por %p429, %p430
    %p432 = scmp.ne.s32.totalorder %s421, %s422
    %p433 = scmp.eq.s32.totalorder %s35, 0
    %p434 = por %p432, %p433
    %p435 = scmp.ne.s32.totalorder %s421, %s422
    %p436 = scmp.eq.s32.totalorder %s36, 1
    %p437 = por %p435, %p436
    %p439 = scmp.ne.s32.totalorder %s422, %s438
    %p440 = scmp.eq.s32.totalorder %s36, 0
    %p441 = por %p439, %p440
    %s442 = ssub.s32 %s37, %s49
    %p443 = scmp.eq.s32.totalorder %s442, 0
    %s445 = sadd.s32 %s444, 1
    %s446 = scalar_select %p443, %s444, %s445
    %p449 = pneg %p443
    %p450 = scmp.eq.s32.totalorder %s30, 1
    %p451 = por %p449, %p450
    %p452 = scmp.ne.s32.totalorder %s444, %s447
    %p453 = scmp.eq.s32.totalorder %s30, 0
    %p454 = por %p452, %p453
    %p455 = scmp.ne.s32.totalorder %s444, %s447
    %p456 = scmp.eq.s32.totalorder %s35, 1
    %p457 = por %p455, %p456
    %p458 = scmp.ne.s32.totalorder %s447, %s448
    %p459 = scmp.eq.s32.totalorder %s35, 0
    %p460 = por %p458, %p459
    %p461 = scmp.ne.s32.totalorder %s447, %s448
    %p462 = scmp.eq.s32.totalorder %s36, 1
    %p463 = por %p461, %p462
    %p465 = scmp.ne.s32.totalorder %s448, %s464
    %p466 = scmp.eq.s32.totalorder %s36, 0
    %p467 = por %p465, %p466
    %s468 = ssub.s32 %s37, %s49
    %p469 = scmp.eq.s32.totalorder %s468, 0
    %s471 = sadd.s32 %s470, 1
    %s472 = scalar_select %p469, %s470, %s471
    %p475 = pneg %p469
    %p476 = scmp.eq.s32.totalorder %s30, 1
    %p477 = por %p475, %p476
    %p478 = scmp.ne.s32.totalorder %s470, %s473
    %p479 = scmp.eq.s32.totalorder %s30, 0
    %p480 = por %p478, %p479
    %p481 = scmp.ne.s32.totalorder %s470, %s473
    %p482 = scmp.eq.s32.totalorder %s35, 1
    %p483 = por %p481, %p482
    %p484 = scmp.ne.s32.totalorder %s473, %s474
    %p485 = scmp.eq.s32.totalorder %s35, 0
    %p486 = por %p484, %p485
    %p487 = scmp.ne.s32.totalorder %s473, %s474
    %p488 = scmp.eq.s32.totalorder %s36, 1
    %p489 = por %p487, %p488
    %p491 = scmp.ne.s32.totalorder %s474, %s490
    %p492 = scmp.eq.s32.totalorder %s36, 0
    %p493 = por %p491, %p492
    %s494 = ssub.s32 %s37, %s49
    %p495 = scmp.eq.s32.totalorder %s494, 0
    %s497 = sadd.s32 %s496, 1
    %s498 = scalar_select %p495, %s496, %s497
    %p501 = pneg %p495
    %p502 = scmp.eq.s32.totalorder %s30, 1
    %p503 = por %p501, %p502
    %p504 = scmp.ne.s32.totalorder %s496, %s499
    %p505 = scmp.eq.s32.totalorder %s30, 0
    %p506 = por %p504, %p505
    %p507 = scmp.ne.s32.totalorder %s496, %s499
    %p508 = scmp.eq.s32.totalorder %s35, 1
    %p509 = por %p507, %p508
    %p510 = scmp.ne.s32.totalorder %s499, %s500
    %p511 = scmp.eq.s32.totalorder %s35, 0
    %p512 = por %p510, %p511
    %p513 = scmp.ne.s32.totalorder %s499, %s500
    %p514 = scmp.eq.s32.totalorder %s36, 1
    %p515 = por %p513, %p514
    %p517 = scmp.ne.s32.totalorder %s500, %s516
    %p518 = scmp.eq.s32.totalorder %s36, 0
    %p519 = por %p517, %p518
    %s520 = ssub.s32 %s37, %s49
    %p521 = scmp.eq.s32.totalorder %s520, 0
    %s523 = sadd.s32 %s522, 1
    %s524 = scalar_select %p521, %s522, %s523
    %p527 = pneg %p521
    %p528 = scmp.eq.s32.totalorder %s30, 1
    %p529 = por %p527, %p528
    %p530 = scmp.ne.s32.totalorder %s522, %s525
    %p531 = scmp.eq.s32.totalorder %s30, 0
    %p532 = por %p530, %p531
    %p533 = scmp.ne.s32.totalorder %s522, %s525
    %p534 = scmp.eq.s32.totalorder %s35, 1
    %p535 = por %p533, %p534
    %p536 = scmp.ne.s32.totalorder %s525, %s526
    %p537 = scmp.eq.s32.totalorder %s35, 0
    %p538 = por %p536, %p537
    %p539 = scmp.ne.s32.totalorder %s525, %s526
    %p540 = scmp.eq.s32.totalorder %s36, 1
    %p541 = por %p539, %p540
    %p543 = scmp.ne.s32.totalorder %s526, %s542
    %p544 = scmp.eq.s32.totalorder %s36, 0
    %p545 = por %p543, %p544
    %s546 = ssub.s32 %s37, %s49
    %p547 = scmp.eq.s32.totalorder %s546, 0
    %s549 = sadd.s32 %s548, 1
    %s550 = scalar_select %p547, %s548, %s549
    %p553 = pneg %p547
    %p554 = scmp.eq.s32.totalorder %s30, 1
    %p555 = por %p553, %p554
    %p556 = scmp.ne.s32.totalorder %s548, %s551
    %p557 = scmp.eq.s32.totalorder %s30, 0
    %p558 = por %p556, %p557
    %p559 = scmp.ne.s32.totalorder %s548, %s551
    %p560 = scmp.eq.s32.totalorder %s35, 1
    %p561 = por %p559, %p560
    %p562 = scmp.ne.s32.totalorder %s551, %s552
    %p563 = scmp.eq.s32.totalorder %s35, 0
    %p564 = por %p562, %p563
    %p565 = scmp.ne.s32.totalorder %s551, %s552
    %p566 = scmp.eq.s32.totalorder %s36, 1
    %p567 = por %p565, %p566
    %p569 = scmp.ne.s32.totalorder %s552, %s568
    %p570 = scmp.eq.s32.totalorder %s36, 0
    %p571 = por %p569, %p570
    %s572 = ssub.s32 %s37, %s49
    %p573 = scmp.eq.s32.totalorder %s572, 0
    %s575 = sadd.s32 %s574, 1
    %s576 = scalar_select %p573, %s574, %s575
    %p579 = pneg %p573
    %p580 = scmp.eq.s32.totalorder %s30, 1
    %p581 = por %p579, %p580
    %p582 = scmp.ne.s32.totalorder %s574, %s577
    %p583 = scmp.eq.s32.totalorder %s30, 0
    %p584 = por %p582, %p583
    %p585 = scmp.ne.s32.totalorder %s574, %s577
    %p586 = scmp.eq.s32.totalorder %s35, 1
    %p587 = por %p585, %p586
    %p588 = scmp.ne.s32.totalorder %s577, %s578
    %p589 = scmp.eq.s32.totalorder %s35, 0
    %p590 = por %p588, %p589
    %p591 = scmp.ne.s32.totalorder %s577, %s578
    %p592 = scmp.eq.s32.totalorder %s36, 1
    %p593 = por %p591, %p592
    %p595 = scmp.ne.s32.totalorder %s578, %s594
    %p596 = scmp.eq.s32.totalorder %s36, 0
    %p597 = por %p595, %p596
    %s598 = ssub.s32 %s37, %s49
    %p599 = scmp.eq.s32.totalorder %s598, 0
    %s601 = sadd.s32 %s600, 1
    %s602 = scalar_select %p599, %s600, %s601
    %p605 = pneg %p599
    %p606 = scmp.eq.s32.totalorder %s30, 1
    %p607 = por %p605, %p606
    %p608 = scmp.ne.s32.totalorder %s600, %s603
    %p609 = scmp.eq.s32.totalorder %s30, 0
    %p610 = por %p608, %p609
    %p611 = scmp.ne.s32.totalorder %s600, %s603
    %p612 = scmp.eq.s32.totalorder %s35, 1
    %p613 = por %p611, %p612
    %p614 = scmp.ne.s32.totalorder %s603, %s604
    %p615 = scmp.eq.s32.totalorder %s35, 0
    %p616 = por %p614, %p615
    %p617 = scmp.ne.s32.totalorder %s603, %s604
    %p618 = scmp.eq.s32.totalorder %s36, 1
    %p619 = por %p617, %p618
    %p621 = scmp.ne.s32.totalorder %s604, %s620
    %p622 = scmp.eq.s32.totalorder %s36, 0
    %p623 = por %p621, %p622
    %s624 = ssub.s32 %s37, %s49
    %s625 = ssub.s32 %s38, %s45
    %s626 = sor.u32 %s624, %s625
    %p627 = scmp.eq.s32.totalorder %s626, 0
    %s629 = sadd.s32 %s628, 1
    %s630 = scalar_select %p627, %s628, %s629
    %p633 = pneg %p627
    %p634 = scmp.eq.s32.totalorder %s30, 1
    %p635 = por %p633, %p634
    %p636 = scmp.ne.s32.totalorder %s628, %s631
    %p637 = scmp.eq.s32.totalorder %s30, 0
    %p638 = por %p636, %p637
    %p639 = scmp.ne.s32.totalorder %s628, %s631
    %p640 = scmp.eq.s32.totalorder %s35, 1
    %p641 = por %p639, %p640
    %p642 = scmp.ne.s32.totalorder %s631, %s632
    %p643 = scmp.eq.s32.totalorder %s35, 0
    %p644 = por %p642, %p643
    %p645 = scmp.ne.s32.totalorder %s631, %s632
    %p646 = scmp.eq.s32.totalorder %s36, 1
    %p647 = por %p645, %p646
    %p649 = scmp.ne.s32.totalorder %s632, %s648
    %p650 = scmp.eq.s32.totalorder %s36, 0
    %p651 = por %p649, %p650
    %s652 = ssub.s32 %s37, %s49
    %s653 = ssub.s32 %s38, %s45
    %s654 = sor.u32 %s652, %s653
    %p655 = scmp.eq.s32.totalorder %s654, 0
    %s657 = sadd.s32 %s656, 1
    %s658 = scalar_select %p655, %s656, %s657
    %p661 = pneg %p655
    %p662 = scmp.eq.s32.totalorder %s30, 1
    %p663 = por %p661, %p662
    %p664 = scmp.ne.s32.totalorder %s656, %s659
    %p665 = scmp.eq.s32.totalorder %s30, 0
    %p666 = por %p664, %p665
    %p667 = scmp.ne.s32.totalorder %s656, %s659
    %p668 = scmp.eq.s32.totalorder %s35, 1
    %p669 = por %p667, %p668
    %p670 = scmp.ne.s32.totalorder %s659, %s660
    %p671 = scmp.eq.s32.totalorder %s35, 0
    %p672 = por %p670, %p671
    %p673 = scmp.ne.s32.totalorder %s659, %s660
    %p674 = scmp.eq.s32.totalorder %s36, 1
    %p675 = por %p673, %p674
    %p677 = scmp.ne.s32.totalorder %s660, %s676
    %p678 = scmp.eq.s32.totalorder %s36, 0
    %p679 = por %p677, %p678
    %p680 = scmp.le.s32.totalorder 1, %s30
    %p681 = scmp.lt.s32.totalorder %s30, 3
    %p682 = pnand %p680, %p681
    %p683 = pneg %p682
    // Predicated region
    $region9: #{transformer_dual_decoder_layer.1} parent=5 // pred_check
      _
    $region10: #{transformer_dual_decoder_layer.1} parent=5 // pred_check_branch
      %685 = sbr.rel (%p682) target = $region12
    $region11: #{transformer_dual_decoder_layer.1} parent=5 // pred_region
      %s686 = ssub.s32 %s30, 1
      // Predicated region
      $region13: #{transformer_dual_decoder_layer.1} parent=11 // pred_check
        %p687 = pneg %p96
      $region14: #{transformer_dual_decoder_layer.1} parent=11 // pred_check_branch
        %689 = sbr.rel (%p687) target = $region16
      $region15: #{transformer_dual_decoder_layer.1} parent=11 // pred_region
        %s690 = smul.u32 32, %s40
        %p691 = scmp.lt.s32.totalorder %s690, 31
        %s692 = scalar_select %p691, %s690, 31
        %s693 = smul.addr %s692, 8
        %s694 = scalar_lea.vmem %s1, %s693
        %s695 = smul.u32 32, %s40
      $region16: #{transformer_dual_decoder_layer.1} parent=11 // pred_fallthru
        _
    $region12: #{transformer_dual_decoder_layer.1} parent=5 // pred_fallthru
      _
    %p696 = scmp.lt.s32.totalorder %s30, 2
    // Predicated region
    $region17: #{transformer_dual_decoder_layer.1} parent=5 // pred_check
      %p697 = pneg %p696
    $region18: #{transformer_dual_decoder_layer.1} parent=5 // pred_check_branch
      %699 = sbr.rel (%p697) target = $region20
    $region19: #{transformer_dual_decoder_layer.1} parent=5 // pred_region
      // Predicated region
      $region21: #{transformer_dual_decoder_layer.1} parent=19 // pred_check
        %p700 = pneg %p64
      $region22: #{transformer_dual_decoder_layer.1} parent=19 // pred_check_branch
        %702 = sbr.rel (%p700) target = $region24
      $region23: #{transformer_dual_decoder_layer.1} parent=19 // pred_region
        %s703 = smul.u32 2, %s38
        %p704 = scmp.lt.s32.totalorder %s37, 1
        %s705 = scalar_select %p704, %s37, 1
        %p706 = scmp.lt.s32.totalorder %s703, 1
        %s707 = scalar_select %p706, %s703, 1
        %s708 = smul.addr %s705, 2
        %s709 = sadd.s32 %s707, %s708
        %s710 = smul.addr %s709, 8
        %s711 = scalar_lea.vmem %s0, %s710
        %s712 = smul.u32 2, %s38
      $region24: #{transformer_dual_decoder_layer.1} parent=19 // pred_fallthru
        _
      // Predicated region
      $region25: #{transformer_dual_decoder_layer.1} parent=19 // pred_check
        %p713 = pneg %p116
      $region26: #{transformer_dual_decoder_layer.1} parent=19 // pred_check_branch
        %715 = sbr.rel (%p713) target = $region28
      $region27: #{transformer_dual_decoder_layer.1} parent=19 // pred_region
        %p716 = scmp.lt.s32.totalorder %s37, 1
        %s717 = scalar_select %p716, %s37, 1
        %s718 = smul.addr %s717, 4
        %s719 = smul.addr %s718, 4
        %s720 = scalar_lea.vmem %s2, %s719
      $region28: #{transformer_dual_decoder_layer.1} parent=19 // pred_fallthru
        _
      // Predicated region
      $region29: #{transformer_dual_decoder_layer.1} parent=19 // pred_check
        %p721 = pneg %p142
      $region30: #{transformer_dual_decoder_layer.1} parent=19 // pred_check_branch
        %723 = sbr.rel (%p721) target = $region32
      $region31: #{transformer_dual_decoder_layer.1} parent=19 // pred_region
        %p724 = scmp.lt.s32.totalorder %s37, 1
        %s725 = scalar_select %p724, %s37, 1
        %s726 = scalar_lea.vmem %s3, %s725
      $region32: #{transformer_dual_decoder_layer.1} parent=19 // pred_fallthru
        _
      // Predicated region
      $region33: #{transformer_dual_decoder_layer.1} parent=19 // pred_check
        %p727 = pneg %p168
      $region34: #{transformer_dual_decoder_layer.1} parent=19 // pred_check_branch
        %729 = sbr.rel (%p727) target = $region36
      $region35: #{transformer_dual_decoder_layer.1} parent=19 // pred_region
        %p730 = scmp.lt.s32.totalorder %s37, 1
        %s731 = scalar_select %p730, %s37, 1
        %s732 = smul.addr %s731, 4
        %s733 = smul.addr %s732, 4
        %s734 = scalar_lea.vmem %s4, %s733
      $region36: #{transformer_dual_decoder_layer.1} parent=19 // pred_fallthru
        _
      // Predicated region
      $region37: #{transformer_dual_decoder_layer.1} parent=19 // pred_check
        %p735 = pneg %p194
      $region38: #{transformer_dual_decoder_layer.1} parent=19 // pred_check_branch
        %737 = sbr.rel (%p735) target = $region40
      $region39: #{transformer_dual_decoder_layer.1} parent=19 // pred_region
        %p738 = scmp.lt.s32.totalorder %s37, 1
        %s739 = scalar_select %p738, %s37, 1
        %s740 = scalar_lea.vmem %s5, %s739
      $region40: #{transformer_dual_decoder_layer.1} parent=19 // pred_fallthru
        _
      // Predicated region
      $region41: #{transformer_dual_decoder_layer.1} parent=19 // pred_check
        %p741 = pneg %p220
      $region42: #{transformer_dual_decoder_layer.1} parent=19 // pred_check_branch
        %743 = sbr.rel (%p741) target = $region44
      $region43: #{transformer_dual_decoder_layer.1} parent=19 // pred_region
        %p744 = scmp.lt.s32.totalorder %s37, 1
        %s745 = scalar_select %p744, %s37, 1
        %s746 = scalar_lea.vmem %s6, %s745
      $region44: #{transformer_dual_decoder_layer.1} parent=19 // pred_fallthru
        _
      // Predicated region
      $region45: #{transformer_dual_decoder_layer.1} parent=19 // pred_check
        %p747 = pneg %p246
      $region46: #{transformer_dual_decoder_layer.1} parent=19 // pred_check_branch
        %749 = sbr.rel (%p747) target = $region48
      $region47: #{transformer_dual_decoder_layer.1} parent=19 // pred_region
        %p750 = scmp.lt.s32.totalorder %s37, 1
        %s751 = scalar_select %p750, %s37, 1
        %s752 = scalar_lea.vmem %s7, %s751
      $region48: #{transformer_dual_decoder_layer.1} parent=19 // pred_fallthru
        _
      // Predicated region
      $region49: #{transformer_dual_decoder_layer.1} parent=19 // pred_check
        %p753 = pneg %p272
      $region50: #{transformer_dual_decoder_layer.1} parent=19 // pred_check_branch
        %755 = sbr.rel (%p753) target = $region52
      $region51: #{transformer_dual_decoder_layer.1} parent=19 // pred_region
        %p756 = scmp.lt.s32.totalorder %s37, 1
        %s757 = scalar_select %p756, %s37, 1
        %s758 = smul.addr %s757, 4
        %s759 = smul.addr %s758, 4
        %s760 = scalar_lea.vmem %s8, %s759
      $region52: #{transformer_dual_decoder_layer.1} parent=19 // pred_fallthru
        _
      // Predicated region
      $region53: #{transformer_dual_decoder_layer.1} parent=19 // pred_check
        %p761 = pneg %p298
      $region54: #{transformer_dual_decoder_layer.1} parent=19 // pred_check_branch
        %763 = sbr.rel (%p761) target = $region56
      $region55: #{transformer_dual_decoder_layer.1} parent=19 // pred_region
        %p764 = scmp.lt.s32.totalorder %s37, 1
        %s765 = scalar_select %p764, %s37, 1
        %s766 = scalar_lea.vmem %s9, %s765
      $region56: #{transformer_dual_decoder_layer.1} parent=19 // pred_fallthru
        _
      // Predicated region
      $region57: #{transformer_dual_decoder_layer.1} parent=19 // pred_check
        %p767 = pneg %p324
      $region58: #{transformer_dual_decoder_layer.1} parent=19 // pred_check_branch
        %769 = sbr.rel (%p767) target = $region60
      $region59: #{transformer_dual_decoder_layer.1} parent=19 // pred_region
        %p770 = scmp.lt.s32.totalorder %s37, 1
        %s771 = scalar_select %p770, %s37, 1
        %s772 = smul.addr %s771, 4
        %s773 = smul.addr %s772, 4
        %s774 = scalar_lea.vmem %s10, %s773
      $region60: #{transformer_dual_decoder_layer.1} parent=19 // pred_fallthru
        _
      // Predicated region
      $region61: #{transformer_dual_decoder_layer.1} parent=19 // pred_check
        %p775 = pneg %p350
      $region62: #{transformer_dual_decoder_layer.1} parent=19 // pred_check_branch
        %777 = sbr.rel (%p775) target = $region64
      $region63: #{transformer_dual_decoder_layer.1} parent=19 // pred_region
        %p778 = scmp.lt.s32.totalorder %s37, 1
        %s779 = scalar_select %p778, %s37, 1
        %s780 = scalar_lea.vmem %s11, %s779
      $region64: #{transformer_dual_decoder_layer.1} parent=19 // pred_fallthru
        _
      // Predicated region
      $region65: #{transformer_dual_decoder_layer.1} parent=19 // pred_check
        %p781 = pneg %p376
      $region66: #{transformer_dual_decoder_layer.1} parent=19 // pred_check_branch
        %783 = sbr.rel (%p781) target = $region68
      $region67: #{transformer_dual_decoder_layer.1} parent=19 // pred_region
        %p784 = scmp.lt.s32.totalorder %s37, 1
        %s785 = scalar_select %p784, %s37, 1
        %s786 = smul.addr %s785, 4
        %s787 = smul.addr %s786, 4
        %s788 = scalar_lea.vmem %s12, %s787
      $region68: #{transformer_dual_decoder_layer.1} parent=19 // pred_fallthru
        _
      // Predicated region
      $region69: #{transformer_dual_decoder_layer.1} parent=19 // pred_check
        %p789 = pneg %p402
      $region70: #{transformer_dual_decoder_layer.1} parent=19 // pred_check_branch
        %791 = sbr.rel (%p789) target = $region72
      $region71: #{transformer_dual_decoder_layer.1} parent=19 // pred_region
        %p792 = scmp.lt.s32.totalorder %s37, 1
        %s793 = scalar_select %p792, %s37, 1
        %s794 = scalar_lea.vmem %s13, %s793
      $region72: #{transformer_dual_decoder_layer.1} parent=19 // pred_fallthru
        _
      // Predicated region
      $region73: #{transformer_dual_decoder_layer.1} parent=19 // pred_check
        %p795 = pneg %p428
      $region74: #{transformer_dual_decoder_layer.1} parent=19 // pred_check_branch
        %797 = sbr.rel (%p795) target = $region76
      $region75: #{transformer_dual_decoder_layer.1} parent=19 // pred_region
        %p798 = scmp.lt.s32.totalorder %s37, 1
        %s799 = scalar_select %p798, %s37, 1
        %s800 = scalar_lea.vmem %s14, %s799
      $region76: #{transformer_dual_decoder_layer.1} parent=19 // pred_fallthru
        _
      // Predicated region
      $region77: #{transformer_dual_decoder_layer.1} parent=19 // pred_check
        %p801 = pneg %p454
      $region78: #{transformer_dual_decoder_layer.1} parent=19 // pred_check_branch
        %803 = sbr.rel (%p801) target = $region80
      $region79: #{transformer_dual_decoder_layer.1} parent=19 // pred_region
        %p804 = scmp.lt.s32.totalorder %s37, 1
        %s805 = scalar_select %p804, %s37, 1
        %s806 = scalar_lea.vmem %s15, %s805
      $region80: #{transformer_dual_decoder_layer.1} parent=19 // pred_fallthru
        _
      // Predicated region
      $region81: #{transformer_dual_decoder_layer.1} parent=19 // pred_check
        %p807 = pneg %p480
      $region82: #{transformer_dual_decoder_layer.1} parent=19 // pred_check_branch
        %809 = sbr.rel (%p807) target = $region84
      $region83: #{transformer_dual_decoder_layer.1} parent=19 // pred_region
        %p810 = scmp.lt.s32.totalorder %s37, 1
        %s811 = scalar_select %p810, %s37, 1
        %s812 = smul.addr %s811, 4
        %s813 = smul.addr %s812, 4
        %s814 = scalar_lea.vmem %s16, %s813
      $region84: #{transformer_dual_decoder_layer.1} parent=19 // pred_fallthru
        _
      // Predicated region
      $region85: #{transformer_dual_decoder_layer.1} parent=19 // pred_check
        %p815 = pneg %p506
      $region86: #{transformer_dual_decoder_layer.1} parent=19 // pred_check_branch
        %817 = sbr.rel (%p815) target = $region88
      $region87: #{transformer_dual_decoder_layer.1} parent=19 // pred_region
        %p818 = scmp.lt.s32.totalorder %s37, 1
        %s819 = scalar_select %p818, %s37, 1
        %s820 = scalar_lea.vmem %s17, %s819
      $region88: #{transformer_dual_decoder_layer.1} parent=19 // pred_fallthru
        _
      // Predicated region
      $region89: #{transformer_dual_decoder_layer.1} parent=19 // pred_check
        %p821 = pneg %p532
      $region90: #{transformer_dual_decoder_layer.1} parent=19 // pred_check_branch
        %823 = sbr.rel (%p821) target = $region92
      $region91: #{transformer_dual_decoder_layer.1} parent=19 // pred_region
        %p824 = scmp.lt.s32.totalorder %s37, 1
        %s825 = scalar_select %p824, %s37, 1
        %s826 = smul.addr %s825, 8
        %s827 = smul.addr %s826, 4
        %s828 = scalar_lea.vmem %s18, %s827
      $region92: #{transformer_dual_decoder_layer.1} parent=19 // pred_fallthru
        _
      // Predicated region
      $region93: #{transformer_dual_decoder_layer.1} parent=19 // pred_check
        %p829 = pneg %p558
      $region94: #{transformer_dual_decoder_layer.1} parent=19 // pred_check_branch
        %831 = sbr.rel (%p829) target = $region96
      $region95: #{transformer_dual_decoder_layer.1} parent=19 // pred_region
        %p832 = scmp.lt.s32.totalorder %s37, 1
        %s833 = scalar_select %p832, %s37, 1
        %s834 = scalar_lea.vmem %s19, %s833
      $region96: #{transformer_dual_decoder_layer.1} parent=19 // pred_fallthru
        _
      // Predicated region
      $region97: #{transformer_dual_decoder_layer.1} parent=19 // pred_check
        %p835 = pneg %p584
      $region98: #{transformer_dual_decoder_layer.1} parent=19 // pred_check_branch
        %837 = sbr.rel (%p835) target = $region100
      $region99: #{transformer_dual_decoder_layer.1} parent=19 // pred_region
        %p838 = scmp.lt.s32.totalorder %s37, 1
        %s839 = scalar_select %p838, %s37, 1
        %s840 = scalar_lea.vmem %s20, %s839
      $region100: #{transformer_dual_decoder_layer.1} parent=19 // pred_fallthru
        _
      // Predicated region
      $region101: #{transformer_dual_decoder_layer.1} parent=19 // pred_check
        %p841 = pneg %p610
      $region102: #{transformer_dual_decoder_layer.1} parent=19 // pred_check_branch
        %843 = sbr.rel (%p841) target = $region104
      $region103: #{transformer_dual_decoder_layer.1} parent=19 // pred_region
        %p844 = scmp.lt.s32.totalorder %s37, 1
        %s845 = scalar_select %p844, %s37, 1
        %s846 = scalar_lea.vmem %s21, %s845
      $region104: #{transformer_dual_decoder_layer.1} parent=19 // pred_fallthru
        _
    $region20: #{transformer_dual_decoder_layer.1} parent=5 // pred_fallthru
      _
    %p847 = scmp.le.s32.totalorder 1, %s30
    %p848 = scmp.lt.s32.totalorder %s30, 3
    %p849 = pnand %p847, %p848
    %p850 = pneg %p849
    // Predicated region
    $region105: #{transformer_dual_decoder_layer.1} parent=5 // pred_check
      _
    $region106: #{transformer_dual_decoder_layer.1} parent=5 // pred_check_branch
      %852 = sbr.rel (%p849) target = $region108
    $region107: #{transformer_dual_decoder_layer.1} parent=5 // pred_region
      %s853 = ssub.s32 %s30, 1
      %s854 = smul.u32 2, %s40
      %p855 = scmp.lt.s32.totalorder %s39, 1
      %s856 = scalar_select %p855, %s39, 1
      %p857 = scmp.lt.s32.totalorder %s854, 1
      %s858 = scalar_select %p857, %s854, 1
      %s859 = smul.addr %s856, 2
      %s860 = sadd.s32 %s858, %s859
      %s861 = smul.addr %s860, 8
      %s862 = scalar_lea.vmem %s0, %s861
      %p863 = pneg %p70
      %p864 = pneg %p67
      %s865 = smul.u32 32, %s40
      %p866 = scmp.lt.s32.totalorder %s865, 31
      %s867 = scalar_select %p866, %s865, 31
      %s868 = smul.addr %s867, 8
      %s869 = scalar_lea.vmem %s1, %s868
      %p870 = pneg %p96
      %p871 = pneg %p93
      %p872 = scmp.lt.s32.totalorder %s39, 1
      %s873 = scalar_select %p872, %s39, 1
      %s874 = smul.addr %s873, 4
      %s875 = smul.addr %s874, 4
      %s876 = scalar_lea.vmem %s2, %s875
      %p877 = pneg %p122
      %p878 = pneg %p119
      %p879 = scmp.lt.s32.totalorder %s39, 1
      %s880 = scalar_select %p879, %s39, 1
      %s881 = scalar_lea.vmem %s3, %s880
      %p882 = pneg %p148
      %p883 = pneg %p145
      %p884 = scmp.lt.s32.totalorder %s39, 1
      %s885 = scalar_select %p884, %s39, 1
      %s886 = smul.addr %s885, 4
      %s887 = smul.addr %s886, 4
      %s888 = scalar_lea.vmem %s4, %s887
      %p889 = pneg %p174
      %p890 = pneg %p171
      %p891 = scmp.lt.s32.totalorder %s39, 1
      %s892 = scalar_select %p891, %s39, 1
      %s893 = scalar_lea.vmem %s5, %s892
      %p894 = pneg %p200
      %p895 = pneg %p197
      %p896 = scmp.lt.s32.totalorder %s39, 1
      %s897 = scalar_select %p896, %s39, 1
      %s898 = scalar_lea.vmem %s6, %s897
      %p899 = pneg %p226
      %p900 = pneg %p223
      %p901 = scmp.lt.s32.totalorder %s39, 1
      %s902 = scalar_select %p901, %s39, 1
      %s903 = scalar_lea.vmem %s7, %s902
      %p904 = pneg %p252
      %p905 = pneg %p249
      %p906 = scmp.lt.s32.totalorder %s39, 1
      %s907 = scalar_select %p906, %s39, 1
      %s908 = smul.addr %s907, 4
      %s909 = smul.addr %s908, 4
      %s910 = scalar_lea.vmem %s8, %s909
      %p911 = pneg %p278
      %p912 = pneg %p275
      %p913 = scmp.lt.s32.totalorder %s39, 1
      %s914 = scalar_select %p913, %s39, 1
      %s915 = scalar_lea.vmem %s9, %s914
      %p916 = pneg %p304
      %p917 = pneg %p301
      %p918 = scmp.lt.s32.totalorder %s39, 1
      %s919 = scalar_select %p918, %s39, 1
      %s920 = smul.addr %s919, 4
      %s921 = smul.addr %s920, 4
      %s922 = scalar_lea.vmem %s10, %s921
      %p923 = pneg %p330
      %p924 = pneg %p327
      %p925 = scmp.lt.s32.totalorder %s39, 1
      %s926 = scalar_select %p925, %s39, 1
      %s927 = scalar_lea.vmem %s11, %s926
      %p928 = pneg %p356
      %p929 = pneg %p353
      %p930 = scmp.lt.s32.totalorder %s39, 1
      %s931 = scalar_select %p930, %s39, 1
      %s932 = smul.addr %s931, 4
      %s933 = smul.addr %s932, 4
      %s934 = scalar_lea.vmem %s12, %s933
      %p935 = pneg %p382
      %p936 = pneg %p379
      %p937 = scmp.lt.s32.totalorder %s39, 1
      %s938 = scalar_select %p937, %s39, 1
      %s939 = scalar_lea.vmem %s13, %s938
      %p940 = pneg %p408
      %p941 = pneg %p405
      %p942 = scmp.lt.s32.totalorder %s39, 1
      %s943 = scalar_select %p942, %s39, 1
      %s944 = scalar_lea.vmem %s14, %s943
      %p945 = pneg %p434
      %p946 = pneg %p431
      %p947 = scmp.lt.s32.totalorder %s39, 1
      %s948 = scalar_select %p947, %s39, 1
      %s949 = scalar_lea.vmem %s15, %s948
      %p950 = pneg %p460
      %p951 = pneg %p457
      %p952 = scmp.lt.s32.totalorder %s39, 1
      %s953 = scalar_select %p952, %s39, 1
      %s954 = smul.addr %s953, 4
      %s955 = smul.addr %s954, 4
      %s956 = scalar_lea.vmem %s16, %s955
      %p957 = pneg %p486
      %p958 = pneg %p483
      %p959 = scmp.lt.s32.totalorder %s39, 1
      %s960 = scalar_select %p959, %s39, 1
      %s961 = scalar_lea.vmem %s17, %s960
      %p962 = pneg %p512
      %p963 = pneg %p509
      %p964 = scmp.lt.s32.totalorder %s39, 1
      %s965 = scalar_select %p964, %s39, 1
      %s966 = smul.addr %s965, 8
      %s967 = smul.addr %s966, 4
      %s968 = scalar_lea.vmem %s18, %s967
      %p969 = pneg %p538
      %p970 = pneg %p535
      %p971 = scmp.lt.s32.totalorder %s39, 1
      %s972 = scalar_select %p971, %s39, 1
      %s973 = scalar_lea.vmem %s19, %s972
      %p974 = pneg %p564
      %p975 = pneg %p561
      %p976 = scmp.lt.s32.totalorder %s39, 1
      %s977 = scalar_select %p976, %s39, 1
      %s978 = scalar_lea.vmem %s20, %s977
      %p979 = pneg %p590
      %p980 = pneg %p587
      %p981 = scmp.lt.s32.totalorder %s39, 1
      %s982 = scalar_select %p981, %s39, 1
      %s983 = scalar_lea.vmem %s21, %s982
      %p984 = pneg %p616
      %p985 = pneg %p613
      %p986 = pneg %p644
      %p987 = pneg %p641
      %s988 = smul.u32 2, %s40
      %p989 = scmp.lt.s32.totalorder %s39, 1
      %s990 = scalar_select %p989, %s39, 1
      %p991 = scmp.lt.s32.totalorder %s988, 1
      %s992 = scalar_select %p991, %s988, 1
      %s993 = smul.addr %s990, 2
      %s994 = sadd.s32 %s992, %s993
      %s995 = smul.addr %s994, 8
      %s996 = scalar_lea.vmem %s22, %s995
      %p997 = pneg %p672
      %p998 = pneg %p669
      %s999 = smul.u32 2, %s40
      %p1000 = scmp.lt.s32.totalorder %s39, 1
      %s1001 = scalar_select %p1000, %s39, 1
      %p1002 = scmp.lt.s32.totalorder %s999, 1
      %s1003 = scalar_select %p1002, %s999, 1
      %s1004 = smul.addr %s1001, 2
      %s1005 = sadd.s32 %s1003, %s1004
      %s1006 = smul.addr %s1005, 8
      %s1007 = scalar_lea.vmem %s23, %s1006
      %s1008 = smul.u32 2, %s40
      %p1009 = scmp.lt.s32.totalorder %s39, 1
      %s1010 = scalar_select %p1009, %s39, 1
      %p1011 = scmp.lt.s32.totalorder %s1008, 1
      %s1012 = scalar_select %p1011, %s1008, 1
      %s1013 = smul.addr %s1010, 2
      %s1014 = sadd.s32 %s1012, %s1013
      %s1015 = smul.addr %s1014, 8
      %s1016 = scalar_lea.vmem %s0, %s1015
      %s1017 = smul.u32 2, %s40
      %s1018 = smul.u32 32, %s40
      %p1019 = scmp.lt.s32.totalorder %s1018, 31
      %s1020 = scalar_select %p1019, %s1018, 31
      %s1021 = smul.addr %s1020, 8
      %s1022 = scalar_lea.vmem %s1, %s1021
      %s1023 = smul.u32 32, %s40
      %p1024 = scmp.lt.s32.totalorder %s39, 1
      %s1025 = scalar_select %p1024, %s39, 1
      %s1026 = smul.addr %s1025, 4
      %s1027 = smul.addr %s1026, 4
      %s1028 = scalar_lea.vmem %s2, %s1027
      %p1029 = scmp.lt.s32.totalorder %s39, 1
      %s1030 = scalar_select %p1029, %s39, 1
      %s1031 = scalar_lea.vmem %s3, %s1030
      %p1032 = scmp.lt.s32.totalorder %s39, 1
      %s1033 = scalar_select %p1032, %s39, 1
      %s1034 = smul.addr %s1033, 4
      %s1035 = smul.addr %s1034, 4
      %s1036 = scalar_lea.vmem %s4, %s1035
      %p1037 = scmp.lt.s32.totalorder %s39, 1
      %s1038 = scalar_select %p1037, %s39, 1
      %s1039 = scalar_lea.vmem %s5, %s1038
      %p1040 = scmp.lt.s32.totalorder %s39, 1
      %s1041 = scalar_select %p1040, %s39, 1
      %s1042 = scalar_lea.vmem %s6, %s1041
      %p1043 = scmp.lt.s32.totalorder %s39, 1
      %s1044 = scalar_select %p1043, %s39, 1
      %s1045 = scalar_lea.vmem %s7, %s1044
      %p1046 = scmp.lt.s32.totalorder %s39, 1
      %s1047 = scalar_select %p1046, %s39, 1
      %s1048 = smul.addr %s1047, 4
      %s1049 = smul.addr %s1048, 4
      %s1050 = scalar_lea.vmem %s8, %s1049
      %p1051 = scmp.lt.s32.totalorder %s39, 1
      %s1052 = scalar_select %p1051, %s39, 1
      %s1053 = scalar_lea.vmem %s9, %s1052
      %p1054 = scmp.lt.s32.totalorder %s39, 1
      %s1055 = scalar_select %p1054, %s39, 1
      %s1056 = smul.addr %s1055, 4
      %s1057 = smul.addr %s1056, 4
      %s1058 = scalar_lea.vmem %s10, %s1057
      %p1059 = scmp.lt.s32.totalorder %s39, 1
      %s1060 = scalar_select %p1059, %s39, 1
      %s1061 = scalar_lea.vmem %s11, %s1060
      %p1062 = scmp.lt.s32.totalorder %s39, 1
      %s1063 = scalar_select %p1062, %s39, 1
      %s1064 = smul.addr %s1063, 4
      %s1065 = smul.addr %s1064, 4
      %s1066 = scalar_lea.vmem %s12, %s1065
      %p1067 = scmp.lt.s32.totalorder %s39, 1
      %s1068 = scalar_select %p1067, %s39, 1
      %s1069 = scalar_lea.vmem %s13, %s1068
      %p1070 = scmp.lt.s32.totalorder %s39, 1
      %s1071 = scalar_select %p1070, %s39, 1
      %s1072 = scalar_lea.vmem %s14, %s1071
      %p1073 = scmp.lt.s32.totalorder %s39, 1
      %s1074 = scalar_select %p1073, %s39, 1
      %s1075 = scalar_lea.vmem %s15, %s1074
      %p1076 = scmp.lt.s32.totalorder %s39, 1
      %s1077 = scalar_select %p1076, %s39, 1
      %s1078 = smul.addr %s1077, 4
      %s1079 = smul.addr %s1078, 4
      %s1080 = scalar_lea.vmem %s16, %s1079
      %p1081 = scmp.lt.s32.totalorder %s39, 1
      %s1082 = scalar_select %p1081, %s39, 1
      %s1083 = scalar_lea.vmem %s17, %s1082
      %p1084 = scmp.lt.s32.totalorder %s39, 1
      %s1085 = scalar_select %p1084, %s39, 1
      %s1086 = smul.addr %s1085, 8
      %s1087 = smul.addr %s1086, 4
      %s1088 = scalar_lea.vmem %s18, %s1087
      %p1089 = scmp.lt.s32.totalorder %s39, 1
      %s1090 = scalar_select %p1089, %s39, 1
      %s1091 = scalar_lea.vmem %s19, %s1090
      %p1092 = scmp.lt.s32.totalorder %s39, 1
      %s1093 = scalar_select %p1092, %s39, 1
      %s1094 = scalar_lea.vmem %s20, %s1093
      %p1095 = scmp.lt.s32.totalorder %s39, 1
      %s1096 = scalar_select %p1095, %s39, 1
      %s1097 = scalar_lea.vmem %s21, %s1096
      %s1098 = smul.u32 2, %s40
      %p1099 = scmp.lt.s32.totalorder %s39, 1
      %s1100 = scalar_select %p1099, %s39, 1
      %p1101 = scmp.lt.s32.totalorder %s1098, 1
      %s1102 = scalar_select %p1101, %s1098, 1
      %s1103 = smul.addr %s1100, 2
      %s1104 = sadd.s32 %s1102, %s1103
      %s1105 = smul.addr %s1104, 8
      %s1106 = scalar_lea.vmem %s22, %s1105
      %s1107 = smul.u32 2, %s40
      %s1108 = smul.u32 2, %s40
      %p1109 = scmp.lt.s32.totalorder %s39, 1
      %s1110 = scalar_select %p1109, %s39, 1
      %p1111 = scmp.lt.s32.totalorder %s1108, 1
      %s1112 = scalar_select %p1111, %s1108, 1
      %s1113 = smul.addr %s1110, 2
      %s1114 = sadd.s32 %s1112, %s1113
      %s1115 = smul.addr %s1114, 8
      %s1116 = scalar_lea.vmem %s23, %s1115
      %s1117 = smul.u32 2, %s40
      %v1119 = vld [vmem:[%s1016] sm:$0xff]
      %v1120 = vld [vmem:[%s1016 + $0x8] sm:$0xff]
      %v1121 = vld [vmem:[%s1028] sm:$0xf]
      %v1122 = vld [vmem:[%s1028 + $0x4] sm:$0xf]
      %v1123 = vld [vmem:[%s1028 + $0x8] sm:$0xf]
      %v1124 = vld [vmem:[%s1028 + $0xc] sm:$0xf]
      %v1125 = vpack.c.bf16 %v1120, %v1119
      %v1126 = vld [vmem:[%s1031] sm:$0x1]
      %v1128 = vperm.slane %v1126, 0
      %v1134 = vunpack.c.l.b16 %v1121
      %v1135 = vunpack.c.l.b16 %v1122
      %v1136 = vunpack.c.l.b16 %v1123
      %v1137 = vunpack.c.l.b16 %v1124
      %v1138 = vpack.c.b16 %v1135, %v1134
      %v1139 = vpack.c.b16 %v1137, %v1136
      %vm1142 = vcmask 261120
      %v1144 = vsel %vm1142, %v1125, 0
      %1146 = vmatpush.bf16.msra.mxu0 0
      %1147 = vmatpush.bf16.msra.mxu0 0
      %1148 = vmatpush.bf16.msra.mxu0 0
      %1149 = vmatpush.bf16.msra.mxu0 0
      %1150 = vmatpush.bf16.msra.mxu0 0
      %1151 = vmatpush.bf16.msra.mxu0 0
      %1152 = vmatpush.bf16.msra.mxu0 %v1139
      %1153 = vmatpush.bf16.msra.mxu0 %v1138
      %1154 = vmatmul.bf16.gmra.mxu0 %v1144
      %v1155 = vpop.f32.mrf.mxu0
      %v1156 = vadd.f32 %v1128, %v1155
      %v1157 = vpop.f32.mrf.mxu0
      %v1158 = vadd.f32 %v1128, %v1157
      %1159 = vdwg.mxu0
      %v1160 = vld [vmem:[%s1036] sm:$0xf]
      %v1161 = vld [vmem:[%s1036 + $0x4] sm:$0xf]
      %v1162 = vld [vmem:[%s1036 + $0x8] sm:$0xf]
      %v1163 = vld [vmem:[%s1036 + $0xc] sm:$0xf]
      %v1164 = vpack.c.bf16 %v1156, %v1156
      %v1165 = vpack.c.bf16 %v1158, %v1158
      %v1167 = vunpack.c.l.b16 %v1164
      %v1168 = vpack.c.b16 %v1167, %v1167
      %1169 = vrot.lane.b32.xlu0 %v1168, 96
      %v1170 = vpop.permute.xlu0 %1169
      %vm1171 = vcmask 64512
      %v1173 = vsel %vm1171, %v1164, 0
      %v1176 = vsel %vm1171, %v1170, 0
      %1178 = vmatpush.bf16.xpose.msra.mxu0 0
      %1179 = vmatpush.bf16.xpose.msra.mxu0 0
      %1180 = vmatpush.bf16.xpose.msra.mxu0 0
      %1181 = vmatpush.bf16.xpose.msra.mxu0 0
      %1182 = vmatpush.bf16.xpose.msra.mxu0 0
      %1183 = vmatpush.bf16.xpose.msra.mxu0 0
      %1184 = vmatpush.bf16.xpose.msra.mxu0 0
      %1185 = vmatpush.bf16.xpose.msra.mxu0 %v1176
      %1186 = vmatmul.bf16.gmra.mxu0 %v1173
      %v1187 = vpop.f32.mrf.mxu0
      %v1188 = vadd.f32 0.0, %v1187
      %v1189 = vpop.f32.mrf.mxu0
      %1190 = vdwg.mxu0
      %v1192 = vunpack.c.l.b16 %v1165
      %v1193 = vpack.c.b16 %v1192, %v1192
      %1194 = vrot.lane.b32.xlu0 %v1193, 96
      %v1195 = vpop.permute.xlu0 %1194
      %v1197 = vsel %vm1171, %v1165, 0
      %v1200 = vsel %vm1171, %v1195, 0
      %1202 = vmatpush.bf16.xpose.msra.mxu0 0
      %1203 = vmatpush.bf16.xpose.msra.mxu0 0
      %1204 = vmatpush.bf16.xpose.msra.mxu0 0
      %1205 = vmatpush.bf16.xpose.msra.mxu0 0
      %1206 = vmatpush.bf16.xpose.msra.mxu0 0
      %1207 = vmatpush.bf16.xpose.msra.mxu0 0
      %1208 = vmatpush.bf16.xpose.msra.mxu0 0
      %1209 = vmatpush.bf16.xpose.msra.mxu0 %v1200
      %1210 = vmatmul.bf16.gmra.mxu0 %v1197
      %v1211 = vpop.f32.mrf.mxu0
      %v1212 = vadd.f32 0.0, %v1211
      %v1213 = vpop.f32.mrf.mxu0
      %1214 = vdwg.mxu0
      %v1215 = vsel %vm1171, %v1188, -inf
      %1216 = vmax.xlane.f32.xlu0 %v1215
      %v1217 = vpop.xlane.xlu0 %1216
      %v1218 = vsel %vm1171, %v1212, -inf
      %1219 = vmax.xlane.f32.xlu0 %v1218
      %v1220 = vpop.xlane.xlu0 %1219
      %v1221 = vsub.f32 %v1188, %v1217
      %v1222 = vsub.f32 %v1212, %v1220
      %v1223 = vmul.f32 %v1221, 1.442695
      %v1224 = vpow.pop %v1223
      %v1225 = vmul.f32 %v1222, 1.442695
      %v1226 = vpow.pop %v1225
      %v1227 = vsel %vm1171, %v1224, 0.0
      %1228 = vadd.xlane.f32.xlu0 %v1227
      %v1229 = vpop.xlane.xlu0 %1228
      %v1230 = vsel %vm1171, %v1226, 0.0
      %1231 = vadd.xlane.f32.xlu0 %v1230
      %v1232 = vpop.xlane.xlu0 %1231
      %v1233 = vrcp.pop %v1229
      %v1234 = vrcp.pop %v1232
      %v1235 = vmul.f32 %v1224, %v1233
      %v1236 = vmul.f32 %v1226, %v1234
      %v1237 = vpack.c.bf16 %v1235, %v1235
      %v1238 = vpack.c.bf16 %v1236, %v1236
      %1239 = vrot.lane.b32.xlu0 %v1168, 64
      %v1240 = vpop.permute.xlu0 %1239
      %v1242 = vsel %vm1171, %v1237, 0
      %vm1244 = vcmask 1043456
      %v1246 = vsel %vm1244, %v1240, 0
      %1248 = vmatpush.bf16.msra.mxu0 0
      %1249 = vmatpush.bf16.msra.mxu0 0
      %1250 = vmatpush.bf16.msra.mxu0 0
      %1251 = vmatpush.bf16.msra.mxu0 0
      %1252 = vmatpush.bf16.msra.mxu0 0
      %1253 = vmatpush.bf16.msra.mxu0 0
      %1254 = vmatpush.bf16.msra.mxu0 0
      %1255 = vmatpush.bf16.msra.mxu0 %v1246
      %1256 = vmatmul.bf16.gmra.mxu0 %v1242
      %v1257 = vpop.f32.mrf.mxu0
      %v1258 = vadd.f32 0.0, %v1257
      %v1259 = vpop.f32.mrf.mxu0
      %1260 = vdwg.mxu0
      %1261 = vrot.lane.b32.xlu0 %v1193, 64
      %v1262 = vpop.permute.xlu0 %1261
      %v1264 = vsel %vm1171, %v1238, 0
      %v1267 = vsel %vm1244, %v1262, 0
      %1269 = vmatpush.bf16.msra.mxu0 0
      %1270 = vmatpush.bf16.msra.mxu0 0
      %1271 = vmatpush.bf16.msra.mxu0 0
      %1272 = vmatpush.bf16.msra.mxu0 0
      %1273 = vmatpush.bf16.msra.mxu0 0
      %1274 = vmatpush.bf16.msra.mxu0 0
      %1275 = vmatpush.bf16.msra.mxu0 0
      %1276 = vmatpush.bf16.msra.mxu0 %v1267
      %1277 = vmatmul.bf16.gmra.mxu0 %v1264
      %v1278 = vpop.f32.mrf.mxu0
      %v1279 = vadd.f32 0.0, %v1278
      %v1280 = vpop.f32.mrf.mxu0
      %1281 = vdwg.mxu0
      %v1282 = vpack.c.bf16 %v1279, %v1258
      %1283 = vrot.lane.b32.xlu0 %v1168, 120
      %v1284 = vpop.permute.xlu0 %1283
      %1285 = vrot.lane.b32.xlu0 %v1168, 88
      %v1286 = vpop.permute.xlu0 %1285
      %v1288 = vsel %vm1171, %v1284, 0
      %v1291 = vsel %vm1171, %v1286, 0
      %1293 = vmatpush.bf16.xpose.msra.mxu0 0
      %1294 = vmatpush.bf16.xpose.msra.mxu0 0
      %1295 = vmatpush.bf16.xpose.msra.mxu0 0
      %1296 = vmatpush.bf16.xpose.msra.mxu0 0
      %1297 = vmatpush.bf16.xpose.msra.mxu0 0
      %1298 = vmatpush.bf16.xpose.msra.mxu0 0
      %1299 = vmatpush.bf16.xpose.msra.mxu0 0
      %1300 = vmatpush.bf16.xpose.msra.mxu0 %v1291
      %1301 = vmatmul.bf16.gmra.mxu0 %v1288
      %v1302 = vpop.f32.mrf.mxu0
      %v1303 = vadd.f32 0.0, %v1302
      %v1304 = vpop.f32.mrf.mxu0
      %1305 = vdwg.mxu0
      %1306 = vrot.lane.b32.xlu0 %v1193, 120
      %v1307 = vpop.permute.xlu0 %1306
      %1308 = vrot.lane.b32.xlu0 %v1193, 88
      %v1309 = vpop.permute.xlu0 %1308
      %v1311 = vsel %vm1171, %v1307, 0
      %v1314 = vsel %vm1171, %v1309, 0
      %1316 = vmatpush.bf16.xpose.msra.mxu0 0
      %1317 = vmatpush.bf16.xpose.msra.mxu0 0
      %1318 = vmatpush.bf16.xpose.msra.mxu0 0
      %1319 = vmatpush.bf16.xpose.msra.mxu0 0
      %1320 = vmatpush.bf16.xpose.msra.mxu0 0
      %1321 = vmatpush.bf16.xpose.msra.mxu0 0
      %1322 = vmatpush.bf16.xpose.msra.mxu0 0
      %1323 = vmatpush.bf16.xpose.msra.mxu0 %v1314
      %1324 = vmatmul.bf16.gmra.mxu0 %v1311
      %v1325 = vpop.f32.mrf.mxu0
      %v1326 = vadd.f32 0.0, %v1325
      %v1327 = vpop.f32.mrf.mxu0
      %1328 = vdwg.mxu0
      %v1329 = vsel %vm1171, %v1303, -inf
      %1330 = vmax.xlane.f32.xlu0 %v1329
      %v1331 = vpop.xlane.xlu0 %1330
      %v1332 = vsel %vm1171, %v1326, -inf
      %1333 = vmax.xlane.f32.xlu0 %v1332
      %v1334 = vpop.xlane.xlu0 %1333
      %v1335 = vsub.f32 %v1303, %v1331
      %v1336 = vsub.f32 %v1326, %v1334
      %v1337 = vmul.f32 %v1335, 1.442695
      %v1338 = vpow.pop %v1337
      %v1339 = vmul.f32 %v1336, 1.442695
      %v1340 = vpow.pop %v1339
      %v1341 = vsel %vm1171, %v1338, 0.0
      %1342 = vadd.xlane.f32.xlu0 %v1341
      %v1343 = vpop.xlane.xlu0 %1342
      %v1344 = vsel %vm1171, %v1340, 0.0
      %1345 = vadd.xlane.f32.xlu0 %v1344
      %v1346 = vpop.xlane.xlu0 %1345
      %v1347 = vrcp.pop %v1343
      %v1348 = vrcp.pop %v1346
      %v1349 = vmul.f32 %v1338, %v1347
      %v1350 = vmul.f32 %v1340, %v1348
      %v1351 = vpack.c.bf16 %v1349, %v1349
      %v1352 = vpack.c.bf16 %v1350, %v1350
      %1353 = vrot.lane.b32.xlu0 %v1168, 56
      %v1354 = vpop.permute.xlu0 %1353
      %v1356 = vsel %vm1171, %v1351, 0
      %v1359 = vsel %vm1244, %v1354, 0
      %1361 = vmatpush.bf16.msra.mxu0 0
      %1362 = vmatpush.bf16.msra.mxu0 0
      %1363 = vmatpush.bf16.msra.mxu0 0
      %1364 = vmatpush.bf16.msra.mxu0 0
      %1365 = vmatpush.bf16.msra.mxu0 0
      %1366 = vmatpush.bf16.msra.mxu0 0
      %1367 = vmatpush.bf16.msra.mxu0 0
      %1368 = vmatpush.bf16.msra.mxu0 %v1359
      %1369 = vmatmul.bf16.gmra.mxu0 %v1356
      %v1370 = vpop.f32.mrf.mxu0
      %v1371 = vadd.f32 0.0, %v1370
      %v1372 = vpop.f32.mrf.mxu0
      %1373 = vdwg.mxu0
      %1374 = vrot.lane.b32.xlu0 %v1193, 56
      %v1375 = vpop.permute.xlu0 %1374
      %v1377 = vsel %vm1171, %v1352, 0
      %v1380 = vsel %vm1244, %v1375, 0
      %1382 = vmatpush.bf16.msra.mxu0 0
      %1383 = vmatpush.bf16.msra.mxu0 0
      %1384 = vmatpush.bf16.msra.mxu0 0
      %1385 = vmatpush.bf16.msra.mxu0 0
      %1386 = vmatpush.bf16.msra.mxu0 0
      %1387 = vmatpush.bf16.msra.mxu0 0
      %1388 = vmatpush.bf16.msra.mxu0 0
      %1389 = vmatpush.bf16.msra.mxu0 %v1380
      %1390 = vmatmul.bf16.gmra.mxu0 %v1377
      %v1391 = vpop.f32.mrf.mxu0
      %v1392 = vadd.f32 0.0, %v1391
      %v1393 = vpop.f32.mrf.mxu0
      %1394 = vdwg.mxu0
      %v1395 = vpack.c.bf16 %v1392, %v1371
      %v1397 = vsel %vm1171, %v1395, 0
      %v1400 = vsel %vm1244, %v1161, 0
      %1402 = vmatpush.bf16.msra.mxu0 0
      %1403 = vmatpush.bf16.msra.mxu0 0
      %1404 = vmatpush.bf16.msra.mxu0 0
      %1405 = vmatpush.bf16.msra.mxu0 0
      %1406 = vmatpush.bf16.msra.mxu0 0
      %1407 = vmatpush.bf16.msra.mxu0 0
      %1408 = vmatpush.bf16.msra.mxu0 0
      %1409 = vmatpush.bf16.msra.mxu0 %v1400
      %1410 = vmatmul.bf16.gmra.mxu0 %v1397
      %v1411 = vpop.f32.mrf.mxu0
      %v1412 = vadd.f32 0.0, %v1411
      %v1413 = vpop.f32.mrf.mxu0
      %v1414 = vadd.f32 0.0, %v1413
      %1415 = vdwg.mxu0
      %v1417 = vsel %vm1171, %v1282, 0
      %v1420 = vsel %vm1244, %v1160, 0
      %1422 = vmatpush.bf16.msra.mxu0 0
      %1423 = vmatpush.bf16.msra.mxu0 0
      %1424 = vmatpush.bf16.msra.mxu0 0
      %1425 = vmatpush.bf16.msra.mxu0 0
      %1426 = vmatpush.bf16.msra.mxu0 0
      %1427 = vmatpush.bf16.msra.mxu0 0
      %1428 = vmatpush.bf16.msra.mxu0 0
      %1429 = vmatpush.bf16.msra.mxu0 %v1420
      %1430 = vmatmul.bf16.gmra.mxu0 %v1417
      %v1431 = vpop.f32.mrf.mxu0
      %v1432 = vadd.f32 %v1412, %v1431
      %v1433 = vpop.f32.mrf.mxu0
      %v1434 = vadd.f32 %v1414, %v1433
      %1435 = vdwg.mxu0
      %1436 = vrot.lane.b32.xlu0 %v1168, 112
      %v1437 = vpop.permute.xlu0 %1436
      %1438 = vrot.lane.b32.xlu0 %v1168, 80
      %v1439 = vpop.permute.xlu0 %1438
      %v1441 = vsel %vm1171, %v1437, 0
      %v1444 = vsel %vm1171, %v1439, 0
      %1446 = vmatpush.bf16.xpose.msra.mxu0 0
      %1447 = vmatpush.bf16.xpose.msra.mxu0 0
      %1448 = vmatpush.bf16.xpose.msra.mxu0 0
      %1449 = vmatpush.bf16.xpose.msra.mxu0 0
      %1450 = vmatpush.bf16.xpose.msra.mxu0 0
      %1451 = vmatpush.bf16.xpose.msra.mxu0 0
      %1452 = vmatpush.bf16.xpose.msra.mxu0 0
      %1453 = vmatpush.bf16.xpose.msra.mxu0 %v1444
      %1454 = vmatmul.bf16.gmra.mxu0 %v1441
      %v1455 = vpop.f32.mrf.mxu0
      %v1456 = vadd.f32 0.0, %v1455
      %v1457 = vpop.f32.mrf.mxu0
      %1458 = vdwg.mxu0
      %1459 = vrot.lane.b32.xlu0 %v1193, 112
      %v1460 = vpop.permute.xlu0 %1459
      %1461 = vrot.lane.b32.xlu0 %v1193, 80
      %v1462 = vpop.permute.xlu0 %1461
      %v1464 = vsel %vm1171, %v1460, 0
      %v1467 = vsel %vm1171, %v1462, 0
      %1469 = vmatpush.bf16.xpose.msra.mxu0 0
      %1470 = vmatpush.bf16.xpose.msra.mxu0 0
      %1471 = vmatpush.bf16.xpose.msra.mxu0 0
      %1472 = vmatpush.bf16.xpose.msra.mxu0 0
      %1473 = vmatpush.bf16.xpose.msra.mxu0 0
      %1474 = vmatpush.bf16.xpose.msra.mxu0 0
      %1475 = vmatpush.bf16.xpose.msra.mxu0 0
      %1476 = vmatpush.bf16.xpose.msra.mxu0 %v1467
      %1477 = vmatmul.bf16.gmra.mxu0 %v1464
      %v1478 = vpop.f32.mrf.mxu0
      %v1479 = vadd.f32 0.0, %v1478
      %v1480 = vpop.f32.mrf.mxu0
      %1481 = vdwg.mxu0
      %v1482 = vsel %vm1171, %v1456, -inf
      %1483 = vmax.xlane.f32.xlu0 %v1482
      %v1484 = vpop.xlane.xlu0 %1483
      %v1485 = vsel %vm1171, %v1479, -inf
      %1486 = vmax.xlane.f32.xlu0 %v1485
      %v1487 = vpop.xlane.xlu0 %1486
      %v1488 = vsub.f32 %v1456, %v1484
      %v1489 = vsub.f32 %v1479, %v1487
      %v1490 = vmul.f32 %v1488, 1.442695
      %v1491 = vpow.pop %v1490
      %v1492 = vmul.f32 %v1489, 1.442695
      %v1493 = vpow.pop %v1492
      %v1494 = vsel %vm1171, %v1491, 0.0
      %1495 = vadd.xlane.f32.xlu0 %v1494
      %v1496 = vpop.xlane.xlu0 %1495
      %v1497 = vsel %vm1171, %v1493, 0.0
      %1498 = vadd.xlane.f32.xlu0 %v1497
      %v1499 = vpop.xlane.xlu0 %1498
      %v1500 = vrcp.pop %v1496
      %v1501 = vrcp.pop %v1499
      %v1502 = vmul.f32 %v1491, %v1500
      %v1503 = vmul.f32 %v1493, %v1501
      %v1504 = vpack.c.bf16 %v1502, %v1502
      %v1505 = vpack.c.bf16 %v1503, %v1503
      %1506 = vrot.lane.b32.xlu0 %v1168, 48
      %v1507 = vpop.permute.xlu0 %1506
      %v1509 = vsel %vm1171, %v1504, 0
      %v1512 = vsel %vm1244, %v1507, 0
      %1514 = vmatpush.bf16.msra.mxu0 0
      %1515 = vmatpush.bf16.msra.mxu0 0
      %1516 = vmatpush.bf16.msra.mxu0 0
      %1517 = vmatpush.bf16.msra.mxu0 0
      %1518 = vmatpush.bf16.msra.mxu0 0
      %1519 = vmatpush.bf16.msra.mxu0 0
      %1520 = vmatpush.bf16.msra.mxu0 0
      %1521 = vmatpush.bf16.msra.mxu0 %v1512
      %1522 = vmatmul.bf16.gmra.mxu0 %v1509
      %v1523 = vpop.f32.mrf.mxu0
      %v1524 = vadd.f32 0.0, %v1523
      %v1525 = vpop.f32.mrf.mxu0
      %1526 = vdwg.mxu0
      %1527 = vrot.lane.b32.xlu0 %v1193, 48
      %v1528 = vpop.permute.xlu0 %1527
      %v1530 = vsel %vm1171, %v1505, 0
      %v1533 = vsel %vm1244, %v1528, 0
      %1535 = vmatpush.bf16.msra.mxu0 0
      %1536 = vmatpush.bf16.msra.mxu0 0
      %1537 = vmatpush.bf16.msra.mxu0 0
      %1538 = vmatpush.bf16.msra.mxu0 0
      %1539 = vmatpush.bf16.msra.mxu0 0
      %1540 = vmatpush.bf16.msra.mxu0 0
      %1541 = vmatpush.bf16.msra.mxu0 0
      %1542 = vmatpush.bf16.msra.mxu0 %v1533
      %1543 = vmatmul.bf16.gmra.mxu0 %v1530
      %v1544 = vpop.f32.mrf.mxu0
      %v1545 = vadd.f32 0.0, %v1544
      %v1546 = vpop.f32.mrf.mxu0
      %1547 = vdwg.mxu0
      %v1548 = vpack.c.bf16 %v1545, %v1524
      %v1550 = vsel %vm1171, %v1548, 0
      %v1553 = vsel %vm1244, %v1162, 0
      %1555 = vmatpush.bf16.msra.mxu0 0
      %1556 = vmatpush.bf16.msra.mxu0 0
      %1557 = vmatpush.bf16.msra.mxu0 0
      %1558 = vmatpush.bf16.msra.mxu0 0
      %1559 = vmatpush.bf16.msra.mxu0 0
      %1560 = vmatpush.bf16.msra.mxu0 0
      %1561 = vmatpush.bf16.msra.mxu0 0
      %1562 = vmatpush.bf16.msra.mxu0 %v1553
      %1563 = vmatmul.bf16.gmra.mxu0 %v1550
      %v1564 = vpop.f32.mrf.mxu0
      %v1565 = vadd.f32 0.0, %v1564
      %v1566 = vpop.f32.mrf.mxu0
      %v1567 = vadd.f32 0.0, %v1566
      %1568 = vdwg.mxu0
      %v1569 = vadd.f32 %v1432, %v1565
      %v1570 = vadd.f32 %v1434, %v1567
      %1571 = vrot.lane.b32.xlu0 %v1168, 104
      %v1572 = vpop.permute.xlu0 %1571
      %1573 = vrot.lane.b32.xlu0 %v1168, 72
      %v1574 = vpop.permute.xlu0 %1573
      %v1576 = vsel %vm1171, %v1572, 0
      %v1579 = vsel %vm1171, %v1574, 0
      %1581 = vmatpush.bf16.xpose.msra.mxu0 0
      %1582 = vmatpush.bf16.xpose.msra.mxu0 0
      %1583 = vmatpush.bf16.xpose.msra.mxu0 0
      %1584 = vmatpush.bf16.xpose.msra.mxu0 0
      %1585 = vmatpush.bf16.xpose.msra.mxu0 0
      %1586 = vmatpush.bf16.xpose.msra.mxu0 0
      %1587 = vmatpush.bf16.xpose.msra.mxu0 0
      %1588 = vmatpush.bf16.xpose.msra.mxu0 %v1579
      %1589 = vmatmul.bf16.gmra.mxu0 %v1576
      %v1590 = vpop.f32.mrf.mxu0
      %v1591 = vadd.f32 0.0, %v1590
      %v1592 = vpop.f32.mrf.mxu0
      %1593 = vdwg.mxu0
      %1594 = vrot.lane.b32.xlu0 %v1193, 104
      %v1595 = vpop.permute.xlu0 %1594
      %1596 = vrot.lane.b32.xlu0 %v1193, 72
      %v1597 = vpop.permute.xlu0 %1596
      %v1599 = vsel %vm1171, %v1595, 0
      %v1602 = vsel %vm1171, %v1597, 0
      %1604 = vmatpush.bf16.xpose.msra.mxu0 0
      %1605 = vmatpush.bf16.xpose.msra.mxu0 0
      %1606 = vmatpush.bf16.xpose.msra.mxu0 0
      %1607 = vmatpush.bf16.xpose.msra.mxu0 0
      %1608 = vmatpush.bf16.xpose.msra.mxu0 0
      %1609 = vmatpush.bf16.xpose.msra.mxu0 0
      %1610 = vmatpush.bf16.xpose.msra.mxu0 0
      %1611 = vmatpush.bf16.xpose.msra.mxu0 %v1602
      %1612 = vmatmul.bf16.gmra.mxu0 %v1599
      %v1613 = vpop.f32.mrf.mxu0
      %v1614 = vadd.f32 0.0, %v1613
      %v1615 = vpop.f32.mrf.mxu0
      %1616 = vdwg.mxu0
      %v1617 = vsel %vm1171, %v1591, -inf
      %1618 = vmax.xlane.f32.xlu0 %v1617
      %v1619 = vpop.xlane.xlu0 %1618
      %v1620 = vsel %vm1171, %v1614, -inf
      %1621 = vmax.xlane.f32.xlu0 %v1620
      %v1622 = vpop.xlane.xlu0 %1621
      %v1623 = vsub.f32 %v1591, %v1619
      %v1624 = vsub.f32 %v1614, %v1622
      %v1625 = vmul.f32 %v1623, 1.442695
      %v1626 = vpow.pop %v1625
      %v1627 = vmul.f32 %v1624, 1.442695
      %v1628 = vpow.pop %v1627
      %v1629 = vsel %vm1171, %v1626, 0.0
      %1630 = vadd.xlane.f32.xlu0 %v1629
      %v1631 = vpop.xlane.xlu0 %1630
      %v1632 = vsel %vm1171, %v1628, 0.0
      %1633 = vadd.xlane.f32.xlu0 %v1632
      %v1634 = vpop.xlane.xlu0 %1633
      %v1635 = vrcp.pop %v1631
      %v1636 = vrcp.pop %v1634
      %v1637 = vmul.f32 %v1626, %v1635
      %v1638 = vmul.f32 %v1628, %v1636
      %v1639 = vpack.c.bf16 %v1637, %v1637
      %v1640 = vpack.c.bf16 %v1638, %v1638
      %1641 = vrot.lane.b32.xlu0 %v1168, 40
      %v1642 = vpop.permute.xlu0 %1641
      %v1644 = vsel %vm1171, %v1639, 0
      %v1647 = vsel %vm1244, %v1642, 0
      %1649 = vmatpush.bf16.msra.mxu0 0
      %1650 = vmatpush.bf16.msra.mxu0 0
      %1651 = vmatpush.bf16.msra.mxu0 0
      %1652 = vmatpush.bf16.msra.mxu0 0
      %1653 = vmatpush.bf16.msra.mxu0 0
      %1654 = vmatpush.bf16.msra.mxu0 0
      %1655 = vmatpush.bf16.msra.mxu0 0
      %1656 = vmatpush.bf16.msra.mxu0 %v1647
      %1657 = vmatmul.bf16.gmra.mxu0 %v1644
      %v1658 = vpop.f32.mrf.mxu0
      %v1659 = vadd.f32 0.0, %v1658
      %v1660 = vpop.f32.mrf.mxu0
      %1661 = vdwg.mxu0
      %1662 = vrot.lane.b32.xlu0 %v1193, 40
      %v1663 = vpop.permute.xlu0 %1662
      %v1665 = vsel %vm1171, %v1640, 0
      %v1668 = vsel %vm1244, %v1663, 0
      %1670 = vmatpush.bf16.msra.mxu0 0
      %1671 = vmatpush.bf16.msra.mxu0 0
      %1672 = vmatpush.bf16.msra.mxu0 0
      %1673 = vmatpush.bf16.msra.mxu0 0
      %1674 = vmatpush.bf16.msra.mxu0 0
      %1675 = vmatpush.bf16.msra.mxu0 0
      %1676 = vmatpush.bf16.msra.mxu0 0
      %1677 = vmatpush.bf16.msra.mxu0 %v1668
      %1678 = vmatmul.bf16.gmra.mxu0 %v1665
      %v1679 = vpop.f32.mrf.mxu0
      %v1680 = vadd.f32 0.0, %v1679
      %v1681 = vpop.f32.mrf.mxu0
      %1682 = vdwg.mxu0
      %v1683 = vpack.c.bf16 %v1680, %v1659
      %v1685 = vsel %vm1171, %v1683, 0
      %v1688 = vsel %vm1244, %v1163, 0
      %1690 = vmatpush.bf16.msra.mxu0 0
      %1691 = vmatpush.bf16.msra.mxu0 0
      %1692 = vmatpush.bf16.msra.mxu0 0
      %1693 = vmatpush.bf16.msra.mxu0 0
      %1694 = vmatpush.bf16.msra.mxu0 0
      %1695 = vmatpush.bf16.msra.mxu0 0
      %1696 = vmatpush.bf16.msra.mxu0 0
      %1697 = vmatpush.bf16.msra.mxu0 %v1688
      %1698 = vmatmul.bf16.gmra.mxu0 %v1685
      %v1699 = vpop.f32.mrf.mxu0
      %v1700 = vadd.f32 0.0, %v1699
      %v1701 = vpop.f32.mrf.mxu0
      %v1702 = vadd.f32 0.0, %v1701
      %1703 = vdwg.mxu0
      %v1704 = vadd.f32 %v1569, %v1700
      %v1705 = vadd.f32 %v1570, %v1702
      %v1706 = vld [vmem:[%s1039] sm:$0x1]
      %v1708 = vperm.slane %v1706, 0
      %v1710 = vadd.f32 %v1704, %v1708
      %v1711 = vadd.f32 %v1705, %v1708
      %v1712 = vadd.f32 %v1710, %v1119
      %v1713 = vadd.f32 %v1711, %v1120
      %v1714 = vld [vmem:[%s1042] sm:$0x1]
      %v1715 = vld [vmem:[%s1045] sm:$0x1]
      %v1716 = vsel %vm1142, %v1712, 0.0
      %1717 = vadd.xlane.f32.xlu0 %v1716
      %v1718 = vpop.xlane.xlu0 %1717
      %v1719 = vsel %vm1142, %v1713, 0.0
      %1720 = vadd.xlane.f32.xlu0 %v1719
      %v1721 = vpop.xlane.xlu0 %1720
      %v1722 = vrcp.pop 32.0
      %v1723 = vmul.f32 32.0, %v1722
      %v1724 = vsub.f32 1.0, %v1723
      %v1725 = vmul.f32 %v1722, %v1724
      %v1726 = vadd.f32 %v1722, %v1725
      %vm1727 = vweird.f32 %v1722
      %v1728 = vsel %vm1727, %v1722, %v1726
      %v1729 = vmul.f32 %v1718, %v1728
      %v1730 = vmul.f32 %v1721, %v1728
      %v1731 = vsub.f32 %v1712, %v1729
      %v1732 = vsub.f32 %v1713, %v1730
      %v1733 = vmul.f32 %v1731, %v1731
      %v1734 = vmul.f32 %v1732, %v1732
      %v1735 = vsel %vm1142, %v1733, 0.0
      %1736 = vadd.xlane.f32.xlu0 %v1735
      %v1737 = vpop.xlane.xlu0 %1736
      %v1738 = vsel %vm1142, %v1734, 0.0
      %1739 = vadd.xlane.f32.xlu0 %v1738
      %v1740 = vpop.xlane.xlu0 %1739
      %v1741 = vmul.f32 %v1737, %v1728
      %v1742 = vmul.f32 %v1740, %v1728
      %v1743 = vadd.f32 %v1741, 1e-05
      %v1744 = vadd.f32 %v1742, 1e-05
      %v1745 = vrsqrt.pop %v1743
      %v1746 = vmul.f32 %v1745, %v1743
      %v1747 = vmul.f32 %v1746, %v1745
      %v1748 = vmul.f32 0.5, %v1747
      %v1749 = vsub.f32 1.5, %v1748
      %v1750 = vmul.f32 %v1745, %v1749
      %vm1751 = vweird.f32 %v1743
      %vm1752 = vweird.f32 %v1745
      %vm1753 = vmor %vm1751, %vm1752
      %v1754 = vsel %vm1753, %v1745, %v1750
      %v1755 = vrsqrt.pop %v1744
      %v1756 = vmul.f32 %v1755, %v1744
      %v1757 = vmul.f32 %v1756, %v1755
      %v1758 = vmul.f32 0.5, %v1757
      %v1759 = vsub.f32 1.5, %v1758
      %v1760 = vmul.f32 %v1755, %v1759
      %vm1761 = vweird.f32 %v1744
      %vm1762 = vweird.f32 %v1755
      %vm1763 = vmor %vm1761, %vm1762
      %v1764 = vsel %vm1763, %v1755, %v1760
      %v1765 = vmul.f32 %v1731, %v1754
      %v1766 = vmul.f32 %v1732, %v1764
      %v1768 = vperm.slane %v1714, 0
      %v1770 = vmul.f32 %v1765, %v1768
      %v1771 = vmul.f32 %v1766, %v1768
      %v1773 = vperm.slane %v1715, 0
      %v1775 = vadd.f32 %v1770, %v1773
      %v1776 = vadd.f32 %v1771, %v1773
      %v1777 = vld [vmem:[%s1022] sm:$0xff]
      %v1778 = vld [vmem:[%s1022 + $0x8] sm:$0xff]
      %v1779 = vld [vmem:[%s1022 + $0x10] sm:$0xff]
      %v1780 = vld [vmem:[%s1022 + $0x18] sm:$0xff]
      %v1781 = vld [vmem:[%s1022 + $0x20] sm:$0xff]
      %v1782 = vld [vmem:[%s1022 + $0x28] sm:$0xff]
      %v1783 = vld [vmem:[%s1022 + $0x30] sm:$0xff]
      %v1784 = vld [vmem:[%s1022 + $0x38] sm:$0xff]
      %v1785 = vld [vmem:[%s1022 + $0x40] sm:$0xff]
      %v1786 = vld [vmem:[%s1022 + $0x48] sm:$0xff]
      %v1787 = vld [vmem:[%s1022 + $0x50] sm:$0xff]
      %v1788 = vld [vmem:[%s1022 + $0x58] sm:$0xff]
      %v1789 = vld [vmem:[%s1022 + $0x60] sm:$0xff]
      %v1790 = vld [vmem:[%s1022 + $0x68] sm:$0xff]
      %v1791 = vld [vmem:[%s1022 + $0x70] sm:$0xff]
      %v1792 = vld [vmem:[%s1022 + $0x78] sm:$0xff]
      %v1793 = vld [vmem:[%s1022 + $0x80] sm:$0xff]
      %v1794 = vld [vmem:[%s1022 + $0x88] sm:$0xff]
      %v1795 = vld [vmem:[%s1022 + $0x90] sm:$0xff]
      %v1796 = vld [vmem:[%s1022 + $0x98] sm:$0xff]
      %v1797 = vld [vmem:[%s1022 + $0xa0] sm:$0xff]
      %v1798 = vld [vmem:[%s1022 + $0xa8] sm:$0xff]
      %v1799 = vld [vmem:[%s1022 + $0xb0] sm:$0xff]
      %v1800 = vld [vmem:[%s1022 + $0xb8] sm:$0xff]
      %v1801 = vld [vmem:[%s1022 + $0xc0] sm:$0xff]
      %v1802 = vld [vmem:[%s1022 + $0xc8] sm:$0xff]
      %v1803 = vld [vmem:[%s1022 + $0xd0] sm:$0xff]
      %v1804 = vld [vmem:[%s1022 + $0xd8] sm:$0xff]
      %v1805 = vld [vmem:[%s1022 + $0xe0] sm:$0xff]
      %v1806 = vld [vmem:[%s1022 + $0xe8] sm:$0xff]
      %v1807 = vld [vmem:[%s1022 + $0xf0] sm:$0xff]
      %v1808 = vld [vmem:[%s1022 + $0xf8] sm:$0xff]
      %v1809 = vld [vmem:[%s1050] sm:$0xf]
      %v1810 = vld [vmem:[%s1050 + $0x4] sm:$0xf]
      %v1811 = vld [vmem:[%s1050 + $0x8] sm:$0xf]
      %v1812 = vld [vmem:[%s1050 + $0xc] sm:$0xf]
      %v1813 = vpack.c.bf16 %v1776, %v1775
      %v1814 = vld [vmem:[%s1053] sm:$0x1]
      %v1816 = vperm.slane %v1814, 0
      %v1822 = vunpack.c.l.b16 %v1809
      %v1823 = vunpack.c.l.b16 %v1810
      %v1824 = vunpack.c.l.b16 %v1811
      %v1825 = vunpack.c.l.b16 %v1812
      %v1826 = vpack.c.b16 %v1823, %v1822
      %v1827 = vpack.c.b16 %v1825, %v1824
      %v1831 = vsel %vm1142, %v1813, 0
      %1833 = vmatpush.bf16.msra.mxu0 0
      %1834 = vmatpush.bf16.msra.mxu0 0
      %1835 = vmatpush.bf16.msra.mxu0 0
      %1836 = vmatpush.bf16.msra.mxu0 0
      %1837 = vmatpush.bf16.msra.mxu0 0
      %1838 = vmatpush.bf16.msra.mxu0 0
      %1839 = vmatpush.bf16.msra.mxu0 %v1827
      %1840 = vmatpush.bf16.msra.mxu0 %v1826
      %1841 = vmatmul.bf16.gmra.mxu0 %v1831
      %v1842 = vpop.f32.mrf.mxu0
      %v1843 = vadd.f32 %v1816, %v1842
      %v1844 = vpop.f32.mrf.mxu0
      %v1845 = vadd.f32 %v1816, %v1844
      %1846 = vdwg.mxu0
      %v1847 = vld [vmem:[%s1058] sm:$0xf]
      %v1848 = vld [vmem:[%s1058 + $0x4] sm:$0xf]
      %v1849 = vld [vmem:[%s1058 + $0x8] sm:$0xf]
      %v1850 = vld [vmem:[%s1058 + $0xc] sm:$0xf]
      %v1851 = vpack.c.bf16 %v1778, %v1777
      %v1852 = vpack.c.bf16 %v1780, %v1779
      %v1853 = vpack.c.bf16 %v1782, %v1781
      %v1854 = vpack.c.bf16 %v1784, %v1783
      %v1855 = vpack.c.bf16 %v1786, %v1785
      %v1856 = vpack.c.bf16 %v1788, %v1787
      %v1857 = vpack.c.bf16 %v1790, %v1789
      %v1858 = vpack.c.bf16 %v1792, %v1791
      %v1859 = vpack.c.bf16 %v1794, %v1793
      %v1860 = vpack.c.bf16 %v1796, %v1795
      %v1861 = vpack.c.bf16 %v1798, %v1797
      %v1862 = vpack.c.bf16 %v1800, %v1799
      %v1863 = vpack.c.bf16 %v1802, %v1801
      %v1864 = vpack.c.bf16 %v1804, %v1803
      %v1865 = vpack.c.bf16 %v1806, %v1805
      %v1866 = vpack.c.bf16 %v1808, %v1807
      %v1867 = vld [vmem:[%s1061] sm:$0x1]
      %v1869 = vperm.slane %v1867, 0
      %v1875 = vunpack.c.l.b16 %v1847
      %v1876 = vunpack.c.l.b16 %v1848
      %v1877 = vunpack.c.l.b16 %v1849
      %v1878 = vunpack.c.l.b16 %v1850
      %v1879 = vpack.c.b16 %v1876, %v1875
      %v1880 = vpack.c.b16 %v1878, %v1877
      %v1884 = vsel %vm1142, %v1851, 0
      %v1887 = vsel %vm1142, %v1852, 0
      %v1890 = vsel %vm1142, %v1853, 0
      %v1893 = vsel %vm1142, %v1854, 0
      %v1896 = vsel %vm1142, %v1855, 0
      %v1899 = vsel %vm1142, %v1856, 0
      %v1902 = vsel %vm1142, %v1857, 0
      %v1905 = vsel %vm1142, %v1858, 0
      %v1908 = vsel %vm1142, %v1859, 0
      %v1911 = vsel %vm1142, %v1860, 0
      %v1914 = vsel %vm1142, %v1861, 0
      %v1917 = vsel %vm1142, %v1862, 0
      %v1920 = vsel %vm1142, %v1863, 0
      %v1923 = vsel %vm1142, %v1864, 0
      %v1926 = vsel %vm1142, %v1865, 0
      %v1929 = vsel %vm1142, %v1866, 0
      %1931 = vmatpush.bf16.msra.mxu0 0
      %1932 = vmatpush.bf16.msra.mxu0 0
      %1933 = vmatpush.bf16.msra.mxu0 0
      %1934 = vmatpush.bf16.msra.mxu0 0
      %1935 = vmatpush.bf16.msra.mxu0 0
      %1936 = vmatpush.bf16.msra.mxu0 0
      %1937 = vmatpush.bf16.msra.mxu0 %v1880
      %1938 = vmatpush.bf16.msra.mxu0 %v1879
      %1939 = vmatmul.bf16.gmra.mxu0 %v1884
      %v1940 = vpop.f32.mrf.mxu0
      %v1941 = vadd.f32 %v1869, %v1940
      %v1942 = vpop.f32.mrf.mxu0
      %v1943 = vadd.f32 %v1869, %v1942
      %1944 = vmatmul.bf16.gmra.mxu0 %v1887
      %v1945 = vpop.f32.mrf.mxu0
      %v1946 = vadd.f32 %v1869, %v1945
      %v1947 = vpop.f32.mrf.mxu0
      %v1948 = vadd.f32 %v1869, %v1947
      %1949 = vmatmul.bf16.gmra.mxu0 %v1890
      %v1950 = vpop.f32.mrf.mxu0
      %v1951 = vadd.f32 %v1869, %v1950
      %v1952 = vpop.f32.mrf.mxu0
      %v1953 = vadd.f32 %v1869, %v1952
      %1954 = vmatmul.bf16.gmra.mxu0 %v1893
      %v1955 = vpop.f32.mrf.mxu0
      %v1956 = vadd.f32 %v1869, %v1955
      %v1957 = vpop.f32.mrf.mxu0
      %v1958 = vadd.f32 %v1869, %v1957
      %1959 = vmatmul.bf16.gmra.mxu0 %v1896
      %v1960 = vpop.f32.mrf.mxu0
      %v1961 = vadd.f32 %v1869, %v1960
      %v1962 = vpop.f32.mrf.mxu0
      %v1963 = vadd.f32 %v1869, %v1962
      %1964 = vmatmul.bf16.gmra.mxu0 %v1899
      %v1965 = vpop.f32.mrf.mxu0
      %v1966 = vadd.f32 %v1869, %v1965
      %v1967 = vpop.f32.mrf.mxu0
      %v1968 = vadd.f32 %v1869, %v1967
      %1969 = vmatmul.bf16.gmra.mxu0 %v1902
      %v1970 = vpop.f32.mrf.mxu0
      %v1971 = vadd.f32 %v1869, %v1970
      %v1972 = vpop.f32.mrf.mxu0
      %v1973 = vadd.f32 %v1869, %v1972
      %1974 = vmatmul.bf16.gmra.mxu0 %v1905
      %v1975 = vpop.f32.mrf.mxu0
      %v1976 = vadd.f32 %v1869, %v1975
      %v1977 = vpop.f32.mrf.mxu0
      %v1978 = vadd.f32 %v1869, %v1977
      %1979 = vmatmul.bf16.gmra.mxu0 %v1908
      %v1980 = vpop.f32.mrf.mxu0
      %v1981 = vadd.f32 %v1869, %v1980
      %v1982 = vpop.f32.mrf.mxu0
      %v1983 = vadd.f32 %v1869, %v1982
      %1984 = vmatmul.bf16.gmra.mxu0 %v1911
      %v1985 = vpop.f32.mrf.mxu0
      %v1986 = vadd.f32 %v1869, %v1985
      %v1987 = vpop.f32.mrf.mxu0
      %v1988 = vadd.f32 %v1869, %v1987
      %1989 = vmatmul.bf16.gmra.mxu0 %v1914
      %v1990 = vpop.f32.mrf.mxu0
      %v1991 = vadd.f32 %v1869, %v1990
      %v1992 = vpop.f32.mrf.mxu0
      %v1993 = vadd.f32 %v1869, %v1992
      %1994 = vmatmul.bf16.gmra.mxu0 %v1917
      %v1995 = vpop.f32.mrf.mxu0
      %v1996 = vadd.f32 %v1869, %v1995
      %v1997 = vpop.f32.mrf.mxu0
      %v1998 = vadd.f32 %v1869, %v1997
      %1999 = vmatmul.bf16.gmra.mxu0 %v1920
      %v2000 = vpop.f32.mrf.mxu0
      %v2001 = vadd.f32 %v1869, %v2000
      %v2002 = vpop.f32.mrf.mxu0
      %v2003 = vadd.f32 %v1869, %v2002
      %2004 = vmatmul.bf16.gmra.mxu0 %v1923
      %v2005 = vpop.f32.mrf.mxu0
      %v2006 = vadd.f32 %v1869, %v2005
      %v2007 = vpop.f32.mrf.mxu0
      %v2008 = vadd.f32 %v1869, %v2007
      %2009 = vmatmul.bf16.gmra.mxu0 %v1926
      %v2010 = vpop.f32.mrf.mxu0
      %v2011 = vadd.f32 %v1869, %v2010
      %v2012 = vpop.f32.mrf.mxu0
      %v2013 = vadd.f32 %v1869, %v2012
      %2014 = vmatmul.bf16.gmra.mxu0 %v1929
      %v2015 = vpop.f32.mrf.mxu0
      %v2016 = vadd.f32 %v1869, %v2015
      %v2017 = vpop.f32.mrf.mxu0
      %v2018 = vadd.f32 %v1869, %v2017
      %2019 = vdwg.mxu0
      %v2020 = vld [vmem:[%s1066] sm:$0xf]
      %v2021 = vld [vmem:[%s1066 + $0x4] sm:$0xf]
      %v2022 = vld [vmem:[%s1066 + $0x8] sm:$0xf]
      %v2023 = vld [vmem:[%s1066 + $0xc] sm:$0xf]
      %v2024 = vlaneseq
      %v2025 = vand.u32 %v2024, 127
      %vm2026 = vcmp.lt.s32.totalorder %v2025, 16
      %v2027 = vsel %vm2026, 0.0, -1e+30
      %v2028 = vpack.c.bf16 %v1843, %v1843
      %v2029 = vpack.c.bf16 %v1845, %v1845
      %v2030 = vpack.c.bf16 %v1941, %v1941
      %v2031 = vpack.c.bf16 %v1943, %v1943
      %v2032 = vpack.c.bf16 %v1946, %v1946
      %v2033 = vpack.c.bf16 %v1948, %v1948
      %v2034 = vpack.c.bf16 %v1951, %v1951
      %v2035 = vpack.c.bf16 %v1953, %v1953
      %v2036 = vpack.c.bf16 %v1956, %v1956
      %v2037 = vpack.c.bf16 %v1958, %v1958
      %v2038 = vpack.c.bf16 %v1961, %v1961
      %v2039 = vpack.c.bf16 %v1963, %v1963
      %v2040 = vpack.c.bf16 %v1966, %v1966
      %v2041 = vpack.c.bf16 %v1968, %v1968
      %v2042 = vpack.c.bf16 %v1971, %v1971
      %v2043 = vpack.c.bf16 %v1973, %v1973
      %v2044 = vpack.c.bf16 %v1976, %v1976
      %v2045 = vpack.c.bf16 %v1978, %v1978
      %v2046 = vpack.c.bf16 %v1981, %v1981
      %v2047 = vpack.c.bf16 %v1983, %v1983
      %v2048 = vpack.c.bf16 %v1986, %v1986
      %v2049 = vpack.c.bf16 %v1988, %v1988
      %v2050 = vpack.c.bf16 %v1991, %v1991
      %v2051 = vpack.c.bf16 %v1993, %v1993
      %v2052 = vpack.c.bf16 %v1996, %v1996
      %v2053 = vpack.c.bf16 %v1998, %v1998
      %v2054 = vpack.c.bf16 %v2001, %v2001
      %v2055 = vpack.c.bf16 %v2003, %v2003
      %v2056 = vpack.c.bf16 %v2006, %v2006
      %v2057 = vpack.c.bf16 %v2008, %v2008
      %v2058 = vpack.c.bf16 %v2011, %v2011
      %v2059 = vpack.c.bf16 %v2013, %v2013
      %v2060 = vpack.c.bf16 %v2016, %v2016
      %v2061 = vpack.c.bf16 %v2018, %v2018
      %v2078 = vunpack.c.l.b16 %v2030
      %v2079 = vunpack.c.l.b16 %v2031
      %v2080 = vunpack.c.l.b16 %v2032
      %v2081 = vunpack.c.l.b16 %v2033
      %v2082 = vunpack.c.l.b16 %v2034
      %v2083 = vunpack.c.l.b16 %v2035
      %v2084 = vunpack.c.l.b16 %v2036
      %v2085 = vunpack.c.l.b16 %v2037
      %v2086 = vunpack.c.l.b16 %v2038
      %v2087 = vunpack.c.l.b16 %v2039
      %v2088 = vunpack.c.l.b16 %v2040
      %v2089 = vunpack.c.l.b16 %v2041
      %v2090 = vunpack.c.l.b16 %v2042
      %v2091 = vunpack.c.l.b16 %v2043
      %v2092 = vunpack.c.l.b16 %v2044
      %v2093 = vunpack.c.l.b16 %v2045
      %v2094 = vpack.c.b16 %v2079, %v2078
      %v2095 = vpack.c.b16 %v2081, %v2080
      %v2096 = vpack.c.b16 %v2083, %v2082
      %v2097 = vpack.c.b16 %v2085, %v2084
      %v2098 = vpack.c.b16 %v2087, %v2086
      %v2099 = vpack.c.b16 %v2089, %v2088
      %v2100 = vpack.c.b16 %v2091, %v2090
      %v2101 = vpack.c.b16 %v2093, %v2092
      %v2103 = vsel %vm1171, %v2028, 0
      %v2106 = vsel %vm1171, %v2094, 0
      %v2109 = vsel %vm1171, %v2095, 0
      %v2112 = vsel %vm1171, %v2096, 0
      %v2115 = vsel %vm1171, %v2097, 0
      %v2118 = vsel %vm1171, %v2098, 0
      %v2121 = vsel %vm1171, %v2099, 0
      %v2124 = vsel %vm1171, %v2100, 0
      %v2127 = vsel %vm1171, %v2101, 0
      %2129 = vmatpush.bf16.xpose.msra.mxu0 %v2127
      %2130 = vmatpush.bf16.xpose.msra.mxu0 %v2124
      %2131 = vmatpush.bf16.xpose.msra.mxu0 %v2121
      %2132 = vmatpush.bf16.xpose.msra.mxu0 %v2118
      %2133 = vmatpush.bf16.xpose.msra.mxu0 %v2115
      %2134 = vmatpush.bf16.xpose.msra.mxu0 %v2112
      %2135 = vmatpush.bf16.xpose.msra.mxu0 %v2109
      %2136 = vmatpush.bf16.xpose.msra.mxu0 %v2106
      %2137 = vmatmul.bf16.gmra.mxu0 %v2103
      %v2138 = vpop.f32.mrf.mxu0
      %v2139 = vadd.f32 %v2027, %v2138
      %v2140 = vpop.f32.mrf.mxu0
      %2141 = vdwg.mxu0
      %v2158 = vunpack.c.l.b16 %v2046
      %v2159 = vunpack.c.l.b16 %v2047
      %v2160 = vunpack.c.l.b16 %v2048
      %v2161 = vunpack.c.l.b16 %v2049
      %v2162 = vunpack.c.l.b16 %v2050
      %v2163 = vunpack.c.l.b16 %v2051
      %v2164 = vunpack.c.l.b16 %v2052
      %v2165 = vunpack.c.l.b16 %v2053
      %v2166 = vunpack.c.l.b16 %v2054
      %v2167 = vunpack.c.l.b16 %v2055
      %v2168 = vunpack.c.l.b16 %v2056
      %v2169 = vunpack.c.l.b16 %v2057
      %v2170 = vunpack.c.l.b16 %v2058
      %v2171 = vunpack.c.l.b16 %v2059
      %v2172 = vunpack.c.l.b16 %v2060
      %v2173 = vunpack.c.l.b16 %v2061
      %v2174 = vpack.c.b16 %v2159, %v2158
      %v2175 = vpack.c.b16 %v2161, %v2160
      %v2176 = vpack.c.b16 %v2163, %v2162
      %v2177 = vpack.c.b16 %v2165, %v2164
      %v2178 = vpack.c.b16 %v2167, %v2166
      %v2179 = vpack.c.b16 %v2169, %v2168
      %v2180 = vpack.c.b16 %v2171, %v2170
      %v2181 = vpack.c.b16 %v2173, %v2172
      %v2183 = vsel %vm1171, %v2029, 0
      %v2186 = vsel %vm1171, %v2174, 0
      %v2189 = vsel %vm1171, %v2175, 0
      %v2192 = vsel %vm1171, %v2176, 0
      %v2195 = vsel %vm1171, %v2177, 0
      %v2198 = vsel %vm1171, %v2178, 0
      %v2201 = vsel %vm1171, %v2179, 0
      %v2204 = vsel %vm1171, %v2180, 0
      %v2207 = vsel %vm1171, %v2181, 0
      %2209 = vmatpush.bf16.xpose.msra.mxu0 %v2207
      %2210 = vmatpush.bf16.xpose.msra.mxu0 %v2204
      %2211 = vmatpush.bf16.xpose.msra.mxu0 %v2201
      %2212 = vmatpush.bf16.xpose.msra.mxu0 %v2198
      %2213 = vmatpush.bf16.xpose.msra.mxu0 %v2195
      %2214 = vmatpush.bf16.xpose.msra.mxu0 %v2192
      %2215 = vmatpush.bf16.xpose.msra.mxu0 %v2189
      %2216 = vmatpush.bf16.xpose.msra.mxu0 %v2186
      %2217 = vmatmul.bf16.gmra.mxu0 %v2183
      %v2218 = vpop.f32.mrf.mxu0
      %v2219 = vadd.f32 %v2027, %v2218
      %v2220 = vpop.f32.mrf.mxu0
      %2221 = vdwg.mxu0
      %2222 = vmax.xlane.f32.xlu0 %v2139
      %v2223 = vpop.xlane.xlu0 %2222
      %2224 = vmax.xlane.f32.xlu0 %v2219
      %v2225 = vpop.xlane.xlu0 %2224
      %v2226 = vsub.f32 %v2139, %v2223
      %v2227 = vsub.f32 %v2219, %v2225
      %v2228 = vmul.f32 %v2226, 1.442695
      %v2229 = vpow.pop %v2228
      %v2230 = vmul.f32 %v2227, 1.442695
      %v2231 = vpow.pop %v2230
      %2232 = vadd.xlane.f32.xlu0 %v2229
      %v2233 = vpop.xlane.xlu0 %2232
      %2234 = vadd.xlane.f32.xlu0 %v2231
      %v2235 = vpop.xlane.xlu0 %2234
      %v2236 = vrcp.pop %v2233
      %v2237 = vmul.f32 %v2233, %v2236
      %v2238 = vsub.f32 1.0, %v2237
      %v2239 = vmul.f32 %v2236, %v2238
      %v2240 = vadd.f32 %v2236, %v2239
      %vm2241 = vweird.f32 %v2233
      %vm2242 = vweird.f32 %v2236
      %vm2243 = vmor %vm2241, %vm2242
      %v2244 = vsel %vm2243, %v2236, %v2240
      %v2245 = vand.u32 2147483647, %v2233
      %vm2246 = vcmp.eq.f32.partialorder %v2245, 8.507059e+37
      %v2247 = vand.u32 %v2233, 2147483648
      %v2248 = vor.u32 1.1754944e-38, %v2247
      %v2249 = vsel %vm2246, %v2248, %v2244
      %v2250 = vmul.f32 %v2229, %v2249
      %v2251 = vrcp.pop %v2235
      %v2252 = vmul.f32 %v2235, %v2251
      %v2253 = vsub.f32 1.0, %v2252
      %v2254 = vmul.f32 %v2251, %v2253
      %v2255 = vadd.f32 %v2251, %v2254
      %vm2256 = vweird.f32 %v2235
      %vm2257 = vweird.f32 %v2251
      %vm2258 = vmor %vm2256, %vm2257
      %v2259 = vsel %vm2258, %v2251, %v2255
      %v2260 = vand.u32 2147483647, %v2235
      %vm2261 = vcmp.eq.f32.partialorder %v2260, 8.507059e+37
      %v2262 = vand.u32 %v2235, 2147483648
      %v2263 = vor.u32 1.1754944e-38, %v2262
      %v2264 = vsel %vm2261, %v2263, %v2259
      %v2265 = vmul.f32 %v2231, %v2264
      %v2266 = vadd.f32 %v2250, 0.0
      %v2267 = vadd.f32 %v2265, 0.0
      %v2268 = vpack.c.bf16 %v2250, %v2250
      %v2269 = vpack.c.bf16 %v2265, %v2265
      %2270 = vrot.lane.b32.xlu0 %v2094, 96
      %v2271 = vpop.permute.xlu0 %2270
      %2272 = vrot.lane.b32.xlu0 %v2095, 96
      %v2273 = vpop.permute.xlu0 %2272
      %2274 = vrot.lane.b32.xlu0 %v2096, 96
      %v2275 = vpop.permute.xlu0 %2274
      %2276 = vrot.lane.b32.xlu0 %v2097, 96
      %v2277 = vpop.permute.xlu0 %2276
      %2278 = vrot.lane.b32.xlu0 %v2098, 96
      %v2279 = vpop.permute.xlu0 %2278
      %2280 = vrot.lane.b32.xlu0 %v2099, 96
      %v2281 = vpop.permute.xlu0 %2280
      %2282 = vrot.lane.b32.xlu0 %v2100, 96
      %v2283 = vpop.permute.xlu0 %2282
      %2284 = vrot.lane.b32.xlu0 %v2101, 96
      %v2285 = vpop.permute.xlu0 %2284
      %2294 = vmatpush.bf16.msra.mxu0 %v2285
      %2295 = vmatpush.bf16.msra.mxu0 %v2283
      %2296 = vmatpush.bf16.msra.mxu0 %v2281
      %2297 = vmatpush.bf16.msra.mxu0 %v2279
      %2298 = vmatpush.bf16.msra.mxu0 %v2277
      %2299 = vmatpush.bf16.msra.mxu0 %v2275
      %2300 = vmatpush.bf16.msra.mxu0 %v2273
      %2301 = vmatpush.bf16.msra.mxu0 %v2271
      %2302 = vmatmul.bf16.gmra.mxu0 %v2268
      %v2303 = vpop.f32.mrf.mxu0
      %v2304 = vadd.f32 0.0, %v2303
      %v2305 = vpop.f32.mrf.mxu0
      %2306 = vdwg.mxu0
      %2307 = vrot.lane.b32.xlu0 %v2174, 96
      %v2308 = vpop.permute.xlu0 %2307
      %2309 = vrot.lane.b32.xlu0 %v2175, 96
      %v2310 = vpop.permute.xlu0 %2309
      %2311 = vrot.lane.b32.xlu0 %v2176, 96
      %v2312 = vpop.permute.xlu0 %2311
      %2313 = vrot.lane.b32.xlu0 %v2177, 96
      %v2314 = vpop.permute.xlu0 %2313
      %2315 = vrot.lane.b32.xlu0 %v2178, 96
      %v2316 = vpop.permute.xlu0 %2315
      %2317 = vrot.lane.b32.xlu0 %v2179, 96
      %v2318 = vpop.permute.xlu0 %2317
      %2319 = vrot.lane.b32.xlu0 %v2180, 96
      %v2320 = vpop.permute.xlu0 %2319
      %2321 = vrot.lane.b32.xlu0 %v2181, 96
      %v2322 = vpop.permute.xlu0 %2321
      %2331 = vmatpush.bf16.msra.mxu0 %v2322
      %2332 = vmatpush.bf16.msra.mxu0 %v2320
      %2333 = vmatpush.bf16.msra.mxu0 %v2318
      %2334 = vmatpush.bf16.msra.mxu0 %v2316
      %2335 = vmatpush.bf16.msra.mxu0 %v2314
      %2336 = vmatpush.bf16.msra.mxu0 %v2312
      %2337 = vmatpush.bf16.msra.mxu0 %v2310
      %2338 = vmatpush.bf16.msra.mxu0 %v2308
      %2339 = vmatmul.bf16.gmra.mxu0 %v2269
      %v2340 = vpop.f32.mrf.mxu0
      %v2341 = vadd.f32 0.0, %v2340
      %v2342 = vpop.f32.mrf.mxu0
      %2343 = vdwg.mxu0
      %v2344 = vpack.c.bf16 %v2341, %v2304
      %v2346 = vunpack.c.l.b16 %v2028
      %v2347 = vpack.c.b16 %v2346, %v2346
      %2348 = vrot.lane.b32.xlu0 %v2347, 120
      %v2349 = vpop.permute.xlu0 %2348
      %2350 = vrot.lane.b32.xlu0 %v2094, 120
      %v2351 = vpop.permute.xlu0 %2350
      %2352 = vrot.lane.b32.xlu0 %v2095, 120
      %v2353 = vpop.permute.xlu0 %2352
      %2354 = vrot.lane.b32.xlu0 %v2096, 120
      %v2355 = vpop.permute.xlu0 %2354
      %2356 = vrot.lane.b32.xlu0 %v2097, 120
      %v2357 = vpop.permute.xlu0 %2356
      %2358 = vrot.lane.b32.xlu0 %v2098, 120
      %v2359 = vpop.permute.xlu0 %2358
      %2360 = vrot.lane.b32.xlu0 %v2099, 120
      %v2361 = vpop.permute.xlu0 %2360
      %2362 = vrot.lane.b32.xlu0 %v2100, 120
      %v2363 = vpop.permute.xlu0 %2362
      %2364 = vrot.lane.b32.xlu0 %v2101, 120
      %v2365 = vpop.permute.xlu0 %2364
      %v2367 = vsel %vm1171, %v2349, 0
      %v2370 = vsel %vm1171, %v2351, 0
      %v2373 = vsel %vm1171, %v2353, 0
      %v2376 = vsel %vm1171, %v2355, 0
      %v2379 = vsel %vm1171, %v2357, 0
      %v2382 = vsel %vm1171, %v2359, 0
      %v2385 = vsel %vm1171, %v2361, 0
      %v2388 = vsel %vm1171, %v2363, 0
      %v2391 = vsel %vm1171, %v2365, 0
      %2393 = vmatpush.bf16.xpose.msra.mxu0 %v2391
      %2394 = vmatpush.bf16.xpose.msra.mxu0 %v2388
      %2395 = vmatpush.bf16.xpose.msra.mxu0 %v2385
      %2396 = vmatpush.bf16.xpose.msra.mxu0 %v2382
      %2397 = vmatpush.bf16.xpose.msra.mxu0 %v2379
      %2398 = vmatpush.bf16.xpose.msra.mxu0 %v2376
      %2399 = vmatpush.bf16.xpose.msra.mxu0 %v2373
      %2400 = vmatpush.bf16.xpose.msra.mxu0 %v2370
      %2401 = vmatmul.bf16.gmra.mxu0 %v2367
      %v2402 = vpop.f32.mrf.mxu0
      %v2403 = vadd.f32 %v2027, %v2402
      %v2404 = vpop.f32.mrf.mxu0
      %2405 = vdwg.mxu0
      %v2407 = vunpack.c.l.b16 %v2029
      %v2408 = vpack.c.b16 %v2407, %v2407
      %2409 = vrot.lane.b32.xlu0 %v2408, 120
      %v2410 = vpop.permute.xlu0 %2409
      %2411 = vrot.lane.b32.xlu0 %v2174, 120
      %v2412 = vpop.permute.xlu0 %2411
      %2413 = vrot.lane.b32.xlu0 %v2175, 120
      %v2414 = vpop.permute.xlu0 %2413
      %2415 = vrot.lane.b32.xlu0 %v2176, 120
      %v2416 = vpop.permute.xlu0 %2415
      %2417 = vrot.lane.b32.xlu0 %v2177, 120
      %v2418 = vpop.permute.xlu0 %2417
      %2419 = vrot.lane.b32.xlu0 %v2178, 120
      %v2420 = vpop.permute.xlu0 %2419
      %2421 = vrot.lane.b32.xlu0 %v2179, 120
      %v2422 = vpop.permute.xlu0 %2421
      %2423 = vrot.lane.b32.xlu0 %v2180, 120
      %v2424 = vpop.permute.xlu0 %2423
      %2425 = vrot.lane.b32.xlu0 %v2181, 120
      %v2426 = vpop.permute.xlu0 %2425
      %v2428 = vsel %vm1171, %v2410, 0
      %v2431 = vsel %vm1171, %v2412, 0
      %v2434 = vsel %vm1171, %v2414, 0
      %v2437 = vsel %vm1171, %v2416, 0
      %v2440 = vsel %vm1171, %v2418, 0
      %v2443 = vsel %vm1171, %v2420, 0
      %v2446 = vsel %vm1171, %v2422, 0
      %v2449 = vsel %vm1171, %v2424, 0
      %v2452 = vsel %vm1171, %v2426, 0
      %2454 = vmatpush.bf16.xpose.msra.mxu0 %v2452
      %2455 = vmatpush.bf16.xpose.msra.mxu0 %v2449
      %2456 = vmatpush.bf16.xpose.msra.mxu0 %v2446
      %2457 = vmatpush.bf16.xpose.msra.mxu0 %v2443
      %2458 = vmatpush.bf16.xpose.msra.mxu0 %v2440
      %2459 = vmatpush.bf16.xpose.msra.mxu0 %v2437
      %2460 = vmatpush.bf16.xpose.msra.mxu0 %v2434
      %2461 = vmatpush.bf16.xpose.msra.mxu0 %v2431
      %2462 = vmatmul.bf16.gmra.mxu0 %v2428
      %v2463 = vpop.f32.mrf.mxu0
      %v2464 = vadd.f32 %v2027, %v2463
      %v2465 = vpop.f32.mrf.mxu0
      %2466 = vdwg.mxu0
      %2467 = vmax.xlane.f32.xlu0 %v2403
      %v2468 = vpop.xlane.xlu0 %2467
      %2469 = vmax.xlane.f32.xlu0 %v2464
      %v2470 = vpop.xlane.xlu0 %2469
      %v2471 = vsub.f32 %v2403, %v2468
      %v2472 = vsub.f32 %v2464, %v2470
      %v2473 = vmul.f32 %v2471, 1.442695
      %v2474 = vpow.pop %v2473
      %v2475 = vmul.f32 %v2472, 1.442695
      %v2476 = vpow.pop %v2475
      %2477 = vadd.xlane.f32.xlu0 %v2474
      %v2478 = vpop.xlane.xlu0 %2477
      %2479 = vadd.xlane.f32.xlu0 %v2476
      %v2480 = vpop.xlane.xlu0 %2479
      %v2481 = vrcp.pop %v2478
      %v2482 = vmul.f32 %v2478, %v2481
      %v2483 = vsub.f32 1.0, %v2482
      %v2484 = vmul.f32 %v2481, %v2483
      %v2485 = vadd.f32 %v2481, %v2484
      %vm2486 = vweird.f32 %v2478
      %vm2487 = vweird.f32 %v2481
      %vm2488 = vmor %vm2486, %vm2487
      %v2489 = vsel %vm2488, %v2481, %v2485
      %v2490 = vand.u32 2147483647, %v2478
      %vm2491 = vcmp.eq.f32.partialorder %v2490, 8.507059e+37
      %v2492 = vand.u32 %v2478, 2147483648
      %v2493 = vor.u32 1.1754944e-38, %v2492
      %v2494 = vsel %vm2491, %v2493, %v2489
      %v2495 = vmul.f32 %v2474, %v2494
      %v2496 = vrcp.pop %v2480
      %v2497 = vmul.f32 %v2480, %v2496
      %v2498 = vsub.f32 1.0, %v2497
      %v2499 = vmul.f32 %v2496, %v2498
      %v2500 = vadd.f32 %v2496, %v2499
      %vm2501 = vweird.f32 %v2480
      %vm2502 = vweird.f32 %v2496
      %vm2503 = vmor %vm2501, %vm2502
      %v2504 = vsel %vm2503, %v2496, %v2500
      %v2505 = vand.u32 2147483647, %v2480
      %vm2506 = vcmp.eq.f32.partialorder %v2505, 8.507059e+37
      %v2507 = vand.u32 %v2480, 2147483648
      %v2508 = vor.u32 1.1754944e-38, %v2507
      %v2509 = vsel %vm2506, %v2508, %v2504
      %v2510 = vmul.f32 %v2476, %v2509
      %v2511 = vadd.f32 %v2266, %v2495
      %v2512 = vadd.f32 %v2267, %v2510
      %v2513 = vpack.c.bf16 %v2495, %v2495
      %v2514 = vpack.c.bf16 %v2510, %v2510
      %2515 = vrot.lane.b32.xlu0 %v2094, 88
      %v2516 = vpop.permute.xlu0 %2515
      %2517 = vrot.lane.b32.xlu0 %v2095, 88
      %v2518 = vpop.permute.xlu0 %2517
      %2519 = vrot.lane.b32.xlu0 %v2096, 88
      %v2520 = vpop.permute.xlu0 %2519
      %2521 = vrot.lane.b32.xlu0 %v2097, 88
      %v2522 = vpop.permute.xlu0 %2521
      %2523 = vrot.lane.b32.xlu0 %v2098, 88
      %v2524 = vpop.permute.xlu0 %2523
      %2525 = vrot.lane.b32.xlu0 %v2099, 88
      %v2526 = vpop.permute.xlu0 %2525
      %2527 = vrot.lane.b32.xlu0 %v2100, 88
      %v2528 = vpop.permute.xlu0 %2527
      %2529 = vrot.lane.b32.xlu0 %v2101, 88
      %v2530 = vpop.permute.xlu0 %2529
      %2539 = vmatpush.bf16.msra.mxu0 %v2530
      %2540 = vmatpush.bf16.msra.mxu0 %v2528
      %2541 = vmatpush.bf16.msra.mxu0 %v2526
      %2542 = vmatpush.bf16.msra.mxu0 %v2524
      %2543 = vmatpush.bf16.msra.mxu0 %v2522
      %2544 = vmatpush.bf16.msra.mxu0 %v2520
      %2545 = vmatpush.bf16.msra.mxu0 %v2518
      %2546 = vmatpush.bf16.msra.mxu0 %v2516
      %2547 = vmatmul.bf16.gmra.mxu0 %v2513
      %v2548 = vpop.f32.mrf.mxu0
      %v2549 = vadd.f32 0.0, %v2548
      %v2550 = vpop.f32.mrf.mxu0
      %2551 = vdwg.mxu0
      %2552 = vrot.lane.b32.xlu0 %v2174, 88
      %v2553 = vpop.permute.xlu0 %2552
      %2554 = vrot.lane.b32.xlu0 %v2175, 88
      %v2555 = vpop.permute.xlu0 %2554
      %2556 = vrot.lane.b32.xlu0 %v2176, 88
      %v2557 = vpop.permute.xlu0 %2556
      %2558 = vrot.lane.b32.xlu0 %v2177, 88
      %v2559 = vpop.permute.xlu0 %2558
      %2560 = vrot.lane.b32.xlu0 %v2178, 88
      %v2561 = vpop.permute.xlu0 %2560
      %2562 = vrot.lane.b32.xlu0 %v2179, 88
      %v2563 = vpop.permute.xlu0 %2562
      %2564 = vrot.lane.b32.xlu0 %v2180, 88
      %v2565 = vpop.permute.xlu0 %2564
      %2566 = vrot.lane.b32.xlu0 %v2181, 88
      %v2567 = vpop.permute.xlu0 %2566
      %2576 = vmatpush.bf16.msra.mxu0 %v2567
      %2577 = vmatpush.bf16.msra.mxu0 %v2565
      %2578 = vmatpush.bf16.msra.mxu0 %v2563
      %2579 = vmatpush.bf16.msra.mxu0 %v2561
      %2580 = vmatpush.bf16.msra.mxu0 %v2559
      %2581 = vmatpush.bf16.msra.mxu0 %v2557
      %2582 = vmatpush.bf16.msra.mxu0 %v2555
      %2583 = vmatpush.bf16.msra.mxu0 %v2553
      %2584 = vmatmul.bf16.gmra.mxu0 %v2514
      %v2585 = vpop.f32.mrf.mxu0
      %v2586 = vadd.f32 0.0, %v2585
      %v2587 = vpop.f32.mrf.mxu0
      %2588 = vdwg.mxu0
      %v2589 = vpack.c.bf16 %v2586, %v2549
      %v2591 = vsel %vm1171, %v2589, 0
      %v2594 = vsel %vm1244, %v2021, 0
      %2596 = vmatpush.bf16.msra.mxu0 0
      %2597 = vmatpush.bf16.msra.mxu0 0
      %2598 = vmatpush.bf16.msra.mxu0 0
      %2599 = vmatpush.bf16.msra.mxu0 0
      %2600 = vmatpush.bf16.msra.mxu0 0
      %2601 = vmatpush.bf16.msra.mxu0 0
      %2602 = vmatpush.bf16.msra.mxu0 0
      %2603 = vmatpush.bf16.msra.mxu0 %v2594
      %2604 = vmatmul.bf16.gmra.mxu0 %v2591
      %v2605 = vpop.f32.mrf.mxu0
      %v2606 = vadd.f32 0.0, %v2605
      %v2607 = vpop.f32.mrf.mxu0
      %v2608 = vadd.f32 0.0, %v2607
      %2609 = vdwg.mxu0
      %v2611 = vsel %vm1171, %v2344, 0
      %v2614 = vsel %vm1244, %v2020, 0
      %2616 = vmatpush.bf16.msra.mxu0 0
      %2617 = vmatpush.bf16.msra.mxu0 0
      %2618 = vmatpush.bf16.msra.mxu0 0
      %2619 = vmatpush.bf16.msra.mxu0 0
      %2620 = vmatpush.bf16.msra.mxu0 0
      %2621 = vmatpush.bf16.msra.mxu0 0
      %2622 = vmatpush.bf16.msra.mxu0 0
      %2623 = vmatpush.bf16.msra.mxu0 %v2614
      %2624 = vmatmul.bf16.gmra.mxu0 %v2611
      %v2625 = vpop.f32.mrf.mxu0
      %v2626 = vadd.f32 %v2606, %v2625
      %v2627 = vpop.f32.mrf.mxu0
      %v2628 = vadd.f32 %v2608, %v2627
      %2629 = vdwg.mxu0
      %2630 = vrot.lane.b32.xlu0 %v2347, 112
      %v2631 = vpop.permute.xlu0 %2630
      %2632 = vrot.lane.b32.xlu0 %v2094, 112
      %v2633 = vpop.permute.xlu0 %2632
      %2634 = vrot.lane.b32.xlu0 %v2095, 112
      %v2635 = vpop.permute.xlu0 %2634
      %2636 = vrot.lane.b32.xlu0 %v2096, 112
      %v2637 = vpop.permute.xlu0 %2636
      %2638 = vrot.lane.b32.xlu0 %v2097, 112
      %v2639 = vpop.permute.xlu0 %2638
      %2640 = vrot.lane.b32.xlu0 %v2098, 112
      %v2641 = vpop.permute.xlu0 %2640
      %2642 = vrot.lane.b32.xlu0 %v2099, 112
      %v2643 = vpop.permute.xlu0 %2642
      %2644 = vrot.lane.b32.xlu0 %v2100, 112
      %v2645 = vpop.permute.xlu0 %2644
      %2646 = vrot.lane.b32.xlu0 %v2101, 112
      %v2647 = vpop.permute.xlu0 %2646
      %v2649 = vsel %vm1171, %v2631, 0
      %v2652 = vsel %vm1171, %v2633, 0
      %v2655 = vsel %vm1171, %v2635, 0
      %v2658 = vsel %vm1171, %v2637, 0
      %v2661 = vsel %vm1171, %v2639, 0
      %v2664 = vsel %vm1171, %v2641, 0
      %v2667 = vsel %vm1171, %v2643, 0
      %v2670 = vsel %vm1171, %v2645, 0
      %v2673 = vsel %vm1171, %v2647, 0
      %2675 = vmatpush.bf16.xpose.msra.mxu0 %v2673
      %2676 = vmatpush.bf16.xpose.msra.mxu0 %v2670
      %2677 = vmatpush.bf16.xpose.msra.mxu0 %v2667
      %2678 = vmatpush.bf16.xpose.msra.mxu0 %v2664
      %2679 = vmatpush.bf16.xpose.msra.mxu0 %v2661
      %2680 = vmatpush.bf16.xpose.msra.mxu0 %v2658
      %2681 = vmatpush.bf16.xpose.msra.mxu0 %v2655
      %2682 = vmatpush.bf16.xpose.msra.mxu0 %v2652
      %2683 = vmatmul.bf16.gmra.mxu0 %v2649
      %v2684 = vpop.f32.mrf.mxu0
      %v2685 = vadd.f32 %v2027, %v2684
      %v2686 = vpop.f32.mrf.mxu0
      %2687 = vdwg.mxu0
      %2688 = vrot.lane.b32.xlu0 %v2408, 112
      %v2689 = vpop.permute.xlu0 %2688
      %2690 = vrot.lane.b32.xlu0 %v2174, 112
      %v2691 = vpop.permute.xlu0 %2690
      %2692 = vrot.lane.b32.xlu0 %v2175, 112
      %v2693 = vpop.permute.xlu0 %2692
      %2694 = vrot.lane.b32.xlu0 %v2176, 112
      %v2695 = vpop.permute.xlu0 %2694
      %2696 = vrot.lane.b32.xlu0 %v2177, 112
      %v2697 = vpop.permute.xlu0 %2696
      %2698 = vrot.lane.b32.xlu0 %v2178, 112
      %v2699 = vpop.permute.xlu0 %2698
      %2700 = vrot.lane.b32.xlu0 %v2179, 112
      %v2701 = vpop.permute.xlu0 %2700
      %2702 = vrot.lane.b32.xlu0 %v2180, 112
      %v2703 = vpop.permute.xlu0 %2702
      %2704 = vrot.lane.b32.xlu0 %v2181, 112
      %v2705 = vpop.permute.xlu0 %2704
      %v2707 = vsel %vm1171, %v2689, 0
      %v2710 = vsel %vm1171, %v2691, 0
      %v2713 = vsel %vm1171, %v2693, 0
      %v2716 = vsel %vm1171, %v2695, 0
      %v2719 = vsel %vm1171, %v2697, 0
      %v2722 = vsel %vm1171, %v2699, 0
      %v2725 = vsel %vm1171, %v2701, 0
      %v2728 = vsel %vm1171, %v2703, 0
      %v2731 = vsel %vm1171, %v2705, 0
      %2733 = vmatpush.bf16.xpose.msra.mxu0 %v2731
      %2734 = vmatpush.bf16.xpose.msra.mxu0 %v2728
      %2735 = vmatpush.bf16.xpose.msra.mxu0 %v2725
      %2736 = vmatpush.bf16.xpose.msra.mxu0 %v2722
      %2737 = vmatpush.bf16.xpose.msra.mxu0 %v2719
      %2738 = vmatpush.bf16.xpose.msra.mxu0 %v2716
      %2739 = vmatpush.bf16.xpose.msra.mxu0 %v2713
      %2740 = vmatpush.bf16.xpose.msra.mxu0 %v2710
      %2741 = vmatmul.bf16.gmra.mxu0 %v2707
      %v2742 = vpop.f32.mrf.mxu0
      %v2743 = vadd.f32 %v2027, %v2742
      %v2744 = vpop.f32.mrf.mxu0
      %2745 = vdwg.mxu0
      %2746 = vmax.xlane.f32.xlu0 %v2685
      %v2747 = vpop.xlane.xlu0 %2746
      %2748 = vmax.xlane.f32.xlu0 %v2743
      %v2749 = vpop.xlane.xlu0 %2748
      %v2750 = vsub.f32 %v2685, %v2747
      %v2751 = vsub.f32 %v2743, %v2749
      %v2752 = vmul.f32 %v2750, 1.442695
      %v2753 = vpow.pop %v2752
      %v2754 = vmul.f32 %v2751, 1.442695
      %v2755 = vpow.pop %v2754
      %2756 = vadd.xlane.f32.xlu0 %v2753
      %v2757 = vpop.xlane.xlu0 %2756
      %2758 = vadd.xlane.f32.xlu0 %v2755
      %v2759 = vpop.xlane.xlu0 %2758
      %v2760 = vrcp.pop %v2757
      %v2761 = vmul.f32 %v2757, %v2760
      %v2762 = vsub.f32 1.0, %v2761
      %v2763 = vmul.f32 %v2760, %v2762
      %v2764 = vadd.f32 %v2760, %v2763
      %vm2765 = vweird.f32 %v2757
      %vm2766 = vweird.f32 %v2760
      %vm2767 = vmor %vm2765, %vm2766
      %v2768 = vsel %vm2767, %v2760, %v2764
      %v2769 = vand.u32 2147483647, %v2757
      %vm2770 = vcmp.eq.f32.partialorder %v2769, 8.507059e+37
      %v2771 = vand.u32 %v2757, 2147483648
      %v2772 = vor.u32 1.1754944e-38, %v2771
      %v2773 = vsel %vm2770, %v2772, %v2768
      %v2774 = vmul.f32 %v2753, %v2773
      %v2775 = vrcp.pop %v2759
      %v2776 = vmul.f32 %v2759, %v2775
      %v2777 = vsub.f32 1.0, %v2776
      %v2778 = vmul.f32 %v2775, %v2777
      %v2779 = vadd.f32 %v2775, %v2778
      %vm2780 = vweird.f32 %v2759
      %vm2781 = vweird.f32 %v2775
      %vm2782 = vmor %vm2780, %vm2781
      %v2783 = vsel %vm2782, %v2775, %v2779
      %v2784 = vand.u32 2147483647, %v2759
      %vm2785 = vcmp.eq.f32.partialorder %v2784, 8.507059e+37
      %v2786 = vand.u32 %v2759, 2147483648
      %v2787 = vor.u32 1.1754944e-38, %v2786
      %v2788 = vsel %vm2785, %v2787, %v2783
      %v2789 = vmul.f32 %v2755, %v2788
      %v2790 = vadd.f32 %v2511, %v2774
      %v2791 = vadd.f32 %v2512, %v2789
      %v2792 = vpack.c.bf16 %v2774, %v2774
      %v2793 = vpack.c.bf16 %v2789, %v2789
      %2794 = vrot.lane.b32.xlu0 %v2094, 80
      %v2795 = vpop.permute.xlu0 %2794
      %2796 = vrot.lane.b32.xlu0 %v2095, 80
      %v2797 = vpop.permute.xlu0 %2796
      %2798 = vrot.lane.b32.xlu0 %v2096, 80
      %v2799 = vpop.permute.xlu0 %2798
      %2800 = vrot.lane.b32.xlu0 %v2097, 80
      %v2801 = vpop.permute.xlu0 %2800
      %2802 = vrot.lane.b32.xlu0 %v2098, 80
      %v2803 = vpop.permute.xlu0 %2802
      %2804 = vrot.lane.b32.xlu0 %v2099, 80
      %v2805 = vpop.permute.xlu0 %2804
      %2806 = vrot.lane.b32.xlu0 %v2100, 80
      %v2807 = vpop.permute.xlu0 %2806
      %2808 = vrot.lane.b32.xlu0 %v2101, 80
      %v2809 = vpop.permute.xlu0 %2808
      %2818 = vmatpush.bf16.msra.mxu0 %v2809
      %2819 = vmatpush.bf16.msra.mxu0 %v2807
      %2820 = vmatpush.bf16.msra.mxu0 %v2805
      %2821 = vmatpush.bf16.msra.mxu0 %v2803
      %2822 = vmatpush.bf16.msra.mxu0 %v2801
      %2823 = vmatpush.bf16.msra.mxu0 %v2799
      %2824 = vmatpush.bf16.msra.mxu0 %v2797
      %2825 = vmatpush.bf16.msra.mxu0 %v2795
      %2826 = vmatmul.bf16.gmra.mxu0 %v2792
      %v2827 = vpop.f32.mrf.mxu0
      %v2828 = vadd.f32 0.0, %v2827
      %v2829 = vpop.f32.mrf.mxu0
      %2830 = vdwg.mxu0
      %2831 = vrot.lane.b32.xlu0 %v2174, 80
      %v2832 = vpop.permute.xlu0 %2831
      %2833 = vrot.lane.b32.xlu0 %v2175, 80
      %v2834 = vpop.permute.xlu0 %2833
      %2835 = vrot.lane.b32.xlu0 %v2176, 80
      %v2836 = vpop.permute.xlu0 %2835
      %2837 = vrot.lane.b32.xlu0 %v2177, 80
      %v2838 = vpop.permute.xlu0 %2837
      %2839 = vrot.lane.b32.xlu0 %v2178, 80
      %v2840 = vpop.permute.xlu0 %2839
      %2841 = vrot.lane.b32.xlu0 %v2179, 80
      %v2842 = vpop.permute.xlu0 %2841
      %2843 = vrot.lane.b32.xlu0 %v2180, 80
      %v2844 = vpop.permute.xlu0 %2843
      %2845 = vrot.lane.b32.xlu0 %v2181, 80
      %v2846 = vpop.permute.xlu0 %2845
      %2855 = vmatpush.bf16.msra.mxu0 %v2846
      %2856 = vmatpush.bf16.msra.mxu0 %v2844
      %2857 = vmatpush.bf16.msra.mxu0 %v2842
      %2858 = vmatpush.bf16.msra.mxu0 %v2840
      %2859 = vmatpush.bf16.msra.mxu0 %v2838
      %2860 = vmatpush.bf16.msra.mxu0 %v2836
      %2861 = vmatpush.bf16.msra.mxu0 %v2834
      %2862 = vmatpush.bf16.msra.mxu0 %v2832
      %2863 = vmatmul.bf16.gmra.mxu0 %v2793
      %v2864 = vpop.f32.mrf.mxu0
      %v2865 = vadd.f32 0.0, %v2864
      %v2866 = vpop.f32.mrf.mxu0
      %2867 = vdwg.mxu0
      %v2868 = vpack.c.bf16 %v2865, %v2828
      %v2870 = vsel %vm1171, %v2868, 0
      %v2873 = vsel %vm1244, %v2022, 0
      %2875 = vmatpush.bf16.msra.mxu0 0
      %2876 = vmatpush.bf16.msra.mxu0 0
      %2877 = vmatpush.bf16.msra.mxu0 0
      %2878 = vmatpush.bf16.msra.mxu0 0
      %2879 = vmatpush.bf16.msra.mxu0 0
      %2880 = vmatpush.bf16.msra.mxu0 0
      %2881 = vmatpush.bf16.msra.mxu0 0
      %2882 = vmatpush.bf16.msra.mxu0 %v2873
      %2883 = vmatmul.bf16.gmra.mxu0 %v2870
      %v2884 = vpop.f32.mrf.mxu0
      %v2885 = vadd.f32 0.0, %v2884
      %v2886 = vpop.f32.mrf.mxu0
      %v2887 = vadd.f32 0.0, %v2886
      %2888 = vdwg.mxu0
      %v2889 = vadd.f32 %v2626, %v2885
      %v2890 = vadd.f32 %v2628, %v2887
      %2891 = vrot.lane.b32.xlu0 %v2347, 104
      %v2892 = vpop.permute.xlu0 %2891
      %2893 = vrot.lane.b32.xlu0 %v2094, 104
      %v2894 = vpop.permute.xlu0 %2893
      %2895 = vrot.lane.b32.xlu0 %v2095, 104
      %v2896 = vpop.permute.xlu0 %2895
      %2897 = vrot.lane.b32.xlu0 %v2096, 104
      %v2898 = vpop.permute.xlu0 %2897
      %2899 = vrot.lane.b32.xlu0 %v2097, 104
      %v2900 = vpop.permute.xlu0 %2899
      %2901 = vrot.lane.b32.xlu0 %v2098, 104
      %v2902 = vpop.permute.xlu0 %2901
      %2903 = vrot.lane.b32.xlu0 %v2099, 104
      %v2904 = vpop.permute.xlu0 %2903
      %2905 = vrot.lane.b32.xlu0 %v2100, 104
      %v2906 = vpop.permute.xlu0 %2905
      %2907 = vrot.lane.b32.xlu0 %v2101, 104
      %v2908 = vpop.permute.xlu0 %2907
      %v2910 = vsel %vm1171, %v2892, 0
      %v2913 = vsel %vm1171, %v2894, 0
      %v2916 = vsel %vm1171, %v2896, 0
      %v2919 = vsel %vm1171, %v2898, 0
      %v2922 = vsel %vm1171, %v2900, 0
      %v2925 = vsel %vm1171, %v2902, 0
      %v2928 = vsel %vm1171, %v2904, 0
      %v2931 = vsel %vm1171, %v2906, 0
      %v2934 = vsel %vm1171, %v2908, 0
      %2936 = vmatpush.bf16.xpose.msra.mxu0 %v2934
      %2937 = vmatpush.bf16.xpose.msra.mxu0 %v2931
      %2938 = vmatpush.bf16.xpose.msra.mxu0 %v2928
      %2939 = vmatpush.bf16.xpose.msra.mxu0 %v2925
      %2940 = vmatpush.bf16.xpose.msra.mxu0 %v2922
      %2941 = vmatpush.bf16.xpose.msra.mxu0 %v2919
      %2942 = vmatpush.bf16.xpose.msra.mxu0 %v2916
      %2943 = vmatpush.bf16.xpose.msra.mxu0 %v2913
      %2944 = vmatmul.bf16.gmra.mxu0 %v2910
      %v2945 = vpop.f32.mrf.mxu0
      %v2946 = vadd.f32 %v2027, %v2945
      %v2947 = vpop.f32.mrf.mxu0
      %2948 = vdwg.mxu0
      %2949 = vrot.lane.b32.xlu0 %v2408, 104
      %v2950 = vpop.permute.xlu0 %2949
      %2951 = vrot.lane.b32.xlu0 %v2174, 104
      %v2952 = vpop.permute.xlu0 %2951
      %2953 = vrot.lane.b32.xlu0 %v2175, 104
      %v2954 = vpop.permute.xlu0 %2953
      %2955 = vrot.lane.b32.xlu0 %v2176, 104
      %v2956 = vpop.permute.xlu0 %2955
      %2957 = vrot.lane.b32.xlu0 %v2177, 104
      %v2958 = vpop.permute.xlu0 %2957
      %2959 = vrot.lane.b32.xlu0 %v2178, 104
      %v2960 = vpop.permute.xlu0 %2959
      %2961 = vrot.lane.b32.xlu0 %v2179, 104
      %v2962 = vpop.permute.xlu0 %2961
      %2963 = vrot.lane.b32.xlu0 %v2180, 104
      %v2964 = vpop.permute.xlu0 %2963
      %2965 = vrot.lane.b32.xlu0 %v2181, 104
      %v2966 = vpop.permute.xlu0 %2965
      %v2968 = vsel %vm1171, %v2950, 0
      %v2971 = vsel %vm1171, %v2952, 0
      %v2974 = vsel %vm1171, %v2954, 0
      %v2977 = vsel %vm1171, %v2956, 0
      %v2980 = vsel %vm1171, %v2958, 0
      %v2983 = vsel %vm1171, %v2960, 0
      %v2986 = vsel %vm1171, %v2962, 0
      %v2989 = vsel %vm1171, %v2964, 0
      %v2992 = vsel %vm1171, %v2966, 0
      %2994 = vmatpush.bf16.xpose.msra.mxu0 %v2992
      %2995 = vmatpush.bf16.xpose.msra.mxu0 %v2989
      %2996 = vmatpush.bf16.xpose.msra.mxu0 %v2986
      %2997 = vmatpush.bf16.xpose.msra.mxu0 %v2983
      %2998 = vmatpush.bf16.xpose.msra.mxu0 %v2980
      %2999 = vmatpush.bf16.xpose.msra.mxu0 %v2977
      %3000 = vmatpush.bf16.xpose.msra.mxu0 %v2974
      %3001 = vmatpush.bf16.xpose.msra.mxu0 %v2971
      %3002 = vmatmul.bf16.gmra.mxu0 %v2968
      %v3003 = vpop.f32.mrf.mxu0
      %v3004 = vadd.f32 %v2027, %v3003
      %v3005 = vpop.f32.mrf.mxu0
      %3006 = vdwg.mxu0
      %3007 = vmax.xlane.f32.xlu0 %v2946
      %v3008 = vpop.xlane.xlu0 %3007
      %3009 = vmax.xlane.f32.xlu0 %v3004
      %v3010 = vpop.xlane.xlu0 %3009
      %v3011 = vsub.f32 %v2946, %v3008
      %v3012 = vsub.f32 %v3004, %v3010
      %v3013 = vmul.f32 %v3011, 1.442695
      %v3014 = vpow.pop %v3013
      %v3015 = vmul.f32 %v3012, 1.442695
      %v3016 = vpow.pop %v3015
      %3017 = vadd.xlane.f32.xlu0 %v3014
      %v3018 = vpop.xlane.xlu0 %3017
      %3019 = vadd.xlane.f32.xlu0 %v3016
      %v3020 = vpop.xlane.xlu0 %3019
      %v3021 = vrcp.pop %v3018
      %v3022 = vmul.f32 %v3018, %v3021
      %v3023 = vsub.f32 1.0, %v3022
      %v3024 = vmul.f32 %v3021, %v3023
      %v3025 = vadd.f32 %v3021, %v3024
      %vm3026 = vweird.f32 %v3018
      %vm3027 = vweird.f32 %v3021
      %vm3028 = vmor %vm3026, %vm3027
      %v3029 = vsel %vm3028, %v3021, %v3025
      %v3030 = vand.u32 2147483647, %v3018
      %vm3031 = vcmp.eq.f32.partialorder %v3030, 8.507059e+37
      %v3032 = vand.u32 %v3018, 2147483648
      %v3033 = vor.u32 1.1754944e-38, %v3032
      %v3034 = vsel %vm3031, %v3033, %v3029
      %v3035 = vmul.f32 %v3014, %v3034
      %v3036 = vrcp.pop %v3020
      %v3037 = vmul.f32 %v3020, %v3036
      %v3038 = vsub.f32 1.0, %v3037
      %v3039 = vmul.f32 %v3036, %v3038
      %v3040 = vadd.f32 %v3036, %v3039
      %vm3041 = vweird.f32 %v3020
      %vm3042 = vweird.f32 %v3036
      %vm3043 = vmor %vm3041, %vm3042
      %v3044 = vsel %vm3043, %v3036, %v3040
      %v3045 = vand.u32 2147483647, %v3020
      %vm3046 = vcmp.eq.f32.partialorder %v3045, 8.507059e+37
      %v3047 = vand.u32 %v3020, 2147483648
      %v3048 = vor.u32 1.1754944e-38, %v3047
      %v3049 = vsel %vm3046, %v3048, %v3044
      %v3050 = vmul.f32 %v3016, %v3049
      %v3051 = vadd.f32 %v2790, %v3035
      %v3052 = vadd.f32 %v2791, %v3050
      %v3053 = vpack.c.bf16 %v3035, %v3035
      %v3054 = vpack.c.bf16 %v3050, %v3050
      %3055 = vrot.lane.b32.xlu0 %v2094, 72
      %v3056 = vpop.permute.xlu0 %3055
      %3057 = vrot.lane.b32.xlu0 %v2095, 72
      %v3058 = vpop.permute.xlu0 %3057
      %3059 = vrot.lane.b32.xlu0 %v2096, 72
      %v3060 = vpop.permute.xlu0 %3059
      %3061 = vrot.lane.b32.xlu0 %v2097, 72
      %v3062 = vpop.permute.xlu0 %3061
      %3063 = vrot.lane.b32.xlu0 %v2098, 72
      %v3064 = vpop.permute.xlu0 %3063
      %3065 = vrot.lane.b32.xlu0 %v2099, 72
      %v3066 = vpop.permute.xlu0 %3065
      %3067 = vrot.lane.b32.xlu0 %v2100, 72
      %v3068 = vpop.permute.xlu0 %3067
      %3069 = vrot.lane.b32.xlu0 %v2101, 72
      %v3070 = vpop.permute.xlu0 %3069
      %3079 = vmatpush.bf16.msra.mxu0 %v3070
      %3080 = vmatpush.bf16.msra.mxu0 %v3068
      %3081 = vmatpush.bf16.msra.mxu0 %v3066
      %3082 = vmatpush.bf16.msra.mxu0 %v3064
      %3083 = vmatpush.bf16.msra.mxu0 %v3062
      %3084 = vmatpush.bf16.msra.mxu0 %v3060
      %3085 = vmatpush.bf16.msra.mxu0 %v3058
      %3086 = vmatpush.bf16.msra.mxu0 %v3056
      %3087 = vmatmul.bf16.gmra.mxu0 %v3053
      %v3088 = vpop.f32.mrf.mxu0
      %v3089 = vadd.f32 0.0, %v3088
      %v3090 = vpop.f32.mrf.mxu0
      %3091 = vdwg.mxu0
      %3092 = vrot.lane.b32.xlu0 %v2174, 72
      %v3093 = vpop.permute.xlu0 %3092
      %3094 = vrot.lane.b32.xlu0 %v2175, 72
      %v3095 = vpop.permute.xlu0 %3094
      %3096 = vrot.lane.b32.xlu0 %v2176, 72
      %v3097 = vpop.permute.xlu0 %3096
      %3098 = vrot.lane.b32.xlu0 %v2177, 72
      %v3099 = vpop.permute.xlu0 %3098
      %3100 = vrot.lane.b32.xlu0 %v2178, 72
      %v3101 = vpop.permute.xlu0 %3100
      %3102 = vrot.lane.b32.xlu0 %v2179, 72
      %v3103 = vpop.permute.xlu0 %3102
      %3104 = vrot.lane.b32.xlu0 %v2180, 72
      %v3105 = vpop.permute.xlu0 %3104
      %3106 = vrot.lane.b32.xlu0 %v2181, 72
      %v3107 = vpop.permute.xlu0 %3106
      %3116 = vmatpush.bf16.msra.mxu0 %v3107
      %3117 = vmatpush.bf16.msra.mxu0 %v3105
      %3118 = vmatpush.bf16.msra.mxu0 %v3103
      %3119 = vmatpush.bf16.msra.mxu0 %v3101
      %3120 = vmatpush.bf16.msra.mxu0 %v3099
      %3121 = vmatpush.bf16.msra.mxu0 %v3097
      %3122 = vmatpush.bf16.msra.mxu0 %v3095
      %3123 = vmatpush.bf16.msra.mxu0 %v3093
      %3124 = vmatmul.bf16.gmra.mxu0 %v3054
      %v3125 = vpop.f32.mrf.mxu0
      %v3126 = vadd.f32 0.0, %v3125
      %v3127 = vpop.f32.mrf.mxu0
      %3128 = vdwg.mxu0
      %v3129 = vpack.c.bf16 %v3126, %v3089
      %v3131 = vsel %vm1171, %v3129, 0
      %v3134 = vsel %vm1244, %v2023, 0
      %3136 = vmatpush.bf16.msra.mxu0 0
      %3137 = vmatpush.bf16.msra.mxu0 0
      %3138 = vmatpush.bf16.msra.mxu0 0
      %3139 = vmatpush.bf16.msra.mxu0 0
      %3140 = vmatpush.bf16.msra.mxu0 0
      %3141 = vmatpush.bf16.msra.mxu0 0
      %3142 = vmatpush.bf16.msra.mxu0 0
      %3143 = vmatpush.bf16.msra.mxu0 %v3134
      %3144 = vmatmul.bf16.gmra.mxu0 %v3131
      %v3145 = vpop.f32.mrf.mxu0
      %v3146 = vadd.f32 0.0, %v3145
      %v3147 = vpop.f32.mrf.mxu0
      %v3148 = vadd.f32 0.0, %v3147
      %3149 = vdwg.mxu0
      %v3150 = vadd.f32 %v2889, %v3146
      %v3151 = vadd.f32 %v2890, %v3148
      %v3152 = vmul.f32 %v3051, 0.25
      %v3153 = vmul.f32 %v3052, 0.25
      %v3154 = vld [vmem:[%s1069] sm:$0x1]
      %v3156 = vperm.slane %v3154, 0
      %v3158 = vadd.f32 %v3150, %v3156
      %v3159 = vadd.f32 %v3151, %v3156
      %v3160 = vadd.f32 %v3158, %v1775
      %v3161 = vadd.f32 %v3159, %v1776
      %v3162 = vld [vmem:[%s1072] sm:$0x1]
      %v3163 = vld [vmem:[%s1075] sm:$0x1]
      %v3164 = vsel %vm1142, %v3160, 0.0
      %3165 = vadd.xlane.f32.xlu0 %v3164
      %v3166 = vpop.xlane.xlu0 %3165
      %v3167 = vsel %vm1142, %v3161, 0.0
      %3168 = vadd.xlane.f32.xlu0 %v3167
      %v3169 = vpop.xlane.xlu0 %3168
      %v3170 = vmul.f32 %v3166, %v1728
      %v3171 = vmul.f32 %v3169, %v1728
      %v3172 = vsub.f32 %v3160, %v3170
      %v3173 = vsub.f32 %v3161, %v3171
      %v3174 = vmul.f32 %v3172, %v3172
      %v3175 = vmul.f32 %v3173, %v3173
      %v3176 = vsel %vm1142, %v3174, 0.0
      %3177 = vadd.xlane.f32.xlu0 %v3176
      %v3178 = vpop.xlane.xlu0 %3177
      %v3179 = vsel %vm1142, %v3175, 0.0
      %3180 = vadd.xlane.f32.xlu0 %v3179
      %v3181 = vpop.xlane.xlu0 %3180
      %v3182 = vmul.f32 %v3178, %v1728
      %v3183 = vmul.f32 %v3181, %v1728
      %v3184 = vadd.f32 %v3182, 1e-05
      %v3185 = vadd.f32 %v3183, 1e-05
      %v3186 = vrsqrt.pop %v3184
      %v3187 = vmul.f32 %v3186, %v3184
      %v3188 = vmul.f32 %v3187, %v3186
      %v3189 = vmul.f32 0.5, %v3188
      %v3190 = vsub.f32 1.5, %v3189
      %v3191 = vmul.f32 %v3186, %v3190
      %vm3192 = vweird.f32 %v3184
      %vm3193 = vweird.f32 %v3186
      %vm3194 = vmor %vm3192, %vm3193
      %v3195 = vsel %vm3194, %v3186, %v3191
      %v3196 = vrsqrt.pop %v3185
      %v3197 = vmul.f32 %v3196, %v3185
      %v3198 = vmul.f32 %v3197, %v3196
      %v3199 = vmul.f32 0.5, %v3198
      %v3200 = vsub.f32 1.5, %v3199
      %v3201 = vmul.f32 %v3196, %v3200
      %vm3202 = vweird.f32 %v3185
      %vm3203 = vweird.f32 %v3196
      %vm3204 = vmor %vm3202, %vm3203
      %v3205 = vsel %vm3204, %v3196, %v3201
      %v3206 = vmul.f32 %v3172, %v3195
      %v3207 = vmul.f32 %v3173, %v3205
      %v3209 = vperm.slane %v3162, 0
      %v3211 = vmul.f32 %v3206, %v3209
      %v3212 = vmul.f32 %v3207, %v3209
      %v3214 = vperm.slane %v3163, 0
      %v3216 = vadd.f32 %v3211, %v3214
      %v3217 = vadd.f32 %v3212, %v3214
      %v3218 = vld [vmem:[%s1080] sm:$0xf]
      %v3219 = vld [vmem:[%s1080 + $0x4] sm:$0xf]
      %v3220 = vld [vmem:[%s1080 + $0x8] sm:$0xf]
      %v3221 = vld [vmem:[%s1080 + $0xc] sm:$0xf]
      %v3222 = vpack.c.bf16 %v3217, %v3216
      %v3223 = vld [vmem:[%s1083] sm:$0x1]
      %v3225 = vperm.slane %v3223, 0
      %v3231 = vunpack.c.l.b16 %v3218
      %v3232 = vunpack.c.l.b16 %v3219
      %v3233 = vunpack.c.l.b16 %v3220
      %v3234 = vunpack.c.l.b16 %v3221
      %v3235 = vpack.c.b16 %v3232, %v3231
      %v3236 = vpack.c.b16 %v3234, %v3233
      %v3240 = vsel %vm1142, %v3222, 0
      %3242 = vmatpush.bf16.msra.mxu0 0
      %3243 = vmatpush.bf16.msra.mxu0 0
      %3244 = vmatpush.bf16.msra.mxu0 0
      %3245 = vmatpush.bf16.msra.mxu0 0
      %3246 = vmatpush.bf16.msra.mxu0 0
      %3247 = vmatpush.bf16.msra.mxu0 0
      %3248 = vmatpush.bf16.msra.mxu0 %v3236
      %3249 = vmatpush.bf16.msra.mxu0 %v3235
      %3250 = vmatmul.bf16.gmra.mxu0 %v3240
      %v3251 = vpop.f32.mrf.mxu0
      %v3252 = vadd.f32 %v3225, %v3251
      %v3253 = vpop.f32.mrf.mxu0
      %v3254 = vadd.f32 %v3225, %v3253
      %3255 = vdwg.mxu0
      %v3256 = vmax.f32 %v3252, 0.0
      %v3257 = vmax.f32 %v3254, 0.0
      %v3258 = vld [vmem:[%s1088] sm:$0xf]
      %v3259 = vld [vmem:[%s1088 + $0x4] sm:$0xf]
      %v3260 = vld [vmem:[%s1088 + $0x8] sm:$0xf]
      %v3261 = vld [vmem:[%s1088 + $0xc] sm:$0xf]
      %v3262 = vld [vmem:[%s1088 + $0x10] sm:$0xf]
      %v3263 = vld [vmem:[%s1088 + $0x14] sm:$0xf]
      %v3264 = vld [vmem:[%s1088 + $0x18] sm:$0xf]
      %v3265 = vld [vmem:[%s1088 + $0x1c] sm:$0xf]
      %v3266 = vpack.c.bf16 %v3257, %v3256
      %v3267 = vld [vmem:[%s1091] sm:$0x1]
      %v3269 = vperm.slane %v3267, 0
      %v3279 = vunpack.c.l.b16 %v3258
      %v3280 = vunpack.c.l.b16 %v3259
      %v3281 = vunpack.c.l.b16 %v3260
      %v3282 = vunpack.c.l.b16 %v3261
      %v3283 = vunpack.c.l.b16 %v3262
      %v3284 = vunpack.c.l.b16 %v3263
      %v3285 = vunpack.c.l.b16 %v3264
      %v3286 = vunpack.c.l.b16 %v3265
      %v3287 = vpack.c.b16 %v3280, %v3279
      %v3288 = vpack.c.b16 %v3282, %v3281
      %v3289 = vpack.c.b16 %v3284, %v3283
      %v3290 = vpack.c.b16 %v3286, %v3285
      %vm3295 = vcmask 523264
      %v3297 = vsel %vm3295, %v3266, 0
      %3299 = vmatpush.bf16.msra.mxu0 0
      %3300 = vmatpush.bf16.msra.mxu0 0
      %3301 = vmatpush.bf16.msra.mxu0 0
      %3302 = vmatpush.bf16.msra.mxu0 0
      %3303 = vmatpush.bf16.msra.mxu0 %v3290
      %3304 = vmatpush.bf16.msra.mxu0 %v3289
      %3305 = vmatpush.bf16.msra.mxu0 %v3288
      %3306 = vmatpush.bf16.msra.mxu0 %v3287
      %3307 = vmatmul.bf16.gmra.mxu0 %v3297
      %v3308 = vpop.f32.mrf.mxu0
      %v3309 = vadd.f32 %v3269, %v3308
      %v3310 = vpop.f32.mrf.mxu0
      %v3311 = vadd.f32 %v3269, %v3310
      %3312 = vdwg.mxu0
      %v3313 = vadd.f32 %v3309, %v3216
      %v3314 = vadd.f32 %v3311, %v3217
      %v3315 = vld [vmem:[%s1094] sm:$0x1]
      %v3316 = vld [vmem:[%s1097] sm:$0x1]
      %v3317 = vsel %vm1142, %v3313, 0.0
      %3318 = vadd.xlane.f32.xlu0 %v3317
      %v3319 = vpop.xlane.xlu0 %3318
      %v3320 = vsel %vm1142, %v3314, 0.0
      %3321 = vadd.xlane.f32.xlu0 %v3320
      %v3322 = vpop.xlane.xlu0 %3321
      %v3323 = vmul.f32 %v3319, %v1728
      %v3324 = vmul.f32 %v3322, %v1728
      %v3325 = vsub.f32 %v3313, %v3323
      %v3326 = vsub.f32 %v3314, %v3324
      %v3327 = vmul.f32 %v3325, %v3325
      %v3328 = vmul.f32 %v3326, %v3326
      %v3329 = vsel %vm1142, %v3327, 0.0
      %3330 = vadd.xlane.f32.xlu0 %v3329
      %v3331 = vpop.xlane.xlu0 %3330
      %v3332 = vsel %vm1142, %v3328, 0.0
      %3333 = vadd.xlane.f32.xlu0 %v3332
      %v3334 = vpop.xlane.xlu0 %3333
      %v3335 = vmul.f32 %v3331, %v1728
      %v3336 = vmul.f32 %v3334, %v1728
      %v3337 = vadd.f32 %v3335, 1e-05
      %v3338 = vadd.f32 %v3336, 1e-05
      %v3339 = vrsqrt.pop %v3337
      %v3340 = vmul.f32 %v3339, %v3337
      %v3341 = vmul.f32 %v3340, %v3339
      %v3342 = vmul.f32 0.5, %v3341
      %v3343 = vsub.f32 1.5, %v3342
      %v3344 = vmul.f32 %v3339, %v3343
      %vm3345 = vweird.f32 %v3337
      %vm3346 = vweird.f32 %v3339
      %vm3347 = vmor %vm3345, %vm3346
      %v3348 = vsel %vm3347, %v3339, %v3344
      %v3349 = vrsqrt.pop %v3338
      %v3350 = vmul.f32 %v3349, %v3338
      %v3351 = vmul.f32 %v3350, %v3349
      %v3352 = vmul.f32 0.5, %v3351
      %v3353 = vsub.f32 1.5, %v3352
      %v3354 = vmul.f32 %v3349, %v3353
      %vm3355 = vweird.f32 %v3338
      %vm3356 = vweird.f32 %v3349
      %vm3357 = vmor %vm3355, %vm3356
      %v3358 = vsel %vm3357, %v3349, %v3354
      %v3359 = vmul.f32 %v3325, %v3348
      %v3360 = vmul.f32 %v3326, %v3358
      %v3362 = vperm.slane %v3315, 0
      %v3364 = vmul.f32 %v3359, %v3362
      %v3365 = vmul.f32 %v3360, %v3362
      %v3367 = vperm.slane %v3316, 0
      %v3369 = vadd.f32 %v3364, %v3367
      %v3370 = vadd.f32 %v3365, %v3367
      %3371 = vst.msk [vmem:[%s1106] sm:$0xff] %vm1142, %v3369
      %3372 = vst.msk [vmem:[%s1106 + $0x8] sm:$0xff] %vm1142, %v3370
      %3373 = vst [vmem:[%s1116] sm:$0xff] %v3152
      %3374 = vst [vmem:[%s1116 + $0x8] sm:$0xff] %v3153
      %s3375 = smul.u32 2, %s40
      %p3376 = scmp.lt.s32.totalorder %s39, 1
      %s3377 = scalar_select %p3376, %s39, 1
      %p3378 = scmp.lt.s32.totalorder %s3375, 1
      %s3379 = scalar_select %p3378, %s3375, 1
      %s3380 = smul.addr %s3377, 2
      %s3381 = sadd.s32 %s3379, %s3380
      %s3382 = smul.addr %s3381, 8
      %s3383 = scalar_lea.vmem %s22, %s3382
      %s3384 = smul.u32 2, %s40
      %p3385 = scmp.lt.s32.totalorder %s39, 1
      %s3386 = scalar_select %p3385, %s39, 1
      %p3387 = scmp.lt.s32.totalorder %s3384, 1
      %s3388 = scalar_select %p3387, %s3384, 1
      %s3389 = smul.addr %s3386, 2
      %s3390 = sadd.s32 %s3388, %s3389
      %s3391 = smul.addr %s3390, 8
      %s3392 = scalar_lea.vmem %s23, %s3391
      // Predicated region
      $region109: #{transformer_dual_decoder_layer.1} parent=107 // pred_check
        %p3393 = pneg %p641
      $region110: #{transformer_dual_decoder_layer.1} parent=107 // pred_check_branch
        %3395 = sbr.rel (%p3393) target = $region112
      $region111: #{transformer_dual_decoder_layer.1} parent=107 // pred_region
        %s3396 = smul.u32 2, %s40
      $region112: #{transformer_dual_decoder_layer.1} parent=107 // pred_fallthru
        _
      // Predicated region
      $region113: #{transformer_dual_decoder_layer.1} parent=107 // pred_check
        %p3397 = pneg %p669
      $region114: #{transformer_dual_decoder_layer.1} parent=107 // pred_check_branch
        %3399 = sbr.rel (%p3397) target = $region116
      $region115: #{transformer_dual_decoder_layer.1} parent=107 // pred_region
        %s3400 = smul.u32 2, %s40
      $region116: #{transformer_dual_decoder_layer.1} parent=107 // pred_fallthru
        _
    $region108: #{transformer_dual_decoder_layer.1} parent=5 // pred_fallthru
      _
    %p3401 = scmp.le.s32.totalorder 2, %s30
    // Predicated region
    $region117: #{transformer_dual_decoder_layer.1} parent=5 // pred_check
      %p3402 = pneg %p3401
    $region118: #{transformer_dual_decoder_layer.1} parent=5 // pred_check_branch
      %3404 = sbr.rel (%p3402) target = $region120
    $region119: #{transformer_dual_decoder_layer.1} parent=5 // pred_region
      %s3405 = ssub.s32 %s30, 2
      // Predicated region
      $region121: #{transformer_dual_decoder_layer.1} parent=119 // pred_check
        %p3406 = pneg %p647
      $region122: #{transformer_dual_decoder_layer.1} parent=119 // pred_check_branch
        %3408 = sbr.rel (%p3406) target = $region124
      $region123: #{transformer_dual_decoder_layer.1} parent=119 // pred_region
        %s3409 = smul.u32 2, %s42
        %p3410 = scmp.lt.s32.totalorder %s41, 1
        %s3411 = scalar_select %p3410, %s41, 1
        %p3412 = scmp.lt.s32.totalorder %s3409, 1
        %s3413 = scalar_select %p3412, %s3409, 1
        %s3414 = smul.addr %s3411, 2
        %s3415 = sadd.s32 %s3413, %s3414
        %s3416 = smul.addr %s3415, 8
        %s3417 = scalar_lea.vmem %s22, %s3416
      $region124: #{transformer_dual_decoder_layer.1} parent=119 // pred_fallthru
        _
      // Predicated region
      $region125: #{transformer_dual_decoder_layer.1} parent=119 // pred_check
        %p3418 = pneg %p675
      $region126: #{transformer_dual_decoder_layer.1} parent=119 // pred_check_branch
        %3420 = sbr.rel (%p3418) target = $region128
      $region127: #{transformer_dual_decoder_layer.1} parent=119 // pred_region
        %s3421 = smul.u32 2, %s42
        %p3422 = scmp.lt.s32.totalorder %s41, 1
        %s3423 = scalar_select %p3422, %s41, 1
        %p3424 = scmp.lt.s32.totalorder %s3421, 1
        %s3425 = scalar_select %p3424, %s3421, 1
        %s3426 = smul.addr %s3423, 2
        %s3427 = sadd.s32 %s3425, %s3426
        %s3428 = smul.addr %s3427, 8
        %s3429 = scalar_lea.vmem %s23, %s3428
      $region128: #{transformer_dual_decoder_layer.1} parent=119 // pred_fallthru
        _
    $region120: #{transformer_dual_decoder_layer.1} parent=5 // pred_fallthru
      _
  $region6: #{transformer_dual_decoder_layer.1} parent=0 // loop_footer
    %s34 = sadd.s32 1, %s30
  $region7: #{transformer_dual_decoder_layer.1} parent=0 // loop_footer_branch
    %29 = sbr.rel target = $region3
  $region8: #{transformer_dual_decoder_layer.1} parent=0 // loop_exit
    _

</llo_original>
